<compile_context>
chip_gen: v6e
topology: v6e:2x2x1
jax: 0.10.0
libtpu: 0.0.40
codegen_flags: <defaults>
</compile_context>

<pallas_src>
from functools import partial
import math

import jax
import jax.numpy as jnp
from jax.experimental import pallas as pl
from jax.experimental.pallas import tpu as pltpu


def _layernorm(v, gamma, beta, eps=1e-5):
    mu = jnp.mean(v, axis=-1, keepdims=True)
    var = jnp.mean((v - mu) ** 2, axis=-1, keepdims=True)
    return (v - mu) * jax.lax.rsqrt(var + eps) * gamma + beta


def _gelu_exact(x):
    # PyTorch nn.GELU default (erf formulation), kept in f32.
    return 0.5 * x * (1.0 + jax.lax.erf(x * (1.0 / math.sqrt(2.0))))


def block_kernel(x_ref,
                 g1_ref, b1_ref,
                 wqkv_ref,
                 wp_ref, bp_ref,
                 g2_ref, b2_ref,
                 w1_ref, bb1_ref,
                 w2_ref, bb2_ref,
                 o_ref,
                 *, num_heads, head_dim):
    C = num_heads * head_dim
    x = x_ref[0]                       # (N, C) f32
    n_tok = x.shape[0]

    # ---- Attention branch -------------------------------------------------
    xn = _layernorm(x, g1_ref[...], b1_ref[...])

    # Fused Q/K/V projection (bf16 inputs/weights, f32 MXU accumulation).  The
    # attention scale is already folded into the Q columns of wqkv (wrapper).
    # Cast the (N, 3C) intermediate to bf16 once; it stays live across all heads.
    qkv = jnp.dot(xn.astype(jnp.bfloat16), wqkv_ref[...],
                  preferred_element_type=jnp.float32).astype(jnp.bfloat16)

    # Static per-head loop (num_heads is small); only the f32 (N, C) accumulator
    # survives across iterations -- each head's contribution is projected through
    # the matching row-slice of Wp immediately (lane-dense, no scratch scatter).
    attn_out = jnp.zeros((n_tok, C), jnp.float32)
    for h in range(num_heads):
        lo = h * head_dim
        hi = lo + head_dim
        q_h = qkv[:, lo:hi]                    # (N, hd) bf16
        k_h = qkv[:, C + lo:C + hi]            # (N, hd) bf16
        v_h = qkv[:, 2 * C + lo:2 * C + hi]    # (N, hd) bf16

        # scores = q_h @ k_h^T without materializing a transpose.
        s = jax.lax.dot_general(
            q_h, k_h, (((1,), (1,)), ((), ())),
            preferred_element_type=jnp.float32)            # (N, N) f32
        s = s - jnp.max(s, axis=-1, keepdims=True)
        p = jnp.exp(s)
        # Normalize AFTER the value matmul: scale the (N, hd) result instead of
        # the (N, N) probabilities (fewer VPU multiplies; EUP approx reciprocal).
        r = pl.reciprocal(jnp.sum(p, axis=-1, keepdims=True), approx=True)
        o_h = jnp.dot(p.astype(jnp.bfloat16), v_h,
                      preferred_element_type=jnp.float32) * r   # (N, hd) f32

        # Project this head's rows of Wp and accumulate (sublane-aligned slice).
        attn_out = attn_out + jnp.dot(o_h.astype(jnp.bfloat16), wp_ref[lo:hi, :],
                                      preferred_element_type=jnp.float32)

    x1 = x + attn_out + bp_ref[...]   # residual (drop_path / proj_drop = identity)

    # ---- MLP branch --------------------------------------------------------
    x1n = _layernorm(x1, g2_ref[...], b2_ref[...])
    h1 = jnp.dot(x1n.astype(jnp.bfloat16), w1_ref[...],
                 preferred_element_type=jnp.float32) + bb1_ref[...]
    h1 = _gelu_exact(h1)
    h2 = jnp.dot(h1.astype(jnp.bfloat16), w2_ref[...],
                 preferred_element_type=jnp.float32) + bb2_ref[...]

    o_ref[0] = x1 + h2


def _vmem_limit_bytes():
    # Size the scoped-VMEM request from the chip's physical VMEM, leaving ~25%
    # headroom for Mosaic internal scratch / semaphores / spills.
    #   v5e/v6e: 128 MiB physical -> ~96 MiB request; v7x: 64 MiB -> ~48 MiB.
    try:
        cap = pltpu.get_tpu_info().vmem_capacity_bytes
    except Exception:
        cap = 128 * 1024 * 1024
    return max(32 * 1024 * 1024, min(int(cap) * 3 // 4, 100 * 1024 * 1024))


def _build_block_call(B, N, C, H, num_heads, head_dim, single_buffer_weights):
    def const_spec(shape):
        nd = len(shape)
        idx = lambda b, _nd=nd: (0,) * _nd
        if single_buffer_weights:
            # Constant index_map -> no re-DMA anyway; single-buffer to halve the
            # resident weight VMEM (default allocates 2 buffers per operand).
            return pl.BlockSpec(shape, idx, pipeline_mode=pl.Buffered(1))
        return pl.BlockSpec(shape, idx)

    in_specs = [
        pl.BlockSpec((1, N, C), lambda b: (b, 0, 0)),   # x
        const_spec((1, C)), const_spec((1, C)),         # norm1 gamma / beta
        const_spec((C, 3 * C)),                         # fused qkv weight (bf16)
        const_spec((C, C)), const_spec((1, C)),         # proj W (bf16) / b
        const_spec((1, C)), const_spec((1, C)),         # norm2 gamma / beta
        const_spec((C, H)), const_spec((1, H)),         # fc1 W (bf16) / b
        const_spec((H, C)), const_spec((1, C)),         # fc2 W (bf16) / b
    ]

    # Advisory cost estimate so XLA can schedule surrounding ops around this call.
    flops = 2 * B * N * (4 * C * C + 2 * C * H) + 4 * B * N * N * C
    transcendentals = B * N * (num_heads * N + H)
    bytes_accessed = (2 * B * N * C * 4                 # activations in/out (f32)
                      + (4 * C * C + 2 * C * H) * 2     # bf16 matmul weights
                      + (6 * C + H) * 4)                # small f32 vectors

    kernel = partial(block_kernel, num_heads=num_heads, head_dim=head_dim)

    return pl.pallas_call(
        kernel,
        out_shape=jax.ShapeDtypeStruct((B, N, C), jnp.float32),
        grid_spec=pltpu.PrefetchScalarGridSpec(
            num_scalar_prefetch=0,
            grid=(B,),
            in_specs=in_specs,
            out_specs=pl.BlockSpec((1, N, C), lambda b: (b, 0, 0)),
        ),
        compiler_params=pltpu.CompilerParams(
            dimension_semantics=("parallel",),
            vmem_limit_bytes=_vmem_limit_bytes(),
        ),
        cost_estimate=pl.CostEstimate(
            flops=flops,
            transcendentals=transcendentals,
            bytes_accessed=bytes_accessed,
        ),
    )


def vit_block(x, params, num_heads):
    B, N, C = x.shape
    head_dim = C // num_heads
    assert num_heads * head_dim == C, "num_heads must divide dim"
    scale = head_dim ** (-0.5)
    H = params["w1"].shape[1]

    # Fuse q/k/v weights into one (C, 3C) operand, fold the softmax scale into
    # the Q columns (x @ (scale*Wq) == scale * (x @ Wq)) and cast the matmul
    # weights to bf16 (halves weight VMEM/HBM traffic; MXU accumulates in f32).
    wqkv = jnp.concatenate(
        [params["wq"] * scale, params["wk"], params["wv"]], axis=1
    ).astype(jnp.bfloat16)
    wp = params["wp"].astype(jnp.bfloat16)
    w1 = params["w1"].astype(jnp.bfloat16)
    w2 = params["w2"].astype(jnp.bfloat16)

    args = (x,
            params["g1"], params["b1"],
            wqkv,
            wp, params["bp"],
            params["g2"], params["b2"],
            w1, params["bb1"],
            w2, params["bb2"])

    try:
        return _build_block_call(B, N, C, H, num_heads, head_dim, True)(*args)
    except Exception:
        # Fallback for JAX versions without BlockSpec pipeline_mode support:
        # default double-buffered constant operands (correctness identical).
        return _build_block_call(B, N, C, H, num_heads, head_dim, False)(*args)


def vit_block_ref(x, params, num_heads):
    """Pure-JAX f32 reference (mirrors the PyTorch Block forward)."""
    B, N, C = x.shape
    hd = C // num_heads
    scale = hd ** (-0.5)

    def ln(v, g, b):
        mu = jnp.mean(v, axis=-1, keepdims=True)
        var = jnp.mean((v - mu) ** 2, axis=-1, keepdims=True)
        return (v - mu) * jax.lax.rsqrt(var + 1e-5) * g + b

    xn = ln(x, params["g1"], params["b1"])
    qkv = jnp.concatenate([xn @ params["wq"], xn @ params["wk"], xn @ params["wv"]], -1)
    qkv = qkv.reshape(B, N, 3, num_heads, hd).transpose(2, 0, 3, 1, 4)
    q, k, v = qkv[0], qkv[1], qkv[2]
    attn = jax.nn.softmax((q @ jnp.swapaxes(k, -2, -1)) * scale, axis=-1)
    a = (attn @ v).transpose(0, 2, 1, 3).reshape(B, N, C)
    x1 = x + (a @ params["wp"] + params["bp"])
    x1n = ln(x1, params["g2"], params["b2"])
    h1 = 0.5 * (x1n @ params["w1"] + params["bb1"]) * (
        1.0 + jax.lax.erf((x1n @ params["w1"] + params["bb1"]) / math.sqrt(2.0)))
    return x1 + (h1 @ params["w2"] + params["bb2"])


def init_params(key, dim, num_heads, mlp_ratio=4.0):
    H = int(dim * mlp_ratio)
    ks = jax.random.split(key, 8)
    s_attn = 1.0 / math.sqrt(dim)
    s_mlp1 = 1.0 / math.sqrt(dim)
    s_mlp2 = 1.0 / math.sqrt(H)
    # qkv is one Linear(dim, 3*dim) in PyTorch (no bias); split into q/k/v here.
    qkv_w = jax.random.uniform(ks[0], (dim, 3 * dim), jnp.float32, -s_attn, s_attn)
    params = {
        "g1": jnp.ones((1, dim), jnp.float32),
        "b1": jnp.zeros((1, dim), jnp.float32),
        "wq": qkv_w[:, 0 * dim:1 * dim],
        "wk": qkv_w[:, 1 * dim:2 * dim],
        "wv": qkv_w[:, 2 * dim:3 * dim],
        "wp": jax.random.uniform(ks[1], (dim, dim), jnp.float32, -s_attn, s_attn),
        "bp": jax.random.uniform(ks[2], (1, dim), jnp.float32, -s_attn, s_attn),
        "g2": jnp.ones((1, dim), jnp.float32),
        "b2": jnp.zeros((1, dim), jnp.float32),
        "w1": jax.random.uniform(ks[3], (dim, H), jnp.float32, -s_mlp1, s_mlp1),
        "bb1": jax.random.uniform(ks[4], (1, H), jnp.float32, -s_mlp1, s_mlp1),
        "w2": jax.random.uniform(ks[5], (H, dim), jnp.float32, -s_mlp2, s_mlp2),
        "bb2": jax.random.uniform(ks[6], (1, dim), jnp.float32, -s_mlp2, s_mlp2),
    }
    return params


if __name__ == "__main__":
    B, N, C = 2, 8, 32
    num_heads = 4

    key = jax.random.PRNGKey(0)
    kx, kp = jax.random.split(key)
    x = jax.random.normal(kx, (B, N, C), jnp.float32)
    params = init_params(kp, C, num_heads)

    out = vit_block(x, params, num_heads)
    jax.block_until_ready(out)
    assert out.shape == (B, N, C)

    # Tolerance check vs. pure-f32 reference (bf16 MXU + approx reciprocal expected
    # to stay well within this bound at these magnitudes).
    ref = vit_block_ref(x, params, num_heads)
    max_err = float(jnp.max(jnp.abs(out - ref)))
    assert max_err < 0.1, f"max abs error {max_err} vs f32 reference"

    print("KERNEL_OK")
</pallas_src>

<mosaic_0001>
module attributes {stable_mosaic.version = 11 : i64} {
  func.func @block_kernel(%arg0: i32, %arg1: memref<1x8x32xf32, #tpu.memory_space<vmem>>, %arg2: memref<1x32xf32, #tpu.memory_space<vmem>>, %arg3: memref<1x32xf32, #tpu.memory_space<vmem>>, %arg4: memref<32x96xbf16, #tpu.memory_space<vmem>>, %arg5: memref<32x32xbf16, #tpu.memory_space<vmem>>, %arg6: memref<1x32xf32, #tpu.memory_space<vmem>>, %arg7: memref<1x32xf32, #tpu.memory_space<vmem>>, %arg8: memref<1x32xf32, #tpu.memory_space<vmem>>, %arg9: memref<32x128xbf16, #tpu.memory_space<vmem>>, %arg10: memref<1x128xf32, #tpu.memory_space<vmem>>, %arg11: memref<128x32xbf16, #tpu.memory_space<vmem>>, %arg12: memref<1x32xf32, #tpu.memory_space<vmem>>, %arg13: memref<1x8x32xf32, #tpu.memory_space<vmem>>) attributes {dimension_semantics = [#tpu.dimension_semantics<parallel>], iteration_bounds = array<i64: 2>, scalar_prefetch = 0 : i64, scratch_operands = 0 : i64, tpu.core_type = #tpu.core_type<tc>, window_params = [{transform_indices = @transform_0, window_bounds = array<i64: 1, 8, 32>}, {pipeline_mode = #tpu.pipeline_mode<synchronous>, transform_indices = @transform_1, window_bounds = array<i64: 1, 32>}, {pipeline_mode = #tpu.pipeline_mode<synchronous>, transform_indices = @transform_2, window_bounds = array<i64: 1, 32>}, {pipeline_mode = #tpu.pipeline_mode<synchronous>, transform_indices = @transform_3, window_bounds = array<i64: 32, 96>}, {pipeline_mode = #tpu.pipeline_mode<synchronous>, transform_indices = @transform_4, window_bounds = array<i64: 32, 32>}, {pipeline_mode = #tpu.pipeline_mode<synchronous>, transform_indices = @transform_5, window_bounds = array<i64: 1, 32>}, {pipeline_mode = #tpu.pipeline_mode<synchronous>, transform_indices = @transform_6, window_bounds = array<i64: 1, 32>}, {pipeline_mode = #tpu.pipeline_mode<synchronous>, transform_indices = @transform_7, window_bounds = array<i64: 1, 32>}, {pipeline_mode = #tpu.pipeline_mode<synchronous>, transform_indices = @transform_8, window_bounds = array<i64: 32, 128>}, {pipeline_mode = #tpu.pipeline_mode<synchronous>, transform_indices = @transform_9, window_bounds = array<i64: 1, 128>}, {pipeline_mode = #tpu.pipeline_mode<synchronous>, transform_indices = @transform_10, window_bounds = array<i64: 128, 32>}, {pipeline_mode = #tpu.pipeline_mode<synchronous>, transform_indices = @transform_11, window_bounds = array<i64: 1, 32>}, {transform_indices = @transform_12, window_bounds = array<i64: 1, 8, 32>}]} {
    %c0 = arith.constant 0 : index
    %c0_0 = arith.constant 0 : index
    %c0_1 = arith.constant 0 : index
    %0 = vector.load %arg1[%c0, %c0_0, %c0_1] : memref<1x8x32xf32, #tpu.memory_space<vmem>>, vector<1x8x32xf32>
    %1 = vector.shape_cast %0 : vector<1x8x32xf32> to vector<8x32xf32>
    %c0_2 = arith.constant 0 : index
    %c0_3 = arith.constant 0 : index
    %2 = vector.load %arg2[%c0_2, %c0_3] : memref<1x32xf32, #tpu.memory_space<vmem>>, vector<1x32xf32>
    %c0_4 = arith.constant 0 : index
    %c0_5 = arith.constant 0 : index
    %3 = vector.load %arg3[%c0_4, %c0_5] : memref<1x32xf32, #tpu.memory_space<vmem>>, vector<1x32xf32>
    %cst = arith.constant dense<0.000000e+00> : vector<8xf32>
    %4 = vector.multi_reduction <add>, %1, %cst [1] : vector<8x32xf32> to vector<8xf32>
    %5 = vector.shape_cast %4 : vector<8xf32> to vector<8x1xf32>
    %cst_6 = arith.constant 3.200000e+01 : f32
    %6 = vector.broadcast %cst_6 : f32 to vector<8x1xf32>
    %7 = arith.divf %5, %6 : vector<8x1xf32>
    %8 = vector.broadcast %7 : vector<8x1xf32> to vector<8x32xf32>
    %9 = arith.subf %1, %8 : vector<8x32xf32>
    %10 = arith.mulf %9, %9 : vector<8x32xf32>
    %cst_7 = arith.constant dense<0.000000e+00> : vector<8xf32>
    %11 = vector.multi_reduction <add>, %10, %cst_7 [1] : vector<8x32xf32> to vector<8xf32>
    %12 = vector.shape_cast %11 : vector<8xf32> to vector<8x1xf32>
    %cst_8 = arith.constant 3.200000e+01 : f32
    %13 = vector.broadcast %cst_8 : f32 to vector<8x1xf32>
    %14 = arith.divf %12, %13 : vector<8x1xf32>
    %15 = vector.broadcast %7 : vector<8x1xf32> to vector<8x32xf32>
    %16 = arith.subf %1, %15 : vector<8x32xf32>
    %cst_9 = arith.constant 9.99999974E-6 : f32
    %17 = vector.broadcast %cst_9 : f32 to vector<8x1xf32>
    %18 = arith.addf %14, %17 : vector<8x1xf32>
    %19 = math.rsqrt %18 : vector<8x1xf32>
    %20 = vector.broadcast %19 : vector<8x1xf32> to vector<8x32xf32>
    %21 = arith.mulf %16, %20 : vector<8x32xf32>
    %22 = vector.broadcast %2 : vector<1x32xf32> to vector<8x32xf32>
    %23 = arith.mulf %21, %22 : vector<8x32xf32>
    %24 = vector.broadcast %3 : vector<1x32xf32> to vector<8x32xf32>
    %25 = arith.addf %23, %24 : vector<8x32xf32>
    %26 = arith.truncf %25 : vector<8x32xf32> to vector<8x32xbf16>
    %c0_10 = arith.constant 0 : index
    %c0_11 = arith.constant 0 : index
    %27 = vector.load %arg4[%c0_10, %c0_11] : memref<32x96xbf16, #tpu.memory_space<vmem>>, vector<32x96xbf16>
    %cst_12 = arith.constant dense<0.000000e+00> : vector<8x96xf32>
    %28 = tpu.matmul %26, %27, %cst_12 {dimension_numbers = #tpu.dot_dimension_numbers<[1], [0], [0], [1], [0, 0, 1, 1], [], []>} : vector<8x32xbf16>, vector<32x96xbf16>, vector<8x96xf32> -> vector<8x96xf32>
    %29 = arith.truncf %28 : vector<8x96xf32> to vector<8x96xbf16>
    %cst_13 = arith.constant 0.000000e+00 : f32
    %30 = vector.broadcast %cst_13 : f32 to vector<8x32xf32>
    %31 = vector.extract_strided_slice %29 {offsets = [0, 0], sizes = [8, 8], strides = [1, 1]} : vector<8x96xbf16> to vector<8x8xbf16>
    %32 = vector.extract_strided_slice %29 {offsets = [0, 32], sizes = [8, 8], strides = [1, 1]} : vector<8x96xbf16> to vector<8x8xbf16>
    %33 = vector.extract_strided_slice %29 {offsets = [0, 64], sizes = [8, 8], strides = [1, 1]} : vector<8x96xbf16> to vector<8x8xbf16>
    %cst_14 = arith.constant dense<0.000000e+00> : vector<8x8xf32>
    %34 = tpu.matmul %31, %32, %cst_14 {dimension_numbers = #tpu.dot_dimension_numbers<[1], [1], [0], [0], [0, 0, 1, 0], [], []>} : vector<8x8xbf16>, vector<8x8xbf16>, vector<8x8xf32> -> vector<8x8xf32>
    %cst_15 = arith.constant dense<0xFF800000> : vector<8xf32>
    %35 = vector.multi_reduction <maximumf>, %34, %cst_15 [1] : vector<8x8xf32> to vector<8xf32>
    %36 = vector.shape_cast %35 : vector<8xf32> to vector<8x1xf32>
    %37 = vector.broadcast %36 : vector<8x1xf32> to vector<8x8xf32>
    %38 = arith.subf %34, %37 : vector<8x8xf32>
    %39 = math.exp %38 : vector<8x8xf32>
    %cst_16 = arith.constant dense<0.000000e+00> : vector<8xf32>
    %40 = vector.multi_reduction <add>, %39, %cst_16 [1] : vector<8x8xf32> to vector<8xf32>
    %41 = vector.shape_cast %40 : vector<8xf32> to vector<8x1xf32>
    %42 = tpu.reciprocal %41 {approx = true} : vector<8x1xf32> -> vector<8x1xf32>
    %43 = arith.truncf %39 : vector<8x8xf32> to vector<8x8xbf16>
    %cst_17 = arith.constant dense<0.000000e+00> : vector<8x8xf32>
    %44 = tpu.matmul %43, %33, %cst_17 {dimension_numbers = #tpu.dot_dimension_numbers<[1], [0], [0], [1], [0, 0, 1, 1], [], []>} : vector<8x8xbf16>, vector<8x8xbf16>, vector<8x8xf32> -> vector<8x8xf32>
    %45 = vector.broadcast %42 : vector<8x1xf32> to vector<8x8xf32>
    %46 = arith.mulf %44, %45 : vector<8x8xf32>
    %47 = arith.truncf %46 : vector<8x8xf32> to vector<8x8xbf16>
    %c0_18 = arith.constant 0 : index
    %c0_19 = arith.constant 0 : index
    %48 = vector.load %arg5[%c0_18, %c0_19] : memref<32x32xbf16, #tpu.memory_space<vmem>>, vector<8x32xbf16>
    %cst_20 = arith.constant dense<0.000000e+00> : vector<8x32xf32>
    %49 = tpu.matmul %47, %48, %cst_20 {dimension_numbers = #tpu.dot_dimension_numbers<[1], [0], [0], [1], [0, 0, 1, 1], [], []>} : vector<8x8xbf16>, vector<8x32xbf16>, vector<8x32xf32> -> vector<8x32xf32>
    %50 = arith.addf %30, %49 : vector<8x32xf32>
    %51 = vector.extract_strided_slice %29 {offsets = [0, 8], sizes = [8, 8], strides = [1, 1]} : vector<8x96xbf16> to vector<8x8xbf16>
    %52 = vector.extract_strided_slice %29 {offsets = [0, 40], sizes = [8, 8], strides = [1, 1]} : vector<8x96xbf16> to vector<8x8xbf16>
    %53 = vector.extract_strided_slice %29 {offsets = [0, 72], sizes = [8, 8], strides = [1, 1]} : vector<8x96xbf16> to vector<8x8xbf16>
    %cst_21 = arith.constant dense<0.000000e+00> : vector<8x8xf32>
    %54 = tpu.matmul %51, %52, %cst_21 {dimension_numbers = #tpu.dot_dimension_numbers<[1], [1], [0], [0], [0, 0, 1, 0], [], []>} : vector<8x8xbf16>, vector<8x8xbf16>, vector<8x8xf32> -> vector<8x8xf32>
    %cst_22 = arith.constant dense<0xFF800000> : vector<8xf32>
    %55 = vector.multi_reduction <maximumf>, %54, %cst_22 [1] : vector<8x8xf32> to vector<8xf32>
    %56 = vector.shape_cast %55 : vector<8xf32> to vector<8x1xf32>
    %57 = vector.broadcast %56 : vector<8x1xf32> to vector<8x8xf32>
    %58 = arith.subf %54, %57 : vector<8x8xf32>
    %59 = math.exp %58 : vector<8x8xf32>
    %cst_23 = arith.constant dense<0.000000e+00> : vector<8xf32>
    %60 = vector.multi_reduction <add>, %59, %cst_23 [1] : vector<8x8xf32> to vector<8xf32>
    %61 = vector.shape_cast %60 : vector<8xf32> to vector<8x1xf32>
    %62 = tpu.reciprocal %61 {approx = true} : vector<8x1xf32> -> vector<8x1xf32>
    %63 = arith.truncf %59 : vector<8x8xf32> to vector<8x8xbf16>
    %cst_24 = arith.constant dense<0.000000e+00> : vector<8x8xf32>
    %64 = tpu.matmul %63, %53, %cst_24 {dimension_numbers = #tpu.dot_dimension_numbers<[1], [0], [0], [1], [0, 0, 1, 1], [], []>} : vector<8x8xbf16>, vector<8x8xbf16>, vector<8x8xf32> -> vector<8x8xf32>
    %65 = vector.broadcast %62 : vector<8x1xf32> to vector<8x8xf32>
    %66 = arith.mulf %64, %65 : vector<8x8xf32>
    %67 = arith.truncf %66 : vector<8x8xf32> to vector<8x8xbf16>
    %c8 = arith.constant 8 : index
    %c0_25 = arith.constant 0 : index
    %68 = vector.load %arg5[%c8, %c0_25] : memref<32x32xbf16, #tpu.memory_space<vmem>>, vector<8x32xbf16>
    %cst_26 = arith.constant dense<0.000000e+00> : vector<8x32xf32>
    %69 = tpu.matmul %67, %68, %cst_26 {dimension_numbers = #tpu.dot_dimension_numbers<[1], [0], [0], [1], [0, 0, 1, 1], [], []>} : vector<8x8xbf16>, vector<8x32xbf16>, vector<8x32xf32> -> vector<8x32xf32>
    %70 = arith.addf %50, %69 : vector<8x32xf32>
    %71 = vector.extract_strided_slice %29 {offsets = [0, 16], sizes = [8, 8], strides = [1, 1]} : vector<8x96xbf16> to vector<8x8xbf16>
    %72 = vector.extract_strided_slice %29 {offsets = [0, 48], sizes = [8, 8], strides = [1, 1]} : vector<8x96xbf16> to vector<8x8xbf16>
    %73 = vector.extract_strided_slice %29 {offsets = [0, 80], sizes = [8, 8], strides = [1, 1]} : vector<8x96xbf16> to vector<8x8xbf16>
    %cst_27 = arith.constant dense<0.000000e+00> : vector<8x8xf32>
    %74 = tpu.matmul %71, %72, %cst_27 {dimension_numbers = #tpu.dot_dimension_numbers<[1], [1], [0], [0], [0, 0, 1, 0], [], []>} : vector<8x8xbf16>, vector<8x8xbf16>, vector<8x8xf32> -> vector<8x8xf32>
    %cst_28 = arith.constant dense<0xFF800000> : vector<8xf32>
    %75 = vector.multi_reduction <maximumf>, %74, %cst_28 [1] : vector<8x8xf32> to vector<8xf32>
    %76 = vector.shape_cast %75 : vector<8xf32> to vector<8x1xf32>
    %77 = vector.broadcast %76 : vector<8x1xf32> to vector<8x8xf32>
    %78 = arith.subf %74, %77 : vector<8x8xf32>
    %79 = math.exp %78 : vector<8x8xf32>
    %cst_29 = arith.constant dense<0.000000e+00> : vector<8xf32>
    %80 = vector.multi_reduction <add>, %79, %cst_29 [1] : vector<8x8xf32> to vector<8xf32>
    %81 = vector.shape_cast %80 : vector<8xf32> to vector<8x1xf32>
    %82 = tpu.reciprocal %81 {approx = true} : vector<8x1xf32> -> vector<8x1xf32>
    %83 = arith.truncf %79 : vector<8x8xf32> to vector<8x8xbf16>
    %cst_30 = arith.constant dense<0.000000e+00> : vector<8x8xf32>
    %84 = tpu.matmul %83, %73, %cst_30 {dimension_numbers = #tpu.dot_dimension_numbers<[1], [0], [0], [1], [0, 0, 1, 1], [], []>} : vector<8x8xbf16>, vector<8x8xbf16>, vector<8x8xf32> -> vector<8x8xf32>
    %85 = vector.broadcast %82 : vector<8x1xf32> to vector<8x8xf32>
    %86 = arith.mulf %84, %85 : vector<8x8xf32>
    %87 = arith.truncf %86 : vector<8x8xf32> to vector<8x8xbf16>
    %c16 = arith.constant 16 : index
    %c0_31 = arith.constant 0 : index
    %88 = vector.load %arg5[%c16, %c0_31] : memref<32x32xbf16, #tpu.memory_space<vmem>>, vector<8x32xbf16>
    %cst_32 = arith.constant dense<0.000000e+00> : vector<8x32xf32>
    %89 = tpu.matmul %87, %88, %cst_32 {dimension_numbers = #tpu.dot_dimension_numbers<[1], [0], [0], [1], [0, 0, 1, 1], [], []>} : vector<8x8xbf16>, vector<8x32xbf16>, vector<8x32xf32> -> vector<8x32xf32>
    %90 = arith.addf %70, %89 : vector<8x32xf32>
    %91 = vector.extract_strided_slice %29 {offsets = [0, 24], sizes = [8, 8], strides = [1, 1]} : vector<8x96xbf16> to vector<8x8xbf16>
    %92 = vector.extract_strided_slice %29 {offsets = [0, 56], sizes = [8, 8], strides = [1, 1]} : vector<8x96xbf16> to vector<8x8xbf16>
    %93 = vector.extract_strided_slice %29 {offsets = [0, 88], sizes = [8, 8], strides = [1, 1]} : vector<8x96xbf16> to vector<8x8xbf16>
    %cst_33 = arith.constant dense<0.000000e+00> : vector<8x8xf32>
    %94 = tpu.matmul %91, %92, %cst_33 {dimension_numbers = #tpu.dot_dimension_numbers<[1], [1], [0], [0], [0, 0, 1, 0], [], []>} : vector<8x8xbf16>, vector<8x8xbf16>, vector<8x8xf32> -> vector<8x8xf32>
    %cst_34 = arith.constant dense<0xFF800000> : vector<8xf32>
    %95 = vector.multi_reduction <maximumf>, %94, %cst_34 [1] : vector<8x8xf32> to vector<8xf32>
    %96 = vector.shape_cast %95 : vector<8xf32> to vector<8x1xf32>
    %97 = vector.broadcast %96 : vector<8x1xf32> to vector<8x8xf32>
    %98 = arith.subf %94, %97 : vector<8x8xf32>
    %99 = math.exp %98 : vector<8x8xf32>
    %cst_35 = arith.constant dense<0.000000e+00> : vector<8xf32>
    %100 = vector.multi_reduction <add>, %99, %cst_35 [1] : vector<8x8xf32> to vector<8xf32>
    %101 = vector.shape_cast %100 : vector<8xf32> to vector<8x1xf32>
    %102 = tpu.reciprocal %101 {approx = true} : vector<8x1xf32> -> vector<8x1xf32>
    %103 = arith.truncf %99 : vector<8x8xf32> to vector<8x8xbf16>
    %cst_36 = arith.constant dense<0.000000e+00> : vector<8x8xf32>
    %104 = tpu.matmul %103, %93, %cst_36 {dimension_numbers = #tpu.dot_dimension_numbers<[1], [0], [0], [1], [0, 0, 1, 1], [], []>} : vector<8x8xbf16>, vector<8x8xbf16>, vector<8x8xf32> -> vector<8x8xf32>
    %105 = vector.broadcast %102 : vector<8x1xf32> to vector<8x8xf32>
    %106 = arith.mulf %104, %105 : vector<8x8xf32>
    %107 = arith.truncf %106 : vector<8x8xf32> to vector<8x8xbf16>
    %c24 = arith.constant 24 : index
    %c0_37 = arith.constant 0 : index
    %108 = vector.load %arg5[%c24, %c0_37] : memref<32x32xbf16, #tpu.memory_space<vmem>>, vector<8x32xbf16>
    %cst_38 = arith.constant dense<0.000000e+00> : vector<8x32xf32>
    %109 = tpu.matmul %107, %108, %cst_38 {dimension_numbers = #tpu.dot_dimension_numbers<[1], [0], [0], [1], [0, 0, 1, 1], [], []>} : vector<8x8xbf16>, vector<8x32xbf16>, vector<8x32xf32> -> vector<8x32xf32>
    %110 = arith.addf %90, %109 : vector<8x32xf32>
    %111 = arith.addf %1, %110 : vector<8x32xf32>
    %c0_39 = arith.constant 0 : index
    %c0_40 = arith.constant 0 : index
    %112 = vector.load %arg6[%c0_39, %c0_40] : memref<1x32xf32, #tpu.memory_space<vmem>>, vector<1x32xf32>
    %113 = vector.broadcast %112 : vector<1x32xf32> to vector<8x32xf32>
    %114 = arith.addf %111, %113 : vector<8x32xf32>
    %c0_41 = arith.constant 0 : index
    %c0_42 = arith.constant 0 : index
    %115 = vector.load %arg7[%c0_41, %c0_42] : memref<1x32xf32, #tpu.memory_space<vmem>>, vector<1x32xf32>
    %c0_43 = arith.constant 0 : index
    %c0_44 = arith.constant 0 : index
    %116 = vector.load %arg8[%c0_43, %c0_44] : memref<1x32xf32, #tpu.memory_space<vmem>>, vector<1x32xf32>
    %cst_45 = arith.constant dense<0.000000e+00> : vector<8xf32>
    %117 = vector.multi_reduction <add>, %114, %cst_45 [1] : vector<8x32xf32> to vector<8xf32>
    %118 = vector.shape_cast %117 : vector<8xf32> to vector<8x1xf32>
    %cst_46 = arith.constant 3.200000e+01 : f32
    %119 = vector.broadcast %cst_46 : f32 to vector<8x1xf32>
    %120 = arith.divf %118, %119 : vector<8x1xf32>
    %121 = vector.broadcast %120 : vector<8x1xf32> to vector<8x32xf32>
    %122 = arith.subf %114, %121 : vector<8x32xf32>
    %123 = arith.mulf %122, %122 : vector<8x32xf32>
    %cst_47 = arith.constant dense<0.000000e+00> : vector<8xf32>
    %124 = vector.multi_reduction <add>, %123, %cst_47 [1] : vector<8x32xf32> to vector<8xf32>
    %125 = vector.shape_cast %124 : vector<8xf32> to vector<8x1xf32>
    %cst_48 = arith.constant 3.200000e+01 : f32
    %126 = vector.broadcast %cst_48 : f32 to vector<8x1xf32>
    %127 = arith.divf %125, %126 : vector<8x1xf32>
    %128 = vector.broadcast %120 : vector<8x1xf32> to vector<8x32xf32>
    %129 = arith.subf %114, %128 : vector<8x32xf32>
    %cst_49 = arith.constant 9.99999974E-6 : f32
    %130 = vector.broadcast %cst_49 : f32 to vector<8x1xf32>
    %131 = arith.addf %127, %130 : vector<8x1xf32>
    %132 = math.rsqrt %131 : vector<8x1xf32>
    %133 = vector.broadcast %132 : vector<8x1xf32> to vector<8x32xf32>
    %134 = arith.mulf %129, %133 : vector<8x32xf32>
    %135 = vector.broadcast %115 : vector<1x32xf32> to vector<8x32xf32>
    %136 = arith.mulf %134, %135 : vector<8x32xf32>
    %137 = vector.broadcast %116 : vector<1x32xf32> to vector<8x32xf32>
    %138 = arith.addf %136, %137 : vector<8x32xf32>
    %139 = arith.truncf %138 : vector<8x32xf32> to vector<8x32xbf16>
    %c0_50 = arith.constant 0 : index
    %c0_51 = arith.constant 0 : index
    %140 = vector.load %arg9[%c0_50, %c0_51] : memref<32x128xbf16, #tpu.memory_space<vmem>>, vector<32x128xbf16>
    %cst_52 = arith.constant dense<0.000000e+00> : vector<8x128xf32>
    %141 = tpu.matmul %139, %140, %cst_52 {dimension_numbers = #tpu.dot_dimension_numbers<[1], [0], [0], [1], [0, 0, 1, 1], [], []>} : vector<8x32xbf16>, vector<32x128xbf16>, vector<8x128xf32> -> vector<8x128xf32>
    %c0_53 = arith.constant 0 : index
    %c0_54 = arith.constant 0 : index
    %142 = vector.load %arg10[%c0_53, %c0_54] : memref<1x128xf32, #tpu.memory_space<vmem>>, vector<1x128xf32>
    %143 = vector.broadcast %142 : vector<1x128xf32> to vector<8x128xf32>
    %144 = arith.addf %141, %143 : vector<8x128xf32>
    %cst_55 = arith.constant 5.000000e-01 : f32
    %145 = vector.broadcast %cst_55 : f32 to vector<8x128xf32>
    %146 = arith.mulf %145, %144 : vector<8x128xf32>
    %cst_56 = arith.constant 0.707106769 : f32
    %147 = vector.broadcast %cst_56 : f32 to vector<8x128xf32>
    %148 = arith.mulf %144, %147 : vector<8x128xf32>
    %149 = math.erf %148 : vector<8x128xf32>
    %cst_57 = arith.constant 1.000000e+00 : f32
    %150 = vector.broadcast %cst_57 : f32 to vector<8x128xf32>
    %151 = arith.addf %150, %149 : vector<8x128xf32>
    %152 = arith.mulf %146, %151 : vector<8x128xf32>
    %153 = arith.truncf %152 : vector<8x128xf32> to vector<8x128xbf16>
    %c0_58 = arith.constant 0 : index
    %c0_59 = arith.constant 0 : index
    %154 = vector.load %arg11[%c0_58, %c0_59] : memref<128x32xbf16, #tpu.memory_space<vmem>>, vector<128x32xbf16>
    %cst_60 = arith.constant dense<0.000000e+00> : vector<8x32xf32>
    %155 = tpu.matmul %153, %154, %cst_60 {dimension_numbers = #tpu.dot_dimension_numbers<[1], [0], [0], [1], [0, 0, 1, 1], [], []>} : vector<8x128xbf16>, vector<128x32xbf16>, vector<8x32xf32> -> vector<8x32xf32>
    %c0_61 = arith.constant 0 : index
    %c0_62 = arith.constant 0 : index
    %156 = vector.load %arg12[%c0_61, %c0_62] : memref<1x32xf32, #tpu.memory_space<vmem>>, vector<1x32xf32>
    %157 = vector.broadcast %156 : vector<1x32xf32> to vector<8x32xf32>
    %158 = arith.addf %155, %157 : vector<8x32xf32>
    %159 = arith.addf %114, %158 : vector<8x32xf32>
    %c0_63 = arith.constant 0 : index
    %c0_64 = arith.constant 0 : index
    %c0_65 = arith.constant 0 : index
    %160 = vector.load %arg13[%c0_63, %c0_64, %c0_65] : memref<1x8x32xf32, #tpu.memory_space<vmem>>, vector<1x8x32xf32>
    %161 = vector.shape_cast %160 : vector<1x8x32xf32> to vector<8x32xf32>
    %162 = vector.shape_cast %159 : vector<8x32xf32> to vector<1x8x32xf32>
    tpu.vector_store %arg13[%c0_63, %c0_64, %c0_65], %162 {strides = array<i32>} : memref<1x8x32xf32, #tpu.memory_space<vmem>>, vector<1x8x32xf32>,
    return
  }
  func.func @transform_0(%arg0: i32) -> (i32, i32, i32) {
    %c0_i32 = arith.constant 0 : i32
    %c0_i32_0 = arith.constant 0 : i32
    %c0_i32_1 = arith.constant 0 : i32
    return %arg0, %c0_i32, %c0_i32_0 : i32, i32, i32
  }
  func.func @transform_1(%arg0: i32) -> (i32, i32) {
    %c0_i32 = arith.constant 0 : i32
    %c0_i32_0 = arith.constant 0 : i32
    %c0_i32_1 = arith.constant 0 : i32
    return %c0_i32, %c0_i32_0 : i32, i32
  }
  func.func @transform_2(%arg0: i32) -> (i32, i32) {
    %c0_i32 = arith.constant 0 : i32
    %c0_i32_0 = arith.constant 0 : i32
    %c0_i32_1 = arith.constant 0 : i32
    return %c0_i32, %c0_i32_0 : i32, i32
  }
  func.func @transform_3(%arg0: i32) -> (i32, i32) {
    %c0_i32 = arith.constant 0 : i32
    %c0_i32_0 = arith.constant 0 : i32
    %c0_i32_1 = arith.constant 0 : i32
    return %c0_i32, %c0_i32_0 : i32, i32
  }
  func.func @transform_4(%arg0: i32) -> (i32, i32) {
    %c0_i32 = arith.constant 0 : i32
    %c0_i32_0 = arith.constant 0 : i32
    %c0_i32_1 = arith.constant 0 : i32
    return %c0_i32, %c0_i32_0 : i32, i32
  }
  func.func @transform_5(%arg0: i32) -> (i32, i32) {
    %c0_i32 = arith.constant 0 : i32
    %c0_i32_0 = arith.constant 0 : i32
    %c0_i32_1 = arith.constant 0 : i32
    return %c0_i32, %c0_i32_0 : i32, i32
  }
  func.func @transform_6(%arg0: i32) -> (i32, i32) {
    %c0_i32 = arith.constant 0 : i32
    %c0_i32_0 = arith.constant 0 : i32
    %c0_i32_1 = arith.constant 0 : i32
    return %c0_i32, %c0_i32_0 : i32, i32
  }
  func.func @transform_7(%arg0: i32) -> (i32, i32) {
    %c0_i32 = arith.constant 0 : i32
    %c0_i32_0 = arith.constant 0 : i32
    %c0_i32_1 = arith.constant 0 : i32
    return %c0_i32, %c0_i32_0 : i32, i32
  }
  func.func @transform_8(%arg0: i32) -> (i32, i32) {
    %c0_i32 = arith.constant 0 : i32
    %c0_i32_0 = arith.constant 0 : i32
    %c0_i32_1 = arith.constant 0 : i32
    return %c0_i32, %c0_i32_0 : i32, i32
  }
  func.func @transform_9(%arg0: i32) -> (i32, i32) {
    %c0_i32 = arith.constant 0 : i32
    %c0_i32_0 = arith.constant 0 : i32
    %c0_i32_1 = arith.constant 0 : i32
    return %c0_i32, %c0_i32_0 : i32, i32
  }
  func.func @transform_10(%arg0: i32) -> (i32, i32) {
    %c0_i32 = arith.constant 0 : i32
    %c0_i32_0 = arith.constant 0 : i32
    %c0_i32_1 = arith.constant 0 : i32
    return %c0_i32, %c0_i32_0 : i32, i32
  }
  func.func @transform_11(%arg0: i32) -> (i32, i32) {
    %c0_i32 = arith.constant 0 : i32
    %c0_i32_0 = arith.constant 0 : i32
    %c0_i32_1 = arith.constant 0 : i32
    return %c0_i32, %c0_i32_0 : i32, i32
  }
  func.func @transform_12(%arg0: i32) -> (i32, i32, i32) {
    %c0_i32 = arith.constant 0 : i32
    %c0_i32_0 = arith.constant 0 : i32
    %c0_i32_1 = arith.constant 0 : i32
    return %arg0, %c0_i32, %c0_i32_0 : i32, i32, i32
  }
}

module attributes {stable_mosaic.version = 11 : i64} {
  func.func @block_kernel(%arg0: i32, %arg1: memref<1x8x32xf32, #tpu.memory_space<vmem>>, %arg2: memref<1x32xf32, #tpu.memory_space<vmem>>, %arg3: memref<1x32xf32, #tpu.memory_space<vmem>>, %arg4: memref<32x96xbf16, #tpu.memory_space<vmem>>, %arg5: memref<32x32xbf16, #tpu.memory_space<vmem>>, %arg6: memref<1x32xf32, #tpu.memory_space<vmem>>, %arg7: memref<1x32xf32, #tpu.memory_space<vmem>>, %arg8: memref<1x32xf32, #tpu.memory_space<vmem>>, %arg9: memref<32x128xbf16, #tpu.memory_space<vmem>>, %arg10: memref<1x128xf32, #tpu.memory_space<vmem>>, %arg11: memref<128x32xbf16, #tpu.memory_space<vmem>>, %arg12: memref<1x32xf32, #tpu.memory_space<vmem>>, %arg13: memref<1x8x32xf32, #tpu.memory_space<vmem>>) attributes {dimension_semantics = [#tpu.dimension_semantics<parallel>], iteration_bounds = array<i64: 2>, scalar_prefetch = 0 : i64, scratch_operands = 0 : i64, tpu.core_type = #tpu.core_type<tc>, window_params = [{transform_indices = @transform_0, window_bounds = array<i64: 1, 8, 32>}, {pipeline_mode = #tpu.pipeline_mode<synchronous>, transform_indices = @transform_1, window_bounds = array<i64: 1, 32>}, {pipeline_mode = #tpu.pipeline_mode<synchronous>, transform_indices = @transform_2, window_bounds = array<i64: 1, 32>}, {pipeline_mode = #tpu.pipeline_mode<synchronous>, transform_indices = @transform_3, window_bounds = array<i64: 32, 96>}, {pipeline_mode = #tpu.pipeline_mode<synchronous>, transform_indices = @transform_4, window_bounds = array<i64: 32, 32>}, {pipeline_mode = #tpu.pipeline_mode<synchronous>, transform_indices = @transform_5, window_bounds = array<i64: 1, 32>}, {pipeline_mode = #tpu.pipeline_mode<synchronous>, transform_indices = @transform_6, window_bounds = array<i64: 1, 32>}, {pipeline_mode = #tpu.pipeline_mode<synchronous>, transform_indices = @transform_7, window_bounds = array<i64: 1, 32>}, {pipeline_mode = #tpu.pipeline_mode<synchronous>, transform_indices = @transform_8, window_bounds = array<i64: 32, 128>}, {pipeline_mode = #tpu.pipeline_mode<synchronous>, transform_indices = @transform_9, window_bounds = array<i64: 1, 128>}, {pipeline_mode = #tpu.pipeline_mode<synchronous>, transform_indices = @transform_10, window_bounds = array<i64: 128, 32>}, {pipeline_mode = #tpu.pipeline_mode<synchronous>, transform_indices = @transform_11, window_bounds = array<i64: 1, 32>}, {transform_indices = @transform_12, window_bounds = array<i64: 1, 8, 32>}]} {
    %c0 = arith.constant 0 : index
    %c0_0 = arith.constant 0 : index
    %c0_1 = arith.constant 0 : index
    %0 = vector.load %arg1[%c0, %c0_0, %c0_1] : memref<1x8x32xf32, #tpu.memory_space<vmem>>, vector<1x8x32xf32>
    %1 = vector.shape_cast %0 : vector<1x8x32xf32> to vector<8x32xf32>
    %c0_2 = arith.constant 0 : index
    %c0_3 = arith.constant 0 : index
    %2 = vector.load %arg2[%c0_2, %c0_3] : memref<1x32xf32, #tpu.memory_space<vmem>>, vector<1x32xf32>
    %c0_4 = arith.constant 0 : index
    %c0_5 = arith.constant 0 : index
    %3 = vector.load %arg3[%c0_4, %c0_5] : memref<1x32xf32, #tpu.memory_space<vmem>>, vector<1x32xf32>
    %cst = arith.constant dense<0.000000e+00> : vector<8xf32>
    %4 = vector.multi_reduction <add>, %1, %cst [1] : vector<8x32xf32> to vector<8xf32>
    %5 = vector.shape_cast %4 : vector<8xf32> to vector<8x1xf32>
    %cst_6 = arith.constant 3.200000e+01 : f32
    %6 = vector.broadcast %cst_6 : f32 to vector<8x1xf32>
    %7 = arith.divf %5, %6 : vector<8x1xf32>
    %8 = vector.broadcast %7 : vector<8x1xf32> to vector<8x32xf32>
    %9 = arith.subf %1, %8 : vector<8x32xf32>
    %10 = arith.mulf %9, %9 : vector<8x32xf32>
    %cst_7 = arith.constant dense<0.000000e+00> : vector<8xf32>
    %11 = vector.multi_reduction <add>, %10, %cst_7 [1] : vector<8x32xf32> to vector<8xf32>
    %12 = vector.shape_cast %11 : vector<8xf32> to vector<8x1xf32>
    %cst_8 = arith.constant 3.200000e+01 : f32
    %13 = vector.broadcast %cst_8 : f32 to vector<8x1xf32>
    %14 = arith.divf %12, %13 : vector<8x1xf32>
    %15 = vector.broadcast %7 : vector<8x1xf32> to vector<8x32xf32>
    %16 = arith.subf %1, %15 : vector<8x32xf32>
    %cst_9 = arith.constant 9.99999974E-6 : f32
    %17 = vector.broadcast %cst_9 : f32 to vector<8x1xf32>
    %18 = arith.addf %14, %17 : vector<8x1xf32>
    %19 = math.rsqrt %18 : vector<8x1xf32>
    %20 = vector.broadcast %19 : vector<8x1xf32> to vector<8x32xf32>
    %21 = arith.mulf %16, %20 : vector<8x32xf32>
    %22 = vector.broadcast %2 : vector<1x32xf32> to vector<8x32xf32>
    %23 = arith.mulf %21, %22 : vector<8x32xf32>
    %24 = vector.broadcast %3 : vector<1x32xf32> to vector<8x32xf32>
    %25 = arith.addf %23, %24 : vector<8x32xf32>
    %26 = arith.truncf %25 : vector<8x32xf32> to vector<8x32xbf16>
    %c0_10 = arith.constant 0 : index
    %c0_11 = arith.constant 0 : index
    %27 = vector.load %arg4[%c0_10, %c0_11] : memref<32x96xbf16, #tpu.memory_space<vmem>>, vector<32x96xbf16>
    %cst_12 = arith.constant dense<0.000000e+00> : vector<8x96xf32>
    %28 = tpu.matmul %26, %27, %cst_12 {dimension_numbers = #tpu.dot_dimension_numbers<[1], [0], [0], [1], [0, 0, 1, 1], [], []>} : vector<8x32xbf16>, vector<32x96xbf16>, vector<8x96xf32> -> vector<8x96xf32>
    %29 = arith.truncf %28 : vector<8x96xf32> to vector<8x96xbf16>
    %cst_13 = arith.constant 0.000000e+00 : f32
    %30 = vector.broadcast %cst_13 : f32 to vector<8x32xf32>
    %31 = vector.extract_strided_slice %29 {offsets = [0, 0], sizes = [8, 8], strides = [1, 1]} : vector<8x96xbf16> to vector<8x8xbf16>
    %32 = vector.extract_strided_slice %29 {offsets = [0, 32], sizes = [8, 8], strides = [1, 1]} : vector<8x96xbf16> to vector<8x8xbf16>
    %33 = vector.extract_strided_slice %29 {offsets = [0, 64], sizes = [8, 8], strides = [1, 1]} : vector<8x96xbf16> to vector<8x8xbf16>
    %cst_14 = arith.constant dense<0.000000e+00> : vector<8x8xf32>
    %34 = tpu.matmul %31, %32, %cst_14 {dimension_numbers = #tpu.dot_dimension_numbers<[1], [1], [0], [0], [0, 0, 1, 0], [], []>} : vector<8x8xbf16>, vector<8x8xbf16>, vector<8x8xf32> -> vector<8x8xf32>
    %cst_15 = arith.constant dense<0xFF800000> : vector<8xf32>
    %35 = vector.multi_reduction <maximumf>, %34, %cst_15 [1] : vector<8x8xf32> to vector<8xf32>
    %36 = vector.shape_cast %35 : vector<8xf32> to vector<8x1xf32>
    %37 = vector.broadcast %36 : vector<8x1xf32> to vector<8x8xf32>
    %38 = arith.subf %34, %37 : vector<8x8xf32>
    %39 = math.exp %38 : vector<8x8xf32>
    %cst_16 = arith.constant dense<0.000000e+00> : vector<8xf32>
    %40 = vector.multi_reduction <add>, %39, %cst_16 [1] : vector<8x8xf32> to vector<8xf32>
    %41 = vector.shape_cast %40 : vector<8xf32> to vector<8x1xf32>
    %42 = tpu.reciprocal %41 {approx = true} : vector<8x1xf32> -> vector<8x1xf32>
    %43 = arith.truncf %39 : vector<8x8xf32> to vector<8x8xbf16>
    %cst_17 = arith.constant dense<0.000000e+00> : vector<8x8xf32>
    %44 = tpu.matmul %43, %33, %cst_17 {dimension_numbers = #tpu.dot_dimension_numbers<[1], [0], [0], [1], [0, 0, 1, 1], [], []>} : vector<8x8xbf16>, vector<8x8xbf16>, vector<8x8xf32> -> vector<8x8xf32>
    %45 = vector.broadcast %42 : vector<8x1xf32> to vector<8x8xf32>
    %46 = arith.mulf %44, %45 : vector<8x8xf32>
    %47 = arith.truncf %46 : vector<8x8xf32> to vector<8x8xbf16>
    %c0_18 = arith.constant 0 : index
    %c0_19 = arith.constant 0 : index
    %48 = vector.load %arg5[%c0_18, %c0_19] : memref<32x32xbf16, #tpu.memory_space<vmem>>, vector<8x32xbf16>
    %cst_20 = arith.constant dense<0.000000e+00> : vector<8x32xf32>
    %49 = tpu.matmul %47, %48, %cst_20 {dimension_numbers = #tpu.dot_dimension_numbers<[1], [0], [0], [1], [0, 0, 1, 1], [], []>} : vector<8x8xbf16>, vector<8x32xbf16>, vector<8x32xf32> -> vector<8x32xf32>
    %50 = arith.addf %30, %49 : vector<8x32xf32>
    %51 = vector.extract_strided_slice %29 {offsets = [0, 8], sizes = [8, 8], strides = [1, 1]} : vector<8x96xbf16> to vector<8x8xbf16>
    %52 = vector.extract_strided_slice %29 {offsets = [0, 40], sizes = [8, 8], strides = [1, 1]} : vector<8x96xbf16> to vector<8x8xbf16>
    %53 = vector.extract_strided_slice %29 {offsets = [0, 72], sizes = [8, 8], strides = [1, 1]} : vector<8x96xbf16> to vector<8x8xbf16>
    %cst_21 = arith.constant dense<0.000000e+00> : vector<8x8xf32>
    %54 = tpu.matmul %51, %52, %cst_21 {dimension_numbers = #tpu.dot_dimension_numbers<[1], [1], [0], [0], [0, 0, 1, 0], [], []>} : vector<8x8xbf16>, vector<8x8xbf16>, vector<8x8xf32> -> vector<8x8xf32>
    %cst_22 = arith.constant dense<0xFF800000> : vector<8xf32>
    %55 = vector.multi_reduction <maximumf>, %54, %cst_22 [1] : vector<8x8xf32> to vector<8xf32>
    %56 = vector.shape_cast %55 : vector<8xf32> to vector<8x1xf32>
    %57 = vector.broadcast %56 : vector<8x1xf32> to vector<8x8xf32>
    %58 = arith.subf %54, %57 : vector<8x8xf32>
    %59 = math.exp %58 : vector<8x8xf32>
    %cst_23 = arith.constant dense<0.000000e+00> : vector<8xf32>
    %60 = vector.multi_reduction <add>, %59, %cst_23 [1] : vector<8x8xf32> to vector<8xf32>
    %61 = vector.shape_cast %60 : vector<8xf32> to vector<8x1xf32>
    %62 = tpu.reciprocal %61 {approx = true} : vector<8x1xf32> -> vector<8x1xf32>
    %63 = arith.truncf %59 : vector<8x8xf32> to vector<8x8xbf16>
    %cst_24 = arith.constant dense<0.000000e+00> : vector<8x8xf32>
    %64 = tpu.matmul %63, %53, %cst_24 {dimension_numbers = #tpu.dot_dimension_numbers<[1], [0], [0], [1], [0, 0, 1, 1], [], []>} : vector<8x8xbf16>, vector<8x8xbf16>, vector<8x8xf32> -> vector<8x8xf32>
    %65 = vector.broadcast %62 : vector<8x1xf32> to vector<8x8xf32>
    %66 = arith.mulf %64, %65 : vector<8x8xf32>
    %67 = arith.truncf %66 : vector<8x8xf32> to vector<8x8xbf16>
    %c8 = arith.constant 8 : index
    %c0_25 = arith.constant 0 : index
    %68 = vector.load %arg5[%c8, %c0_25] : memref<32x32xbf16, #tpu.memory_space<vmem>>, vector<8x32xbf16>
    %cst_26 = arith.constant dense<0.000000e+00> : vector<8x32xf32>
    %69 = tpu.matmul %67, %68, %cst_26 {dimension_numbers = #tpu.dot_dimension_numbers<[1], [0], [0], [1], [0, 0, 1, 1], [], []>} : vector<8x8xbf16>, vector<8x32xbf16>, vector<8x32xf32> -> vector<8x32xf32>
    %70 = arith.addf %50, %69 : vector<8x32xf32>
    %71 = vector.extract_strided_slice %29 {offsets = [0, 16], sizes = [8, 8], strides = [1, 1]} : vector<8x96xbf16> to vector<8x8xbf16>
    %72 = vector.extract_strided_slice %29 {offsets = [0, 48], sizes = [8, 8], strides = [1, 1]} : vector<8x96xbf16> to vector<8x8xbf16>
    %73 = vector.extract_strided_slice %29 {offsets = [0, 80], sizes = [8, 8], strides = [1, 1]} : vector<8x96xbf16> to vector<8x8xbf16>
    %cst_27 = arith.constant dense<0.000000e+00> : vector<8x8xf32>
    %74 = tpu.matmul %71, %72, %cst_27 {dimension_numbers = #tpu.dot_dimension_numbers<[1], [1], [0], [0], [0, 0, 1, 0], [], []>} : vector<8x8xbf16>, vector<8x8xbf16>, vector<8x8xf32> -> vector<8x8xf32>
    %cst_28 = arith.constant dense<0xFF800000> : vector<8xf32>
    %75 = vector.multi_reduction <maximumf>, %74, %cst_28 [1] : vector<8x8xf32> to vector<8xf32>
    %76 = vector.shape_cast %75 : vector<8xf32> to vector<8x1xf32>
    %77 = vector.broadcast %76 : vector<8x1xf32> to vector<8x8xf32>
    %78 = arith.subf %74, %77 : vector<8x8xf32>
    %79 = math.exp %78 : vector<8x8xf32>
    %cst_29 = arith.constant dense<0.000000e+00> : vector<8xf32>
    %80 = vector.multi_reduction <add>, %79, %cst_29 [1] : vector<8x8xf32> to vector<8xf32>
    %81 = vector.shape_cast %80 : vector<8xf32> to vector<8x1xf32>
    %82 = tpu.reciprocal %81 {approx = true} : vector<8x1xf32> -> vector<8x1xf32>
    %83 = arith.truncf %79 : vector<8x8xf32> to vector<8x8xbf16>
    %cst_30 = arith.constant dense<0.000000e+00> : vector<8x8xf32>
    %84 = tpu.matmul %83, %73, %cst_30 {dimension_numbers = #tpu.dot_dimension_numbers<[1], [0], [0], [1], [0, 0, 1, 1], [], []>} : vector<8x8xbf16>, vector<8x8xbf16>, vector<8x8xf32> -> vector<8x8xf32>
    %85 = vector.broadcast %82 : vector<8x1xf32> to vector<8x8xf32>
    %86 = arith.mulf %84, %85 : vector<8x8xf32>
    %87 = arith.truncf %86 : vector<8x8xf32> to vector<8x8xbf16>
    %c16 = arith.constant 16 : index
    %c0_31 = arith.constant 0 : index
    %88 = vector.load %arg5[%c16, %c0_31] : memref<32x32xbf16, #tpu.memory_space<vmem>>, vector<8x32xbf16>
    %cst_32 = arith.constant dense<0.000000e+00> : vector<8x32xf32>
    %89 = tpu.matmul %87, %88, %cst_32 {dimension_numbers = #tpu.dot_dimension_numbers<[1], [0], [0], [1], [0, 0, 1, 1], [], []>} : vector<8x8xbf16>, vector<8x32xbf16>, vector<8x32xf32> -> vector<8x32xf32>
    %90 = arith.addf %70, %89 : vector<8x32xf32>
    %91 = vector.extract_strided_slice %29 {offsets = [0, 24], sizes = [8, 8], strides = [1, 1]} : vector<8x96xbf16> to vector<8x8xbf16>
    %92 = vector.extract_strided_slice %29 {offsets = [0, 56], sizes = [8, 8], strides = [1, 1]} : vector<8x96xbf16> to vector<8x8xbf16>
    %93 = vector.extract_strided_slice %29 {offsets = [0, 88], sizes = [8, 8], strides = [1, 1]} : vector<8x96xbf16> to vector<8x8xbf16>
    %cst_33 = arith.constant dense<0.000000e+00> : vector<8x8xf32>
    %94 = tpu.matmul %91, %92, %cst_33 {dimension_numbers = #tpu.dot_dimension_numbers<[1], [1], [0], [0], [0, 0, 1, 0], [], []>} : vector<8x8xbf16>, vector<8x8xbf16>, vector<8x8xf32> -> vector<8x8xf32>
    %cst_34 = arith.constant dense<0xFF800000> : vector<8xf32>
    %95 = vector.multi_reduction <maximumf>, %94, %cst_34 [1] : vector<8x8xf32> to vector<8xf32>
    %96 = vector.shape_cast %95 : vector<8xf32> to vector<8x1xf32>
    %97 = vector.broadcast %96 : vector<8x1xf32> to vector<8x8xf32>
    %98 = arith.subf %94, %97 : vector<8x8xf32>
    %99 = math.exp %98 : vector<8x8xf32>
    %cst_35 = arith.constant dense<0.000000e+00> : vector<8xf32>
    %100 = vector.multi_reduction <add>, %99, %cst_35 [1] : vector<8x8xf32> to vector<8xf32>
    %101 = vector.shape_cast %100 : vector<8xf32> to vector<8x1xf32>
    %102 = tpu.reciprocal %101 {approx = true} : vector<8x1xf32> -> vector<8x1xf32>
    %103 = arith.truncf %99 : vector<8x8xf32> to vector<8x8xbf16>
    %cst_36 = arith.constant dense<0.000000e+00> : vector<8x8xf32>
    %104 = tpu.matmul %103, %93, %cst_36 {dimension_numbers = #tpu.dot_dimension_numbers<[1], [0], [0], [1], [0, 0, 1, 1], [], []>} : vector<8x8xbf16>, vector<8x8xbf16>, vector<8x8xf32> -> vector<8x8xf32>
    %105 = vector.broadcast %102 : vector<8x1xf32> to vector<8x8xf32>
    %106 = arith.mulf %104, %105 : vector<8x8xf32>
    %107 = arith.truncf %106 : vector<8x8xf32> to vector<8x8xbf16>
    %c24 = arith.constant 24 : index
    %c0_37 = arith.constant 0 : index
    %108 = vector.load %arg5[%c24, %c0_37] : memref<32x32xbf16, #tpu.memory_space<vmem>>, vector<8x32xbf16>
    %cst_38 = arith.constant dense<0.000000e+00> : vector<8x32xf32>
    %109 = tpu.matmul %107, %108, %cst_38 {dimension_numbers = #tpu.dot_dimension_numbers<[1], [0], [0], [1], [0, 0, 1, 1], [], []>} : vector<8x8xbf16>, vector<8x32xbf16>, vector<8x32xf32> -> vector<8x32xf32>
    %110 = arith.addf %90, %109 : vector<8x32xf32>
    %111 = arith.addf %1, %110 : vector<8x32xf32>
    %c0_39 = arith.constant 0 : index
    %c0_40 = arith.constant 0 : index
    %112 = vector.load %arg6[%c0_39, %c0_40] : memref<1x32xf32, #tpu.memory_space<vmem>>, vector<1x32xf32>
    %113 = vector.broadcast %112 : vector<1x32xf32> to vector<8x32xf32>
    %114 = arith.addf %111, %113 : vector<8x32xf32>
    %c0_41 = arith.constant 0 : index
    %c0_42 = arith.constant 0 : index
    %115 = vector.load %arg7[%c0_41, %c0_42] : memref<1x32xf32, #tpu.memory_space<vmem>>, vector<1x32xf32>
    %c0_43 = arith.constant 0 : index
    %c0_44 = arith.constant 0 : index
    %116 = vector.load %arg8[%c0_43, %c0_44] : memref<1x32xf32, #tpu.memory_space<vmem>>, vector<1x32xf32>
    %cst_45 = arith.constant dense<0.000000e+00> : vector<8xf32>
    %117 = vector.multi_reduction <add>, %114, %cst_45 [1] : vector<8x32xf32> to vector<8xf32>
    %118 = vector.shape_cast %117 : vector<8xf32> to vector<8x1xf32>
    %cst_46 = arith.constant 3.200000e+01 : f32
    %119 = vector.broadcast %cst_46 : f32 to vector<8x1xf32>
    %120 = arith.divf %118, %119 : vector<8x1xf32>
    %121 = vector.broadcast %120 : vector<8x1xf32> to vector<8x32xf32>
    %122 = arith.subf %114, %121 : vector<8x32xf32>
    %123 = arith.mulf %122, %122 : vector<8x32xf32>
    %cst_47 = arith.constant dense<0.000000e+00> : vector<8xf32>
    %124 = vector.multi_reduction <add>, %123, %cst_47 [1] : vector<8x32xf32> to vector<8xf32>
    %125 = vector.shape_cast %124 : vector<8xf32> to vector<8x1xf32>
    %cst_48 = arith.constant 3.200000e+01 : f32
    %126 = vector.broadcast %cst_48 : f32 to vector<8x1xf32>
    %127 = arith.divf %125, %126 : vector<8x1xf32>
    %128 = vector.broadcast %120 : vector<8x1xf32> to vector<8x32xf32>
    %129 = arith.subf %114, %128 : vector<8x32xf32>
    %cst_49 = arith.constant 9.99999974E-6 : f32
    %130 = vector.broadcast %cst_49 : f32 to vector<8x1xf32>
    %131 = arith.addf %127, %130 : vector<8x1xf32>
    %132 = math.rsqrt %131 : vector<8x1xf32>
    %133 = vector.broadcast %132 : vector<8x1xf32> to vector<8x32xf32>
    %134 = arith.mulf %129, %133 : vector<8x32xf32>
    %135 = vector.broadcast %115 : vector<1x32xf32> to vector<8x32xf32>
    %136 = arith.mulf %134, %135 : vector<8x32xf32>
    %137 = vector.broadcast %116 : vector<1x32xf32> to vector<8x32xf32>
    %138 = arith.addf %136, %137 : vector<8x32xf32>
    %139 = arith.truncf %138 : vector<8x32xf32> to vector<8x32xbf16>
    %c0_50 = arith.constant 0 : index
    %c0_51 = arith.constant 0 : index
    %140 = vector.load %arg9[%c0_50, %c0_51] : memref<32x128xbf16, #tpu.memory_space<vmem>>, vector<32x128xbf16>
    %cst_52 = arith.constant dense<0.000000e+00> : vector<8x128xf32>
    %141 = tpu.matmul %139, %140, %cst_52 {dimension_numbers = #tpu.dot_dimension_numbers<[1], [0], [0], [1], [0, 0, 1, 1], [], []>} : vector<8x32xbf16>, vector<32x128xbf16>, vector<8x128xf32> -> vector<8x128xf32>
    %c0_53 = arith.constant 0 : index
    %c0_54 = arith.constant 0 : index
    %142 = vector.load %arg10[%c0_53, %c0_54] : memref<1x128xf32, #tpu.memory_space<vmem>>, vector<1x128xf32>
    %143 = vector.broadcast %142 : vector<1x128xf32> to vector<8x128xf32>
    %144 = arith.addf %141, %143 : vector<8x128xf32>
    %cst_55 = arith.constant 5.000000e-01 : f32
    %145 = vector.broadcast %cst_55 : f32 to vector<8x128xf32>
    %146 = arith.mulf %145, %144 : vector<8x128xf32>
    %cst_56 = arith.constant 0.707106769 : f32
    %147 = vector.broadcast %cst_56 : f32 to vector<8x128xf32>
    %148 = arith.mulf %144, %147 : vector<8x128xf32>
    %149 = math.erf %148 : vector<8x128xf32>
    %cst_57 = arith.constant 1.000000e+00 : f32
    %150 = vector.broadcast %cst_57 : f32 to vector<8x128xf32>
    %151 = arith.addf %150, %149 : vector<8x128xf32>
    %152 = arith.mulf %146, %151 : vector<8x128xf32>
    %153 = arith.truncf %152 : vector<8x128xf32> to vector<8x128xbf16>
    %c0_58 = arith.constant 0 : index
    %c0_59 = arith.constant 0 : index
    %154 = vector.load %arg11[%c0_58, %c0_59] : memref<128x32xbf16, #tpu.memory_space<vmem>>, vector<128x32xbf16>
    %cst_60 = arith.constant dense<0.000000e+00> : vector<8x32xf32>
    %155 = tpu.matmul %153, %154, %cst_60 {dimension_numbers = #tpu.dot_dimension_numbers<[1], [0], [0], [1], [0, 0, 1, 1], [], []>} : vector<8x128xbf16>, vector<128x32xbf16>, vector<8x32xf32> -> vector<8x32xf32>
    %c0_61 = arith.constant 0 : index
    %c0_62 = arith.constant 0 : index
    %156 = vector.load %arg12[%c0_61, %c0_62] : memref<1x32xf32, #tpu.memory_space<vmem>>, vector<1x32xf32>
    %157 = vector.broadcast %156 : vector<1x32xf32> to vector<8x32xf32>
    %158 = arith.addf %155, %157 : vector<8x32xf32>
    %159 = arith.addf %114, %158 : vector<8x32xf32>
    %c0_63 = arith.constant 0 : index
    %c0_64 = arith.constant 0 : index
    %c0_65 = arith.constant 0 : index
    %160 = vector.load %arg13[%c0_63, %c0_64, %c0_65] : memref<1x8x32xf32, #tpu.memory_space<vmem>>, vector<1x8x32xf32>
    %161 = vector.shape_cast %160 : vector<1x8x32xf32> to vector<8x32xf32>
    %162 = vector.shape_cast %159 : vector<8x32xf32> to vector<1x8x32xf32>
    tpu.vector_store %arg13[%c0_63, %c0_64, %c0_65], %162 {strides = array<i32>} : memref<1x8x32xf32, #tpu.memory_space<vmem>>, vector<1x8x32xf32>,
    return
  }
  func.func @transform_0(%arg0: i32) -> (i32, i32, i32) {
    %c0_i32 = arith.constant 0 : i32
    %c0_i32_0 = arith.constant 0 : i32
    %c0_i32_1 = arith.constant 0 : i32
    return %arg0, %c0_i32, %c0_i32_0 : i32, i32, i32
  }
  func.func @transform_1(%arg0: i32) -> (i32, i32) {
    %c0_i32 = arith.constant 0 : i32
    %c0_i32_0 = arith.constant 0 : i32
    %c0_i32_1 = arith.constant 0 : i32
    return %c0_i32, %c0_i32_0 : i32, i32
  }
  func.func @transform_2(%arg0: i32) -> (i32, i32) {
    %c0_i32 = arith.constant 0 : i32
    %c0_i32_0 = arith.constant 0 : i32
    %c0_i32_1 = arith.constant 0 : i32
    return %c0_i32, %c0_i32_0 : i32, i32
  }
  func.func @transform_3(%arg0: i32) -> (i32, i32) {
    %c0_i32 = arith.constant 0 : i32
    %c0_i32_0 = arith.constant 0 : i32
    %c0_i32_1 = arith.constant 0 : i32
    return %c0_i32, %c0_i32_0 : i32, i32
  }
  func.func @transform_4(%arg0: i32) -> (i32, i32) {
    %c0_i32 = arith.constant 0 : i32
    %c0_i32_0 = arith.constant 0 : i32
    %c0_i32_1 = arith.constant 0 : i32
    return %c0_i32, %c0_i32_0 : i32, i32
  }
  func.func @transform_5(%arg0: i32) -> (i32, i32) {
    %c0_i32 = arith.constant 0 : i32
    %c0_i32_0 = arith.constant 0 : i32
    %c0_i32_1 = arith.constant 0 : i32
    return %c0_i32, %c0_i32_0 : i32, i32
  }
  func.func @transform_6(%arg0: i32) -> (i32, i32) {
    %c0_i32 = arith.constant 0 : i32
    %c0_i32_0 = arith.constant 0 : i32
    %c0_i32_1 = arith.constant 0 : i32
    return %c0_i32, %c0_i32_0 : i32, i32
  }
  func.func @transform_7(%arg0: i32) -> (i32, i32) {
    %c0_i32 = arith.constant 0 : i32
    %c0_i32_0 = arith.constant 0 : i32
    %c0_i32_1 = arith.constant 0 : i32
    return %c0_i32, %c0_i32_0 : i32, i32
  }
  func.func @transform_8(%arg0: i32) -> (i32, i32) {
    %c0_i32 = arith.constant 0 : i32
    %c0_i32_0 = arith.constant 0 : i32
    %c0_i32_1 = arith.constant 0 : i32
    return %c0_i32, %c0_i32_0 : i32, i32
  }
  func.func @transform_9(%arg0: i32) -> (i32, i32) {
    %c0_i32 = arith.constant 0 : i32
    %c0_i32_0 = arith.constant 0 : i32
    %c0_i32_1 = arith.constant 0 : i32
    return %c0_i32, %c0_i32_0 : i32, i32
  }
  func.func @transform_10(%arg0: i32) -> (i32, i32) {
    %c0_i32 = arith.constant 0 : i32
    %c0_i32_0 = arith.constant 0 : i32
    %c0_i32_1 = arith.constant 0 : i32
    return %c0_i32, %c0_i32_0 : i32, i32
  }
  func.func @transform_11(%arg0: i32) -> (i32, i32) {
    %c0_i32 = arith.constant 0 : i32
    %c0_i32_0 = arith.constant 0 : i32
    %c0_i32_1 = arith.constant 0 : i32
    return %c0_i32, %c0_i32_0 : i32, i32
  }
  func.func @transform_12(%arg0: i32) -> (i32, i32, i32) {
    %c0_i32 = arith.constant 0 : i32
    %c0_i32_0 = arith.constant 0 : i32
    %c0_i32_1 = arith.constant 0 : i32
    return %arg0, %c0_i32, %c0_i32_0 : i32, i32, i32
  }
}

</mosaic_0001>

<llo_original>
// kernel: tpu_custom_call.1
$region0: #{tpu_custom_call.1}
  #allocation0 [shape = 'u32[]', space=smem, size = 0x4, offset = 0x4, fixed_abs, tag = 'smem constant byte address 0x4 - core index']
  #allocation1 [shape = 'u32[144,128]{1,0:T(1,128)}', space=vmem, size = 0x12000, scoped, tag = 'internal scratch']
  %s0 = inlined_call_operand.vmem [shape: f32[2,8,32], index: 0, kind: input, shape index: {}]
  %s1 = inlined_call_operand.vmem [shape: f32[1,32], index: 1, kind: input, shape index: {}]
  %s2 = inlined_call_operand.vmem [shape: f32[1,32], index: 2, kind: input, shape index: {}]
  %s3 = inlined_call_operand.vmem [shape: bf16[32,96], index: 3, kind: input, shape index: {}]
  %s4 = inlined_call_operand.vmem [shape: bf16[32,32], index: 4, kind: input, shape index: {}]
  %s5 = inlined_call_operand.vmem [shape: f32[1,32], index: 5, kind: input, shape index: {}]
  %s6 = inlined_call_operand.vmem [shape: f32[1,32], index: 6, kind: input, shape index: {}]
  %s7 = inlined_call_operand.vmem [shape: f32[1,32], index: 7, kind: input, shape index: {}]
  %s8 = inlined_call_operand.vmem [shape: bf16[32,128], index: 8, kind: input, shape index: {}]
  %s9 = inlined_call_operand.vmem [shape: f32[1,128], index: 9, kind: input, shape index: {}]
  %s10 = inlined_call_operand.vmem [shape: bf16[128,32], index: 10, kind: input, shape index: {}]
  %s11 = inlined_call_operand.vmem [shape: f32[1,32], index: 11, kind: input, shape index: {}]
  %s12 = inlined_call_operand.hbm [shape: f32[2,8,32], index: 12, kind: output, shape index: {}]
  %s13 = sld [smem:[#allocation0]]
  $region81: #{tpu_custom_call.1} parent=0
    _
  %s15 = ssub.s32 1, %s13
  %s16 = scalar_select 0, %s15, %s13
  $region1: #{tpu_custom_call.1} parent=0
    #allocation2 [shape = 'u8[8192]{0}', space=vmem, size = 0x2000, scoped, tag = 'output window, operand 0']
    #allocation3 [shape = 's32[2]{0}', space=sflag, size = 0x8, scoped, tag = 'scoped memory for tpu_custom_call.1']
    %17 = vsyncpa [#allocation3], 0
    %s18 = scalar_lea.sflag [#allocation3], 1
    %19 = vsyncpa %s18, 0
    loop: start=0, step=1, limit=4
    $region2: #{tpu_custom_call.1} parent=1 // loop_pre_header
      _
    $region3: #{tpu_custom_call.1} parent=1 // loop_header
      %s21 = sphi 0, %s25
      %p22 = scmp.ge.s32.totalorder %s21, 4
      %s31 = sphi 0, %s33
      %s34 = sphi 0, %s31
      %s35 = sphi 0, %s34
      %s51 = sphi 0, %s35
      %s55 = sphi 0, %s55
      %s57 = sphi 0, %s55
      %s58 = sphi 0, %s57
      %s72 = sphi 0, %s58
      %s76 = sphi 0, %s76
      %s78 = sphi 0, %s76
      %s79 = sphi 0, %s78
      %s93 = sphi 0, %s79
      %s97 = sphi 0, %s97
      %s99 = sphi 0, %s97
      %s100 = sphi 0, %s99
      %s114 = sphi 0, %s100
      %s118 = sphi 0, %s118
      %s120 = sphi 0, %s118
      %s121 = sphi 0, %s120
      %s135 = sphi 0, %s121
      %s139 = sphi 0, %s139
      %s141 = sphi 0, %s139
      %s142 = sphi 0, %s141
      %s156 = sphi 0, %s142
      %s160 = sphi 0, %s160
      %s162 = sphi 0, %s160
      %s163 = sphi 0, %s162
      %s177 = sphi 0, %s163
      %s181 = sphi 0, %s181
      %s183 = sphi 0, %s181
      %s184 = sphi 0, %s183
      %s198 = sphi 0, %s184
      %s202 = sphi 0, %s202
      %s204 = sphi 0, %s202
      %s205 = sphi 0, %s204
      %s219 = sphi 0, %s205
      %s223 = sphi 0, %s223
      %s225 = sphi 0, %s223
      %s226 = sphi 0, %s225
      %s240 = sphi 0, %s226
      %s244 = sphi 0, %s244
      %s246 = sphi 0, %s244
      %s247 = sphi 0, %s246
      %s261 = sphi 0, %s247
      %s265 = sphi 0, %s265
      %s267 = sphi 0, %s265
      %s268 = sphi 0, %s267
      %s282 = sphi 0, %s268
      %s288 = sphi 0, %s290
      %s291 = sphi 0, %s288
      %s292 = sphi 0, %s291
      %s308 = sphi 0, %s292
    $region4: #{tpu_custom_call.1} parent=1 // loop_header_branch
      %24 = sbr.rel (%p22) target = $region8
    $region5: #{tpu_custom_call.1} parent=1 // loop_body
      %s26 = ssub.s32 %s21, 1
      %s27 = ssub.s32 %s21, 2
      %s28 = sadd.s32 %s21, 1
      %s29 = ssub.s32 %s21, %s28
      %p30 = scmp.eq.s32.totalorder %s29, 0
      %s32 = sadd.s32 %s31, 1
      %s33 = scalar_select %p30, %s31, %s32
      %p36 = pneg %p30
      %p37 = scmp.eq.s32.totalorder %s21, 1
      %p38 = por %p36, %p37
      %p39 = scmp.ne.s32.totalorder %s31, %s34
      %p40 = scmp.eq.s32.totalorder %s21, 0
      %p41 = por %p39, %p40
      %p42 = scmp.ne.s32.totalorder %s31, %s34
      %p43 = scmp.eq.s32.totalorder %s26, 1
      %p44 = por %p42, %p43
      %p45 = scmp.ne.s32.totalorder %s34, %s35
      %p46 = scmp.eq.s32.totalorder %s26, 0
      %p47 = por %p45, %p46
      %p48 = scmp.ne.s32.totalorder %s34, %s35
      %p49 = scmp.eq.s32.totalorder %s27, 1
      %p50 = por %p48, %p49
      %p52 = scmp.ne.s32.totalorder %s35, %s51
      %p53 = scmp.eq.s32.totalorder %s27, 0
      %p54 = por %p52, %p53
      %s56 = sadd.s32 %s55, 1
      %p59 = scmp.eq.s32.totalorder %s21, 1
      %p60 = scmp.ne.s32.totalorder %s55, %s57
      %p61 = scmp.eq.s32.totalorder %s21, 0
      %p62 = por %p60, %p61
      %p63 = scmp.ne.s32.totalorder %s55, %s57
      %p64 = scmp.eq.s32.totalorder %s26, 1
      %p65 = por %p63, %p64
      %p66 = scmp.ne.s32.totalorder %s57, %s58
      %p67 = scmp.eq.s32.totalorder %s26, 0
      %p68 = por %p66, %p67
      %p69 = scmp.ne.s32.totalorder %s57, %s58
      %p70 = scmp.eq.s32.totalorder %s27, 1
      %p71 = por %p69, %p70
      %p73 = scmp.ne.s32.totalorder %s58, %s72
      %p74 = scmp.eq.s32.totalorder %s27, 0
      %p75 = por %p73, %p74
      %s77 = sadd.s32 %s76, 1
      %p80 = scmp.eq.s32.totalorder %s21, 1
      %p81 = scmp.ne.s32.totalorder %s76, %s78
      %p82 = scmp.eq.s32.totalorder %s21, 0
      %p83 = por %p81, %p82
      %p84 = scmp.ne.s32.totalorder %s76, %s78
      %p85 = scmp.eq.s32.totalorder %s26, 1
      %p86 = por %p84, %p85
      %p87 = scmp.ne.s32.totalorder %s78, %s79
      %p88 = scmp.eq.s32.totalorder %s26, 0
      %p89 = por %p87, %p88
      %p90 = scmp.ne.s32.totalorder %s78, %s79
      %p91 = scmp.eq.s32.totalorder %s27, 1
      %p92 = por %p90, %p91
      %p94 = scmp.ne.s32.totalorder %s79, %s93
      %p95 = scmp.eq.s32.totalorder %s27, 0
      %p96 = por %p94, %p95
      %s98 = sadd.s32 %s97, 1
      %p101 = scmp.eq.s32.totalorder %s21, 1
      %p102 = scmp.ne.s32.totalorder %s97, %s99
      %p103 = scmp.eq.s32.totalorder %s21, 0
      %p104 = por %p102, %p103
      %p105 = scmp.ne.s32.totalorder %s97, %s99
      %p106 = scmp.eq.s32.totalorder %s26, 1
      %p107 = por %p105, %p106
      %p108 = scmp.ne.s32.totalorder %s99, %s100
      %p109 = scmp.eq.s32.totalorder %s26, 0
      %p110 = por %p108, %p109
      %p111 = scmp.ne.s32.totalorder %s99, %s100
      %p112 = scmp.eq.s32.totalorder %s27, 1
      %p113 = por %p111, %p112
      %p115 = scmp.ne.s32.totalorder %s100, %s114
      %p116 = scmp.eq.s32.totalorder %s27, 0
      %p117 = por %p115, %p116
      %s119 = sadd.s32 %s118, 1
      %p122 = scmp.eq.s32.totalorder %s21, 1
      %p123 = scmp.ne.s32.totalorder %s118, %s120
      %p124 = scmp.eq.s32.totalorder %s21, 0
      %p125 = por %p123, %p124
      %p126 = scmp.ne.s32.totalorder %s118, %s120
      %p127 = scmp.eq.s32.totalorder %s26, 1
      %p128 = por %p126, %p127
      %p129 = scmp.ne.s32.totalorder %s120, %s121
      %p130 = scmp.eq.s32.totalorder %s26, 0
      %p131 = por %p129, %p130
      %p132 = scmp.ne.s32.totalorder %s120, %s121
      %p133 = scmp.eq.s32.totalorder %s27, 1
      %p134 = por %p132, %p133
      %p136 = scmp.ne.s32.totalorder %s121, %s135
      %p137 = scmp.eq.s32.totalorder %s27, 0
      %p138 = por %p136, %p137
      %s140 = sadd.s32 %s139, 1
      %p143 = scmp.eq.s32.totalorder %s21, 1
      %p144 = scmp.ne.s32.totalorder %s139, %s141
      %p145 = scmp.eq.s32.totalorder %s21, 0
      %p146 = por %p144, %p145
      %p147 = scmp.ne.s32.totalorder %s139, %s141
      %p148 = scmp.eq.s32.totalorder %s26, 1
      %p149 = por %p147, %p148
      %p150 = scmp.ne.s32.totalorder %s141, %s142
      %p151 = scmp.eq.s32.totalorder %s26, 0
      %p152 = por %p150, %p151
      %p153 = scmp.ne.s32.totalorder %s141, %s142
      %p154 = scmp.eq.s32.totalorder %s27, 1
      %p155 = por %p153, %p154
      %p157 = scmp.ne.s32.totalorder %s142, %s156
      %p158 = scmp.eq.s32.totalorder %s27, 0
      %p159 = por %p157, %p158
      %s161 = sadd.s32 %s160, 1
      %p164 = scmp.eq.s32.totalorder %s21, 1
      %p165 = scmp.ne.s32.totalorder %s160, %s162
      %p166 = scmp.eq.s32.totalorder %s21, 0
      %p167 = por %p165, %p166
      %p168 = scmp.ne.s32.totalorder %s160, %s162
      %p169 = scmp.eq.s32.totalorder %s26, 1
      %p170 = por %p168, %p169
      %p171 = scmp.ne.s32.totalorder %s162, %s163
      %p172 = scmp.eq.s32.totalorder %s26, 0
      %p173 = por %p171, %p172
      %p174 = scmp.ne.s32.totalorder %s162, %s163
      %p175 = scmp.eq.s32.totalorder %s27, 1
      %p176 = por %p174, %p175
      %p178 = scmp.ne.s32.totalorder %s163, %s177
      %p179 = scmp.eq.s32.totalorder %s27, 0
      %p180 = por %p178, %p179
      %s182 = sadd.s32 %s181, 1
      %p185 = scmp.eq.s32.totalorder %s21, 1
      %p186 = scmp.ne.s32.totalorder %s181, %s183
      %p187 = scmp.eq.s32.totalorder %s21, 0
      %p188 = por %p186, %p187
      %p189 = scmp.ne.s32.totalorder %s181, %s183
      %p190 = scmp.eq.s32.totalorder %s26, 1
      %p191 = por %p189, %p190
      %p192 = scmp.ne.s32.totalorder %s183, %s184
      %p193 = scmp.eq.s32.totalorder %s26, 0
      %p194 = por %p192, %p193
      %p195 = scmp.ne.s32.totalorder %s183, %s184
      %p196 = scmp.eq.s32.totalorder %s27, 1
      %p197 = por %p195, %p196
      %p199 = scmp.ne.s32.totalorder %s184, %s198
      %p200 = scmp.eq.s32.totalorder %s27, 0
      %p201 = por %p199, %p200
      %s203 = sadd.s32 %s202, 1
      %p206 = scmp.eq.s32.totalorder %s21, 1
      %p207 = scmp.ne.s32.totalorder %s202, %s204
      %p208 = scmp.eq.s32.totalorder %s21, 0
      %p209 = por %p207, %p208
      %p210 = scmp.ne.s32.totalorder %s202, %s204
      %p211 = scmp.eq.s32.totalorder %s26, 1
      %p212 = por %p210, %p211
      %p213 = scmp.ne.s32.totalorder %s204, %s205
      %p214 = scmp.eq.s32.totalorder %s26, 0
      %p215 = por %p213, %p214
      %p216 = scmp.ne.s32.totalorder %s204, %s205
      %p217 = scmp.eq.s32.totalorder %s27, 1
      %p218 = por %p216, %p217
      %p220 = scmp.ne.s32.totalorder %s205, %s219
      %p221 = scmp.eq.s32.totalorder %s27, 0
      %p222 = por %p220, %p221
      %s224 = sadd.s32 %s223, 1
      %p227 = scmp.eq.s32.totalorder %s21, 1
      %p228 = scmp.ne.s32.totalorder %s223, %s225
      %p229 = scmp.eq.s32.totalorder %s21, 0
      %p230 = por %p228, %p229
      %p231 = scmp.ne.s32.totalorder %s223, %s225
      %p232 = scmp.eq.s32.totalorder %s26, 1
      %p233 = por %p231, %p232
      %p234 = scmp.ne.s32.totalorder %s225, %s226
      %p235 = scmp.eq.s32.totalorder %s26, 0
      %p236 = por %p234, %p235
      %p237 = scmp.ne.s32.totalorder %s225, %s226
      %p238 = scmp.eq.s32.totalorder %s27, 1
      %p239 = por %p237, %p238
      %p241 = scmp.ne.s32.totalorder %s226, %s240
      %p242 = scmp.eq.s32.totalorder %s27, 0
      %p243 = por %p241, %p242
      %s245 = sadd.s32 %s244, 1
      %p248 = scmp.eq.s32.totalorder %s21, 1
      %p249 = scmp.ne.s32.totalorder %s244, %s246
      %p250 = scmp.eq.s32.totalorder %s21, 0
      %p251 = por %p249, %p250
      %p252 = scmp.ne.s32.totalorder %s244, %s246
      %p253 = scmp.eq.s32.totalorder %s26, 1
      %p254 = por %p252, %p253
      %p255 = scmp.ne.s32.totalorder %s246, %s247
      %p256 = scmp.eq.s32.totalorder %s26, 0
      %p257 = por %p255, %p256
      %p258 = scmp.ne.s32.totalorder %s246, %s247
      %p259 = scmp.eq.s32.totalorder %s27, 1
      %p260 = por %p258, %p259
      %p262 = scmp.ne.s32.totalorder %s247, %s261
      %p263 = scmp.eq.s32.totalorder %s27, 0
      %p264 = por %p262, %p263
      %s266 = sadd.s32 %s265, 1
      %p269 = scmp.eq.s32.totalorder %s21, 1
      %p270 = scmp.ne.s32.totalorder %s265, %s267
      %p271 = scmp.eq.s32.totalorder %s21, 0
      %p272 = por %p270, %p271
      %p273 = scmp.ne.s32.totalorder %s265, %s267
      %p274 = scmp.eq.s32.totalorder %s26, 1
      %p275 = por %p273, %p274
      %p276 = scmp.ne.s32.totalorder %s267, %s268
      %p277 = scmp.eq.s32.totalorder %s26, 0
      %p278 = por %p276, %p277
      %p279 = scmp.ne.s32.totalorder %s267, %s268
      %p280 = scmp.eq.s32.totalorder %s27, 1
      %p281 = por %p279, %p280
      %p283 = scmp.ne.s32.totalorder %s268, %s282
      %p284 = scmp.eq.s32.totalorder %s27, 0
      %p285 = por %p283, %p284
      %s286 = ssub.s32 %s21, %s28
      %p287 = scmp.eq.s32.totalorder %s286, 0
      %s289 = sadd.s32 %s288, 1
      %s290 = scalar_select %p287, %s288, %s289
      %p293 = pneg %p287
      %p294 = scmp.eq.s32.totalorder %s21, 1
      %p295 = por %p293, %p294
      %p296 = scmp.ne.s32.totalorder %s288, %s291
      %p297 = scmp.eq.s32.totalorder %s21, 0
      %p298 = por %p296, %p297
      %p299 = scmp.ne.s32.totalorder %s288, %s291
      %p300 = scmp.eq.s32.totalorder %s26, 1
      %p301 = por %p299, %p300
      %p302 = scmp.ne.s32.totalorder %s291, %s292
      %p303 = scmp.eq.s32.totalorder %s26, 0
      %p304 = por %p302, %p303
      %p305 = scmp.ne.s32.totalorder %s291, %s292
      %p306 = scmp.eq.s32.totalorder %s27, 1
      %p307 = por %p305, %p306
      %p309 = scmp.ne.s32.totalorder %s292, %s308
      %p310 = scmp.eq.s32.totalorder %s27, 0
      %p311 = por %p309, %p310
      %p312 = scmp.le.s32.totalorder 1, %s21
      %p313 = scmp.lt.s32.totalorder %s21, 3
      %p314 = pnand %p312, %p313
      %p315 = pneg %p314
      // Predicated region
      $region9: #{tpu_custom_call.1} parent=5 // pred_check
        _
      $region10: #{tpu_custom_call.1} parent=5 // pred_check_branch
        %317 = sbr.rel (%p314) target = $region12
      $region11: #{tpu_custom_call.1} parent=5 // pred_region
        %s318 = ssub.s32 %s21, 1
        // Predicated region
        $region13: #{tpu_custom_call.1} parent=11 // pred_check
          %p319 = pneg %p68
        $region14: #{tpu_custom_call.1} parent=11 // pred_check_branch
          %321 = sbr.rel (%p319) target = $region16
        $region15: #{tpu_custom_call.1} parent=11 // pred_region
          _
        $region16: #{tpu_custom_call.1} parent=11 // pred_fallthru
          _
        // Predicated region
        $region17: #{tpu_custom_call.1} parent=11 // pred_check
          %p322 = pneg %p89
        $region18: #{tpu_custom_call.1} parent=11 // pred_check_branch
          %324 = sbr.rel (%p322) target = $region20
        $region19: #{tpu_custom_call.1} parent=11 // pred_region
          _
        $region20: #{tpu_custom_call.1} parent=11 // pred_fallthru
          _
        // Predicated region
        $region21: #{tpu_custom_call.1} parent=11 // pred_check
          %p325 = pneg %p110
        $region22: #{tpu_custom_call.1} parent=11 // pred_check_branch
          %327 = sbr.rel (%p325) target = $region24
        $region23: #{tpu_custom_call.1} parent=11 // pred_region
          _
        $region24: #{tpu_custom_call.1} parent=11 // pred_fallthru
          _
        // Predicated region
        $region25: #{tpu_custom_call.1} parent=11 // pred_check
          %p328 = pneg %p131
        $region26: #{tpu_custom_call.1} parent=11 // pred_check_branch
          %330 = sbr.rel (%p328) target = $region28
        $region27: #{tpu_custom_call.1} parent=11 // pred_region
          _
        $region28: #{tpu_custom_call.1} parent=11 // pred_fallthru
          _
        // Predicated region
        $region29: #{tpu_custom_call.1} parent=11 // pred_check
          %p331 = pneg %p152
        $region30: #{tpu_custom_call.1} parent=11 // pred_check_branch
          %333 = sbr.rel (%p331) target = $region32
        $region31: #{tpu_custom_call.1} parent=11 // pred_region
          _
        $region32: #{tpu_custom_call.1} parent=11 // pred_fallthru
          _
        // Predicated region
        $region33: #{tpu_custom_call.1} parent=11 // pred_check
          %p334 = pneg %p173
        $region34: #{tpu_custom_call.1} parent=11 // pred_check_branch
          %336 = sbr.rel (%p334) target = $region36
        $region35: #{tpu_custom_call.1} parent=11 // pred_region
          _
        $region36: #{tpu_custom_call.1} parent=11 // pred_fallthru
          _
        // Predicated region
        $region37: #{tpu_custom_call.1} parent=11 // pred_check
          %p337 = pneg %p194
        $region38: #{tpu_custom_call.1} parent=11 // pred_check_branch
          %339 = sbr.rel (%p337) target = $region40
        $region39: #{tpu_custom_call.1} parent=11 // pred_region
          _
        $region40: #{tpu_custom_call.1} parent=11 // pred_fallthru
          _
        // Predicated region
        $region41: #{tpu_custom_call.1} parent=11 // pred_check
          %p340 = pneg %p215
        $region42: #{tpu_custom_call.1} parent=11 // pred_check_branch
          %342 = sbr.rel (%p340) target = $region44
        $region43: #{tpu_custom_call.1} parent=11 // pred_region
          _
        $region44: #{tpu_custom_call.1} parent=11 // pred_fallthru
          _
        // Predicated region
        $region45: #{tpu_custom_call.1} parent=11 // pred_check
          %p343 = pneg %p236
        $region46: #{tpu_custom_call.1} parent=11 // pred_check_branch
          %345 = sbr.rel (%p343) target = $region48
        $region47: #{tpu_custom_call.1} parent=11 // pred_region
          _
        $region48: #{tpu_custom_call.1} parent=11 // pred_fallthru
          _
        // Predicated region
        $region49: #{tpu_custom_call.1} parent=11 // pred_check
          %p346 = pneg %p257
        $region50: #{tpu_custom_call.1} parent=11 // pred_check_branch
          %348 = sbr.rel (%p346) target = $region52
        $region51: #{tpu_custom_call.1} parent=11 // pred_region
          _
        $region52: #{tpu_custom_call.1} parent=11 // pred_fallthru
          _
        // Predicated region
        $region53: #{tpu_custom_call.1} parent=11 // pred_check
          %p349 = pneg %p278
        $region54: #{tpu_custom_call.1} parent=11 // pred_check_branch
          %351 = sbr.rel (%p349) target = $region56
        $region55: #{tpu_custom_call.1} parent=11 // pred_region
          _
        $region56: #{tpu_custom_call.1} parent=11 // pred_fallthru
          _
      $region12: #{tpu_custom_call.1} parent=5 // pred_fallthru
        _
      %p352 = scmp.lt.s32.totalorder %s21, 2
      // Predicated region
      $region57: #{tpu_custom_call.1} parent=5 // pred_check
        %p353 = pneg %p352
      $region58: #{tpu_custom_call.1} parent=5 // pred_check_branch
        %355 = sbr.rel (%p353) target = $region60
      $region59: #{tpu_custom_call.1} parent=5 // pred_region
        // Predicated region
        $region61: #{tpu_custom_call.1} parent=59 // pred_check
          %p356 = pneg %p41
        $region62: #{tpu_custom_call.1} parent=59 // pred_check_branch
          %358 = sbr.rel (%p356) target = $region64
        $region63: #{tpu_custom_call.1} parent=59 // pred_region
          %p359 = scmp.lt.s32.totalorder %s21, 1
          %s360 = scalar_select %p359, %s21, 1
          %s361 = smul.addr %s360, 8
          %s362 = scalar_lea.vmem %s0, %s361
        $region64: #{tpu_custom_call.1} parent=59 // pred_fallthru
          _
      $region60: #{tpu_custom_call.1} parent=5 // pred_fallthru
        _
      %p363 = scmp.le.s32.totalorder 1, %s21
      %p364 = scmp.lt.s32.totalorder %s21, 3
      %p365 = pnand %p363, %p364
      %p366 = pneg %p365
      // Predicated region
      $region65: #{tpu_custom_call.1} parent=5 // pred_check
        _
      $region66: #{tpu_custom_call.1} parent=5 // pred_check_branch
        %368 = sbr.rel (%p365) target = $region68
      $region67: #{tpu_custom_call.1} parent=5 // pred_region
        %s369 = ssub.s32 %s21, 1
        %p370 = scmp.lt.s32.totalorder %s26, 1
        %s371 = scalar_select %p370, %s26, 1
        %s372 = smul.addr %s371, 8
        %s373 = scalar_lea.vmem %s0, %s372
        %p374 = pneg %p47
        %p375 = pneg %p44
        %p376 = pneg %p68
        %p377 = pneg %p65
        %p378 = pneg %p89
        %p379 = pneg %p86
        %p380 = pneg %p110
        %p381 = pneg %p107
        %p382 = pneg %p131
        %p383 = pneg %p128
        %p384 = pneg %p152
        %p385 = pneg %p149
        %p386 = pneg %p173
        %p387 = pneg %p170
        %p388 = pneg %p194
        %p389 = pneg %p191
        %p390 = pneg %p215
        %p391 = pneg %p212
        %p392 = pneg %p236
        %p393 = pneg %p233
        %p394 = pneg %p257
        %p395 = pneg %p254
        %p396 = pneg %p278
        %p397 = pneg %p275
        %p398 = pneg %p304
        %p399 = pneg %p301
        %s400 = sand.u32 %s291, 1
        %s401 = scalar_lea.sflag [#allocation3], %s400
        %s402 = sand.u32 %s291, 1
        %s403 = smul.addr %s402, 8
        %s404 = scalar_lea.vmem [#allocation2], %s403
        %p405 = scmp.lt.s32.totalorder %s26, 1
        %s406 = scalar_select %p405, %s26, 1
        %s407 = smul.addr %s406, 8
        %s408 = scalar_lea.vmem %s0, %s407
        %v410 = vld [vmem:[%s408] sm:$0xff]
        %v411 = vld [vmem:[%s1] sm:$0x1]
        %v412 = vld [vmem:[%s2] sm:$0x1]
        %vm413 = vcmask 261120
        %v414 = vsel %vm413, %v410, 0.0
        %415 = vadd.xlane.f32.xlu0 %v414
        %v416 = vpop.xlane.xlu0 %415
        %v417 = vrcp.pop 32.0
        %v418 = vmul.f32 %v416, %v417
        %v419 = vsub.f32 %v410, %v418
        %v420 = vmul.f32 %v419, %v419
        %v421 = vsel %vm413, %v420, 0.0
        %422 = vadd.xlane.f32.xlu0 %v421
        %v423 = vpop.xlane.xlu0 %422
        %v424 = vmul.f32 %v423, %v417
        %v425 = vadd.f32 %v424, 1e-05
        %v426 = vrsqrt.pop %v425
        %v427 = vmul.f32 %v419, %v426
        %v429 = vlaneseq
        %v430 = vshrl.u32 %v429, 7
        %v431 = vsub.s32 0, %v430
        %v432 = vrot.slane %v411, %v431
        %v434 = vmul.f32 %v427, %v432
        %v436 = vlaneseq
        %v437 = vshrl.u32 %v436, 7
        %v438 = vsub.s32 0, %v437
        %v439 = vrot.slane %v412, %v438
        %v441 = vadd.f32 %v434, %v439
        %v442 = vpack.c.bf16 %v441, %v441
        %v443 = vld [vmem:[%s3] sm:$0xf]
        %v444 = vld [vmem:[%s3 + $0x4] sm:$0xf]
        %v445 = vld [vmem:[%s3 + $0x8] sm:$0xf]
        %v446 = vld [vmem:[%s3 + $0xc] sm:$0xf]
        %v451 = vunpack.c.l.b16 %v443
        %v452 = vunpack.c.l.b16 %v444
        %v453 = vunpack.c.l.b16 %v445
        %v454 = vunpack.c.l.b16 %v446
        %v455 = vpack.c.b16 %v452, %v451
        %v456 = vpack.c.b16 %v454, %v453
        %v460 = vsel %vm413, %v442, 0
        %462 = vmatprep.subr.bf16.mxu0 0
        %463 = vmatpush1.bf16.msra.mxu0 0
        %464 = vmatprep.subr.bf16.mxu0 0
        %465 = vmatpush1.bf16.msra.mxu0 0
        %466 = vmatprep.subr.bf16.mxu0 0
        %467 = vmatpush1.bf16.msra.mxu0 0
        %468 = vmatprep.subr.bf16.mxu0 0
        %469 = vmatpush1.bf16.msra.mxu0 0
        %470 = vmatprep.subr.bf16.mxu0 0
        %471 = vmatpush1.bf16.msra.mxu0 0
        %472 = vmatprep.subr.bf16.mxu0 0
        %473 = vmatpush1.bf16.msra.mxu0 0
        %474 = vmatprep.subr.bf16.mxu0 0
        %475 = vmatpush1.bf16.msra.mxu0 %v456
        %476 = vmatprep.subr.bf16.mxu0 0
        %477 = vmatpush1.bf16.msra.mxu0 %v455
        %478 = vmatprep.subr.bf16.mxu0 0
        %479 = vmatpush2.bf16.msra.mxu0 0
        %480 = vmatprep.subr.bf16.mxu0 0
        %481 = vmatpush2.bf16.msra.mxu0 0
        %482 = vmatprep.subr.bf16.mxu0 0
        %483 = vmatpush2.bf16.msra.mxu0 0
        %484 = vmatprep.subr.bf16.mxu0 0
        %485 = vmatpush2.bf16.msra.mxu0 0
        %486 = vmatprep.subr.bf16.mxu0 0
        %487 = vmatpush2.bf16.msra.mxu0 0
        %488 = vmatprep.subr.bf16.mxu0 0
        %489 = vmatpush2.bf16.msra.mxu0 0
        %490 = vmatprep.subr.bf16.mxu0 0
        %491 = vmatpush2.bf16.msra.mxu0 0
        %492 = vmatprep.subr.bf16.mxu0 0
        %493 = vmatpush2.bf16.msra.mxu0 0
        %494 = vmatprep.mubr.bf16.mxu0 0
        %495 = vmatmul.mubr.bf16.gmra.mxu0 %v460
        %v496 = vpop.f32.mrf.mxu0
        %v497 = vadd.f32 0.0, %v496
        %v498 = vpop.f32.mrf.mxu0
        %v499 = vpop.f32.mrf.mxu0
        %v500 = vpop.f32.mrf.mxu0
        %501 = vdwg.mxu0
        %v502 = vpack.c.bf16 %v497, %v497
        %504 = vrot.lane.b32.xlu0 %v502, 96
        %v505 = vpop.permute.xlu0 %504
        %vm506 = vcmask 64512
        %v508 = vsel %vm506, %v502, 0
        %v511 = vsel %vm506, %v505, 0
        %513 = vmatprep.subr.bf16.mxu0 0
        %514 = vmatpush1.bf16.xpose.msra.mxu0 0
        %515 = vmatprep.subr.bf16.mxu0 0
        %516 = vmatpush1.bf16.xpose.msra.mxu0 0
        %517 = vmatprep.subr.bf16.mxu0 0
        %518 = vmatpush1.bf16.xpose.msra.mxu0 0
        %519 = vmatprep.subr.bf16.mxu0 0
        %520 = vmatpush1.bf16.xpose.msra.mxu0 0
        %521 = vmatprep.subr.bf16.mxu0 0
        %522 = vmatpush1.bf16.xpose.msra.mxu0 0
        %523 = vmatprep.subr.bf16.mxu0 0
        %524 = vmatpush1.bf16.xpose.msra.mxu0 0
        %525 = vmatprep.subr.bf16.mxu0 0
        %526 = vmatpush1.bf16.xpose.msra.mxu0 0
        %527 = vmatprep.subr.bf16.mxu0 0
        %528 = vmatpush1.bf16.xpose.msra.mxu0 %v511
        %529 = vmatprep.subr.bf16.mxu0 0
        %530 = vmatpush2.bf16.xpose.msra.mxu0 0
        %531 = vmatprep.subr.bf16.mxu0 0
        %532 = vmatpush2.bf16.xpose.msra.mxu0 0
        %533 = vmatprep.subr.bf16.mxu0 0
        %534 = vmatpush2.bf16.xpose.msra.mxu0 0
        %535 = vmatprep.subr.bf16.mxu0 0
        %536 = vmatpush2.bf16.xpose.msra.mxu0 0
        %537 = vmatprep.subr.bf16.mxu0 0
        %538 = vmatpush2.bf16.xpose.msra.mxu0 0
        %539 = vmatprep.subr.bf16.mxu0 0
        %540 = vmatpush2.bf16.xpose.msra.mxu0 0
        %541 = vmatprep.subr.bf16.mxu0 0
        %542 = vmatpush2.bf16.xpose.msra.mxu0 0
        %543 = vmatprep.subr.bf16.mxu0 0
        %544 = vmatpush2.bf16.xpose.msra.mxu0 0
        %545 = vmatprep.mubr.bf16.mxu0 0
        %546 = vmatmul.mubr.bf16.gmra.mxu0 %v508
        %v547 = vpop.f32.mrf.mxu0
        %v548 = vadd.f32 0.0, %v547
        %v549 = vpop.f32.mrf.mxu0
        %v550 = vpop.f32.mrf.mxu0
        %v551 = vpop.f32.mrf.mxu0
        %552 = vdwg.mxu0
        %v553 = vsel %vm506, %v548, -inf
        %554 = vmax.xlane.f32.xlu0 %v553
        %v555 = vpop.xlane.xlu0 %554
        %v556 = vsub.f32 %v548, %v555
        %v557 = vmul.f32 %v556, 1.442695
        %v558 = vpow.pop %v557
        %v559 = vsel %vm506, %v558, 0.0
        %560 = vadd.xlane.f32.xlu0 %v559
        %v561 = vpop.xlane.xlu0 %560
        %v562 = vrcp.pop %v561
        %v563 = vpack.c.bf16 %v558, %v558
        %564 = vrot.lane.b32.xlu0 %v502, 64
        %v565 = vpop.permute.xlu0 %564
        %v567 = vsel %vm506, %v563, 0
        %vm569 = vcmask 1043456
        %v571 = vsel %vm569, %v565, 0
        %573 = vmatprep.subr.bf16.mxu0 0
        %574 = vmatpush1.bf16.msra.mxu0 0
        %575 = vmatprep.subr.bf16.mxu0 0
        %576 = vmatpush1.bf16.msra.mxu0 0
        %577 = vmatprep.subr.bf16.mxu0 0
        %578 = vmatpush1.bf16.msra.mxu0 0
        %579 = vmatprep.subr.bf16.mxu0 0
        %580 = vmatpush1.bf16.msra.mxu0 0
        %581 = vmatprep.subr.bf16.mxu0 0
        %582 = vmatpush1.bf16.msra.mxu0 0
        %583 = vmatprep.subr.bf16.mxu0 0
        %584 = vmatpush1.bf16.msra.mxu0 0
        %585 = vmatprep.subr.bf16.mxu0 0
        %586 = vmatpush1.bf16.msra.mxu0 0
        %587 = vmatprep.subr.bf16.mxu0 0
        %588 = vmatpush1.bf16.msra.mxu0 %v571
        %589 = vmatprep.subr.bf16.mxu0 0
        %590 = vmatpush2.bf16.msra.mxu0 0
        %591 = vmatprep.subr.bf16.mxu0 0
        %592 = vmatpush2.bf16.msra.mxu0 0
        %593 = vmatprep.subr.bf16.mxu0 0
        %594 = vmatpush2.bf16.msra.mxu0 0
        %595 = vmatprep.subr.bf16.mxu0 0
        %596 = vmatpush2.bf16.msra.mxu0 0
        %597 = vmatprep.subr.bf16.mxu0 0
        %598 = vmatpush2.bf16.msra.mxu0 0
        %599 = vmatprep.subr.bf16.mxu0 0
        %600 = vmatpush2.bf16.msra.mxu0 0
        %601 = vmatprep.subr.bf16.mxu0 0
        %602 = vmatpush2.bf16.msra.mxu0 0
        %603 = vmatprep.subr.bf16.mxu0 0
        %604 = vmatpush2.bf16.msra.mxu0 0
        %605 = vmatprep.mubr.bf16.mxu0 0
        %606 = vmatmul.mubr.bf16.gmra.mxu0 %v567
        %v607 = vpop.f32.mrf.mxu0
        %v608 = vadd.f32 0.0, %v607
        %v609 = vpop.f32.mrf.mxu0
        %v610 = vpop.f32.mrf.mxu0
        %v611 = vpop.f32.mrf.mxu0
        %612 = vdwg.mxu0
        %v613 = vmul.f32 %v608, %v562
        %v614 = vpack.c.bf16 %v613, %v613
        %v615 = vld [vmem:[%s4] sm:$0xf]
        %616 = vrot.lane.b32.xlu0 %v502, 120
        %v617 = vpop.permute.xlu0 %616
        %618 = vrot.lane.b32.xlu0 %v502, 88
        %v619 = vpop.permute.xlu0 %618
        %v621 = vsel %vm506, %v617, 0
        %v624 = vsel %vm506, %v619, 0
        %626 = vmatprep.subr.bf16.mxu0 0
        %627 = vmatpush1.bf16.xpose.msra.mxu0 0
        %628 = vmatprep.subr.bf16.mxu0 0
        %629 = vmatpush1.bf16.xpose.msra.mxu0 0
        %630 = vmatprep.subr.bf16.mxu0 0
        %631 = vmatpush1.bf16.xpose.msra.mxu0 0
        %632 = vmatprep.subr.bf16.mxu0 0
        %633 = vmatpush1.bf16.xpose.msra.mxu0 0
        %634 = vmatprep.subr.bf16.mxu0 0
        %635 = vmatpush1.bf16.xpose.msra.mxu0 0
        %636 = vmatprep.subr.bf16.mxu0 0
        %637 = vmatpush1.bf16.xpose.msra.mxu0 0
        %638 = vmatprep.subr.bf16.mxu0 0
        %639 = vmatpush1.bf16.xpose.msra.mxu0 0
        %640 = vmatprep.subr.bf16.mxu0 0
        %641 = vmatpush1.bf16.xpose.msra.mxu0 %v624
        %642 = vmatprep.subr.bf16.mxu0 0
        %643 = vmatpush2.bf16.xpose.msra.mxu0 0
        %644 = vmatprep.subr.bf16.mxu0 0
        %645 = vmatpush2.bf16.xpose.msra.mxu0 0
        %646 = vmatprep.subr.bf16.mxu0 0
        %647 = vmatpush2.bf16.xpose.msra.mxu0 0
        %648 = vmatprep.subr.bf16.mxu0 0
        %649 = vmatpush2.bf16.xpose.msra.mxu0 0
        %650 = vmatprep.subr.bf16.mxu0 0
        %651 = vmatpush2.bf16.xpose.msra.mxu0 0
        %652 = vmatprep.subr.bf16.mxu0 0
        %653 = vmatpush2.bf16.xpose.msra.mxu0 0
        %654 = vmatprep.subr.bf16.mxu0 0
        %655 = vmatpush2.bf16.xpose.msra.mxu0 0
        %656 = vmatprep.subr.bf16.mxu0 0
        %657 = vmatpush2.bf16.xpose.msra.mxu0 0
        %658 = vmatprep.mubr.bf16.mxu0 0
        %659 = vmatmul.mubr.bf16.gmra.mxu0 %v621
        %v660 = vpop.f32.mrf.mxu0
        %v661 = vadd.f32 0.0, %v660
        %v662 = vpop.f32.mrf.mxu0
        %v663 = vpop.f32.mrf.mxu0
        %v664 = vpop.f32.mrf.mxu0
        %665 = vdwg.mxu0
        %v666 = vsel %vm506, %v661, -inf
        %667 = vmax.xlane.f32.xlu0 %v666
        %v668 = vpop.xlane.xlu0 %667
        %v669 = vsub.f32 %v661, %v668
        %v670 = vmul.f32 %v669, 1.442695
        %v671 = vpow.pop %v670
        %v672 = vsel %vm506, %v671, 0.0
        %673 = vadd.xlane.f32.xlu0 %v672
        %v674 = vpop.xlane.xlu0 %673
        %v675 = vrcp.pop %v674
        %v676 = vpack.c.bf16 %v671, %v671
        %677 = vrot.lane.b32.xlu0 %v502, 56
        %v678 = vpop.permute.xlu0 %677
        %v680 = vsel %vm506, %v676, 0
        %v683 = vsel %vm569, %v678, 0
        %685 = vmatprep.subr.bf16.mxu0 0
        %686 = vmatpush1.bf16.msra.mxu0 0
        %687 = vmatprep.subr.bf16.mxu0 0
        %688 = vmatpush1.bf16.msra.mxu0 0
        %689 = vmatprep.subr.bf16.mxu0 0
        %690 = vmatpush1.bf16.msra.mxu0 0
        %691 = vmatprep.subr.bf16.mxu0 0
        %692 = vmatpush1.bf16.msra.mxu0 0
        %693 = vmatprep.subr.bf16.mxu0 0
        %694 = vmatpush1.bf16.msra.mxu0 0
        %695 = vmatprep.subr.bf16.mxu0 0
        %696 = vmatpush1.bf16.msra.mxu0 0
        %697 = vmatprep.subr.bf16.mxu0 0
        %698 = vmatpush1.bf16.msra.mxu0 0
        %699 = vmatprep.subr.bf16.mxu0 0
        %700 = vmatpush1.bf16.msra.mxu0 %v683
        %701 = vmatprep.subr.bf16.mxu0 0
        %702 = vmatpush2.bf16.msra.mxu0 0
        %703 = vmatprep.subr.bf16.mxu0 0
        %704 = vmatpush2.bf16.msra.mxu0 0
        %705 = vmatprep.subr.bf16.mxu0 0
        %706 = vmatpush2.bf16.msra.mxu0 0
        %707 = vmatprep.subr.bf16.mxu0 0
        %708 = vmatpush2.bf16.msra.mxu0 0
        %709 = vmatprep.subr.bf16.mxu0 0
        %710 = vmatpush2.bf16.msra.mxu0 0
        %711 = vmatprep.subr.bf16.mxu0 0
        %712 = vmatpush2.bf16.msra.mxu0 0
        %713 = vmatprep.subr.bf16.mxu0 0
        %714 = vmatpush2.bf16.msra.mxu0 0
        %715 = vmatprep.subr.bf16.mxu0 0
        %716 = vmatpush2.bf16.msra.mxu0 0
        %717 = vmatprep.mubr.bf16.mxu0 0
        %718 = vmatmul.mubr.bf16.gmra.mxu0 %v680
        %v719 = vpop.f32.mrf.mxu0
        %v720 = vadd.f32 0.0, %v719
        %v721 = vpop.f32.mrf.mxu0
        %v722 = vpop.f32.mrf.mxu0
        %v723 = vpop.f32.mrf.mxu0
        %724 = vdwg.mxu0
        %v725 = vmul.f32 %v720, %v675
        %v726 = vpack.c.bf16 %v725, %v725
        %v727 = vld [vmem:[%s4 + $0x4] sm:$0xf]
        %v729 = vsel %vm506, %v726, 0
        %v732 = vsel %vm569, %v727, 0
        %734 = vmatprep.subr.bf16.mxu0 0
        %735 = vmatpush1.bf16.msra.mxu0 0
        %736 = vmatprep.subr.bf16.mxu0 0
        %737 = vmatpush1.bf16.msra.mxu0 0
        %738 = vmatprep.subr.bf16.mxu0 0
        %739 = vmatpush1.bf16.msra.mxu0 0
        %740 = vmatprep.subr.bf16.mxu0 0
        %741 = vmatpush1.bf16.msra.mxu0 0
        %742 = vmatprep.subr.bf16.mxu0 0
        %743 = vmatpush1.bf16.msra.mxu0 0
        %744 = vmatprep.subr.bf16.mxu0 0
        %745 = vmatpush1.bf16.msra.mxu0 0
        %746 = vmatprep.subr.bf16.mxu0 0
        %747 = vmatpush1.bf16.msra.mxu0 0
        %748 = vmatprep.subr.bf16.mxu0 0
        %749 = vmatpush1.bf16.msra.mxu0 %v732
        %750 = vmatprep.subr.bf16.mxu0 0
        %751 = vmatpush2.bf16.msra.mxu0 0
        %752 = vmatprep.subr.bf16.mxu0 0
        %753 = vmatpush2.bf16.msra.mxu0 0
        %754 = vmatprep.subr.bf16.mxu0 0
        %755 = vmatpush2.bf16.msra.mxu0 0
        %756 = vmatprep.subr.bf16.mxu0 0
        %757 = vmatpush2.bf16.msra.mxu0 0
        %758 = vmatprep.subr.bf16.mxu0 0
        %759 = vmatpush2.bf16.msra.mxu0 0
        %760 = vmatprep.subr.bf16.mxu0 0
        %761 = vmatpush2.bf16.msra.mxu0 0
        %762 = vmatprep.subr.bf16.mxu0 0
        %763 = vmatpush2.bf16.msra.mxu0 0
        %764 = vmatprep.subr.bf16.mxu0 0
        %765 = vmatpush2.bf16.msra.mxu0 0
        %766 = vmatprep.mubr.bf16.mxu0 0
        %767 = vmatmul.mubr.bf16.gmra.mxu0 %v729
        %v768 = vpop.f32.mrf.mxu0
        %v769 = vadd.f32 0.0, %v768
        %v770 = vpop.f32.mrf.mxu0
        %v771 = vpop.f32.mrf.mxu0
        %v772 = vpop.f32.mrf.mxu0
        %773 = vdwg.mxu0
        %v775 = vsel %vm506, %v614, 0
        %v778 = vsel %vm569, %v615, 0
        %780 = vmatprep.subr.bf16.mxu0 0
        %781 = vmatpush1.bf16.msra.mxu0 0
        %782 = vmatprep.subr.bf16.mxu0 0
        %783 = vmatpush1.bf16.msra.mxu0 0
        %784 = vmatprep.subr.bf16.mxu0 0
        %785 = vmatpush1.bf16.msra.mxu0 0
        %786 = vmatprep.subr.bf16.mxu0 0
        %787 = vmatpush1.bf16.msra.mxu0 0
        %788 = vmatprep.subr.bf16.mxu0 0
        %789 = vmatpush1.bf16.msra.mxu0 0
        %790 = vmatprep.subr.bf16.mxu0 0
        %791 = vmatpush1.bf16.msra.mxu0 0
        %792 = vmatprep.subr.bf16.mxu0 0
        %793 = vmatpush1.bf16.msra.mxu0 0
        %794 = vmatprep.subr.bf16.mxu0 0
        %795 = vmatpush1.bf16.msra.mxu0 %v778
        %796 = vmatprep.subr.bf16.mxu0 0
        %797 = vmatpush2.bf16.msra.mxu0 0
        %798 = vmatprep.subr.bf16.mxu0 0
        %799 = vmatpush2.bf16.msra.mxu0 0
        %800 = vmatprep.subr.bf16.mxu0 0
        %801 = vmatpush2.bf16.msra.mxu0 0
        %802 = vmatprep.subr.bf16.mxu0 0
        %803 = vmatpush2.bf16.msra.mxu0 0
        %804 = vmatprep.subr.bf16.mxu0 0
        %805 = vmatpush2.bf16.msra.mxu0 0
        %806 = vmatprep.subr.bf16.mxu0 0
        %807 = vmatpush2.bf16.msra.mxu0 0
        %808 = vmatprep.subr.bf16.mxu0 0
        %809 = vmatpush2.bf16.msra.mxu0 0
        %810 = vmatprep.subr.bf16.mxu0 0
        %811 = vmatpush2.bf16.msra.mxu0 0
        %812 = vmatprep.mubr.bf16.mxu0 0
        %813 = vmatmul.mubr.bf16.gmra.mxu0 %v775
        %v814 = vpop.f32.mrf.mxu0
        %v815 = vadd.f32 %v769, %v814
        %v816 = vpop.f32.mrf.mxu0
        %v817 = vpop.f32.mrf.mxu0
        %v818 = vpop.f32.mrf.mxu0
        %819 = vdwg.mxu0
        %820 = vrot.lane.b32.xlu0 %v502, 112
        %v821 = vpop.permute.xlu0 %820
        %822 = vrot.lane.b32.xlu0 %v502, 80
        %v823 = vpop.permute.xlu0 %822
        %v825 = vsel %vm506, %v821, 0
        %v828 = vsel %vm506, %v823, 0
        %830 = vmatprep.subr.bf16.mxu0 0
        %831 = vmatpush1.bf16.xpose.msra.mxu0 0
        %832 = vmatprep.subr.bf16.mxu0 0
        %833 = vmatpush1.bf16.xpose.msra.mxu0 0
        %834 = vmatprep.subr.bf16.mxu0 0
        %835 = vmatpush1.bf16.xpose.msra.mxu0 0
        %836 = vmatprep.subr.bf16.mxu0 0
        %837 = vmatpush1.bf16.xpose.msra.mxu0 0
        %838 = vmatprep.subr.bf16.mxu0 0
        %839 = vmatpush1.bf16.xpose.msra.mxu0 0
        %840 = vmatprep.subr.bf16.mxu0 0
        %841 = vmatpush1.bf16.xpose.msra.mxu0 0
        %842 = vmatprep.subr.bf16.mxu0 0
        %843 = vmatpush1.bf16.xpose.msra.mxu0 0
        %844 = vmatprep.subr.bf16.mxu0 0
        %845 = vmatpush1.bf16.xpose.msra.mxu0 %v828
        %846 = vmatprep.subr.bf16.mxu0 0
        %847 = vmatpush2.bf16.xpose.msra.mxu0 0
        %848 = vmatprep.subr.bf16.mxu0 0
        %849 = vmatpush2.bf16.xpose.msra.mxu0 0
        %850 = vmatprep.subr.bf16.mxu0 0
        %851 = vmatpush2.bf16.xpose.msra.mxu0 0
        %852 = vmatprep.subr.bf16.mxu0 0
        %853 = vmatpush2.bf16.xpose.msra.mxu0 0
        %854 = vmatprep.subr.bf16.mxu0 0
        %855 = vmatpush2.bf16.xpose.msra.mxu0 0
        %856 = vmatprep.subr.bf16.mxu0 0
        %857 = vmatpush2.bf16.xpose.msra.mxu0 0
        %858 = vmatprep.subr.bf16.mxu0 0
        %859 = vmatpush2.bf16.xpose.msra.mxu0 0
        %860 = vmatprep.subr.bf16.mxu0 0
        %861 = vmatpush2.bf16.xpose.msra.mxu0 0
        %862 = vmatprep.mubr.bf16.mxu0 0
        %863 = vmatmul.mubr.bf16.gmra.mxu0 %v825
        %v864 = vpop.f32.mrf.mxu0
        %v865 = vadd.f32 0.0, %v864
        %v866 = vpop.f32.mrf.mxu0
        %v867 = vpop.f32.mrf.mxu0
        %v868 = vpop.f32.mrf.mxu0
        %869 = vdwg.mxu0
        %v870 = vsel %vm506, %v865, -inf
        %871 = vmax.xlane.f32.xlu0 %v870
        %v872 = vpop.xlane.xlu0 %871
        %v873 = vsub.f32 %v865, %v872
        %v874 = vmul.f32 %v873, 1.442695
        %v875 = vpow.pop %v874
        %v876 = vsel %vm506, %v875, 0.0
        %877 = vadd.xlane.f32.xlu0 %v876
        %v878 = vpop.xlane.xlu0 %877
        %v879 = vrcp.pop %v878
        %v880 = vpack.c.bf16 %v875, %v875
        %881 = vrot.lane.b32.xlu0 %v502, 48
        %v882 = vpop.permute.xlu0 %881
        %v884 = vsel %vm506, %v880, 0
        %v887 = vsel %vm569, %v882, 0
        %889 = vmatprep.subr.bf16.mxu0 0
        %890 = vmatpush1.bf16.msra.mxu0 0
        %891 = vmatprep.subr.bf16.mxu0 0
        %892 = vmatpush1.bf16.msra.mxu0 0
        %893 = vmatprep.subr.bf16.mxu0 0
        %894 = vmatpush1.bf16.msra.mxu0 0
        %895 = vmatprep.subr.bf16.mxu0 0
        %896 = vmatpush1.bf16.msra.mxu0 0
        %897 = vmatprep.subr.bf16.mxu0 0
        %898 = vmatpush1.bf16.msra.mxu0 0
        %899 = vmatprep.subr.bf16.mxu0 0
        %900 = vmatpush1.bf16.msra.mxu0 0
        %901 = vmatprep.subr.bf16.mxu0 0
        %902 = vmatpush1.bf16.msra.mxu0 0
        %903 = vmatprep.subr.bf16.mxu0 0
        %904 = vmatpush1.bf16.msra.mxu0 %v887
        %905 = vmatprep.subr.bf16.mxu0 0
        %906 = vmatpush2.bf16.msra.mxu0 0
        %907 = vmatprep.subr.bf16.mxu0 0
        %908 = vmatpush2.bf16.msra.mxu0 0
        %909 = vmatprep.subr.bf16.mxu0 0
        %910 = vmatpush2.bf16.msra.mxu0 0
        %911 = vmatprep.subr.bf16.mxu0 0
        %912 = vmatpush2.bf16.msra.mxu0 0
        %913 = vmatprep.subr.bf16.mxu0 0
        %914 = vmatpush2.bf16.msra.mxu0 0
        %915 = vmatprep.subr.bf16.mxu0 0
        %916 = vmatpush2.bf16.msra.mxu0 0
        %917 = vmatprep.subr.bf16.mxu0 0
        %918 = vmatpush2.bf16.msra.mxu0 0
        %919 = vmatprep.subr.bf16.mxu0 0
        %920 = vmatpush2.bf16.msra.mxu0 0
        %921 = vmatprep.mubr.bf16.mxu0 0
        %922 = vmatmul.mubr.bf16.gmra.mxu0 %v884
        %v923 = vpop.f32.mrf.mxu0
        %v924 = vadd.f32 0.0, %v923
        %v925 = vpop.f32.mrf.mxu0
        %v926 = vpop.f32.mrf.mxu0
        %v927 = vpop.f32.mrf.mxu0
        %928 = vdwg.mxu0
        %v929 = vmul.f32 %v924, %v879
        %v930 = vpack.c.bf16 %v929, %v929
        %v931 = vld [vmem:[%s4 + $0x8] sm:$0xf]
        %v933 = vsel %vm506, %v930, 0
        %v936 = vsel %vm569, %v931, 0
        %938 = vmatprep.subr.bf16.mxu0 0
        %939 = vmatpush1.bf16.msra.mxu0 0
        %940 = vmatprep.subr.bf16.mxu0 0
        %941 = vmatpush1.bf16.msra.mxu0 0
        %942 = vmatprep.subr.bf16.mxu0 0
        %943 = vmatpush1.bf16.msra.mxu0 0
        %944 = vmatprep.subr.bf16.mxu0 0
        %945 = vmatpush1.bf16.msra.mxu0 0
        %946 = vmatprep.subr.bf16.mxu0 0
        %947 = vmatpush1.bf16.msra.mxu0 0
        %948 = vmatprep.subr.bf16.mxu0 0
        %949 = vmatpush1.bf16.msra.mxu0 0
        %950 = vmatprep.subr.bf16.mxu0 0
        %951 = vmatpush1.bf16.msra.mxu0 0
        %952 = vmatprep.subr.bf16.mxu0 0
        %953 = vmatpush1.bf16.msra.mxu0 %v936
        %954 = vmatprep.subr.bf16.mxu0 0
        %955 = vmatpush2.bf16.msra.mxu0 0
        %956 = vmatprep.subr.bf16.mxu0 0
        %957 = vmatpush2.bf16.msra.mxu0 0
        %958 = vmatprep.subr.bf16.mxu0 0
        %959 = vmatpush2.bf16.msra.mxu0 0
        %960 = vmatprep.subr.bf16.mxu0 0
        %961 = vmatpush2.bf16.msra.mxu0 0
        %962 = vmatprep.subr.bf16.mxu0 0
        %963 = vmatpush2.bf16.msra.mxu0 0
        %964 = vmatprep.subr.bf16.mxu0 0
        %965 = vmatpush2.bf16.msra.mxu0 0
        %966 = vmatprep.subr.bf16.mxu0 0
        %967 = vmatpush2.bf16.msra.mxu0 0
        %968 = vmatprep.subr.bf16.mxu0 0
        %969 = vmatpush2.bf16.msra.mxu0 0
        %970 = vmatprep.mubr.bf16.mxu0 0
        %971 = vmatmul.mubr.bf16.gmra.mxu0 %v933
        %v972 = vpop.f32.mrf.mxu0
        %v973 = vadd.f32 0.0, %v972
        %v974 = vpop.f32.mrf.mxu0
        %v975 = vpop.f32.mrf.mxu0
        %v976 = vpop.f32.mrf.mxu0
        %977 = vdwg.mxu0
        %v978 = vadd.f32 %v815, %v973
        %979 = vrot.lane.b32.xlu0 %v502, 104
        %v980 = vpop.permute.xlu0 %979
        %981 = vrot.lane.b32.xlu0 %v502, 72
        %v982 = vpop.permute.xlu0 %981
        %v984 = vsel %vm506, %v980, 0
        %v987 = vsel %vm506, %v982, 0
        %989 = vmatprep.subr.bf16.mxu0 0
        %990 = vmatpush1.bf16.xpose.msra.mxu0 0
        %991 = vmatprep.subr.bf16.mxu0 0
        %992 = vmatpush1.bf16.xpose.msra.mxu0 0
        %993 = vmatprep.subr.bf16.mxu0 0
        %994 = vmatpush1.bf16.xpose.msra.mxu0 0
        %995 = vmatprep.subr.bf16.mxu0 0
        %996 = vmatpush1.bf16.xpose.msra.mxu0 0
        %997 = vmatprep.subr.bf16.mxu0 0
        %998 = vmatpush1.bf16.xpose.msra.mxu0 0
        %999 = vmatprep.subr.bf16.mxu0 0
        %1000 = vmatpush1.bf16.xpose.msra.mxu0 0
        %1001 = vmatprep.subr.bf16.mxu0 0
        %1002 = vmatpush1.bf16.xpose.msra.mxu0 0
        %1003 = vmatprep.subr.bf16.mxu0 0
        %1004 = vmatpush1.bf16.xpose.msra.mxu0 %v987
        %1005 = vmatprep.subr.bf16.mxu0 0
        %1006 = vmatpush2.bf16.xpose.msra.mxu0 0
        %1007 = vmatprep.subr.bf16.mxu0 0
        %1008 = vmatpush2.bf16.xpose.msra.mxu0 0
        %1009 = vmatprep.subr.bf16.mxu0 0
        %1010 = vmatpush2.bf16.xpose.msra.mxu0 0
        %1011 = vmatprep.subr.bf16.mxu0 0
        %1012 = vmatpush2.bf16.xpose.msra.mxu0 0
        %1013 = vmatprep.subr.bf16.mxu0 0
        %1014 = vmatpush2.bf16.xpose.msra.mxu0 0
        %1015 = vmatprep.subr.bf16.mxu0 0
        %1016 = vmatpush2.bf16.xpose.msra.mxu0 0
        %1017 = vmatprep.subr.bf16.mxu0 0
        %1018 = vmatpush2.bf16.xpose.msra.mxu0 0
        %1019 = vmatprep.subr.bf16.mxu0 0
        %1020 = vmatpush2.bf16.xpose.msra.mxu0 0
        %1021 = vmatprep.mubr.bf16.mxu0 0
        %1022 = vmatmul.mubr.bf16.gmra.mxu0 %v984
        %v1023 = vpop.f32.mrf.mxu0
        %v1024 = vadd.f32 0.0, %v1023
        %v1025 = vpop.f32.mrf.mxu0
        %v1026 = vpop.f32.mrf.mxu0
        %v1027 = vpop.f32.mrf.mxu0
        %1028 = vdwg.mxu0
        %v1029 = vsel %vm506, %v1024, -inf
        %1030 = vmax.xlane.f32.xlu0 %v1029
        %v1031 = vpop.xlane.xlu0 %1030
        %v1032 = vsub.f32 %v1024, %v1031
        %v1033 = vmul.f32 %v1032, 1.442695
        %v1034 = vpow.pop %v1033
        %v1035 = vsel %vm506, %v1034, 0.0
        %1036 = vadd.xlane.f32.xlu0 %v1035
        %v1037 = vpop.xlane.xlu0 %1036
        %v1038 = vrcp.pop %v1037
        %v1039 = vpack.c.bf16 %v1034, %v1034
        %1040 = vrot.lane.b32.xlu0 %v502, 40
        %v1041 = vpop.permute.xlu0 %1040
        %v1043 = vsel %vm506, %v1039, 0
        %v1046 = vsel %vm569, %v1041, 0
        %1048 = vmatprep.subr.bf16.mxu0 0
        %1049 = vmatpush1.bf16.msra.mxu0 0
        %1050 = vmatprep.subr.bf16.mxu0 0
        %1051 = vmatpush1.bf16.msra.mxu0 0
        %1052 = vmatprep.subr.bf16.mxu0 0
        %1053 = vmatpush1.bf16.msra.mxu0 0
        %1054 = vmatprep.subr.bf16.mxu0 0
        %1055 = vmatpush1.bf16.msra.mxu0 0
        %1056 = vmatprep.subr.bf16.mxu0 0
        %1057 = vmatpush1.bf16.msra.mxu0 0
        %1058 = vmatprep.subr.bf16.mxu0 0
        %1059 = vmatpush1.bf16.msra.mxu0 0
        %1060 = vmatprep.subr.bf16.mxu0 0
        %1061 = vmatpush1.bf16.msra.mxu0 0
        %1062 = vmatprep.subr.bf16.mxu0 0
        %1063 = vmatpush1.bf16.msra.mxu0 %v1046
        %1064 = vmatprep.subr.bf16.mxu0 0
        %1065 = vmatpush2.bf16.msra.mxu0 0
        %1066 = vmatprep.subr.bf16.mxu0 0
        %1067 = vmatpush2.bf16.msra.mxu0 0
        %1068 = vmatprep.subr.bf16.mxu0 0
        %1069 = vmatpush2.bf16.msra.mxu0 0
        %1070 = vmatprep.subr.bf16.mxu0 0
        %1071 = vmatpush2.bf16.msra.mxu0 0
        %1072 = vmatprep.subr.bf16.mxu0 0
        %1073 = vmatpush2.bf16.msra.mxu0 0
        %1074 = vmatprep.subr.bf16.mxu0 0
        %1075 = vmatpush2.bf16.msra.mxu0 0
        %1076 = vmatprep.subr.bf16.mxu0 0
        %1077 = vmatpush2.bf16.msra.mxu0 0
        %1078 = vmatprep.subr.bf16.mxu0 0
        %1079 = vmatpush2.bf16.msra.mxu0 0
        %1080 = vmatprep.mubr.bf16.mxu0 0
        %1081 = vmatmul.mubr.bf16.gmra.mxu0 %v1043
        %v1082 = vpop.f32.mrf.mxu0
        %v1083 = vadd.f32 0.0, %v1082
        %v1084 = vpop.f32.mrf.mxu0
        %v1085 = vpop.f32.mrf.mxu0
        %v1086 = vpop.f32.mrf.mxu0
        %1087 = vdwg.mxu0
        %v1088 = vmul.f32 %v1083, %v1038
        %v1089 = vpack.c.bf16 %v1088, %v1088
        %v1090 = vld [vmem:[%s4 + $0xc] sm:$0xf]
        %v1092 = vsel %vm506, %v1089, 0
        %v1095 = vsel %vm569, %v1090, 0
        %1097 = vmatprep.subr.bf16.mxu0 0
        %1098 = vmatpush1.bf16.msra.mxu0 0
        %1099 = vmatprep.subr.bf16.mxu0 0
        %1100 = vmatpush1.bf16.msra.mxu0 0
        %1101 = vmatprep.subr.bf16.mxu0 0
        %1102 = vmatpush1.bf16.msra.mxu0 0
        %1103 = vmatprep.subr.bf16.mxu0 0
        %1104 = vmatpush1.bf16.msra.mxu0 0
        %1105 = vmatprep.subr.bf16.mxu0 0
        %1106 = vmatpush1.bf16.msra.mxu0 0
        %1107 = vmatprep.subr.bf16.mxu0 0
        %1108 = vmatpush1.bf16.msra.mxu0 0
        %1109 = vmatprep.subr.bf16.mxu0 0
        %1110 = vmatpush1.bf16.msra.mxu0 0
        %1111 = vmatprep.subr.bf16.mxu0 0
        %1112 = vmatpush1.bf16.msra.mxu0 %v1095
        %1113 = vmatprep.subr.bf16.mxu0 0
        %1114 = vmatpush2.bf16.msra.mxu0 0
        %1115 = vmatprep.subr.bf16.mxu0 0
        %1116 = vmatpush2.bf16.msra.mxu0 0
        %1117 = vmatprep.subr.bf16.mxu0 0
        %1118 = vmatpush2.bf16.msra.mxu0 0
        %1119 = vmatprep.subr.bf16.mxu0 0
        %1120 = vmatpush2.bf16.msra.mxu0 0
        %1121 = vmatprep.subr.bf16.mxu0 0
        %1122 = vmatpush2.bf16.msra.mxu0 0
        %1123 = vmatprep.subr.bf16.mxu0 0
        %1124 = vmatpush2.bf16.msra.mxu0 0
        %1125 = vmatprep.subr.bf16.mxu0 0
        %1126 = vmatpush2.bf16.msra.mxu0 0
        %1127 = vmatprep.subr.bf16.mxu0 0
        %1128 = vmatpush2.bf16.msra.mxu0 0
        %1129 = vmatprep.mubr.bf16.mxu0 0
        %1130 = vmatmul.mubr.bf16.gmra.mxu0 %v1092
        %v1131 = vpop.f32.mrf.mxu0
        %v1132 = vadd.f32 0.0, %v1131
        %v1133 = vpop.f32.mrf.mxu0
        %v1134 = vpop.f32.mrf.mxu0
        %v1135 = vpop.f32.mrf.mxu0
        %1136 = vdwg.mxu0
        %v1137 = vadd.f32 %v978, %v1132
        %v1138 = vadd.f32 %v410, %v1137
        %v1139 = vld [vmem:[%s5] sm:$0x1]
        %v1141 = vlaneseq
        %v1142 = vshrl.u32 %v1141, 7
        %v1143 = vsub.s32 0, %v1142
        %v1144 = vrot.slane %v1139, %v1143
        %v1146 = vadd.f32 %v1138, %v1144
        %v1147 = vld [vmem:[%s6] sm:$0x1]
        %v1148 = vld [vmem:[%s7] sm:$0x1]
        %v1149 = vsel %vm413, %v1146, 0.0
        %1150 = vadd.xlane.f32.xlu0 %v1149
        %v1151 = vpop.xlane.xlu0 %1150
        %v1152 = vmul.f32 %v1151, %v417
        %v1153 = vsub.f32 %v1146, %v1152
        %v1154 = vmul.f32 %v1153, %v1153
        %v1155 = vsel %vm413, %v1154, 0.0
        %1156 = vadd.xlane.f32.xlu0 %v1155
        %v1157 = vpop.xlane.xlu0 %1156
        %v1158 = vmul.f32 %v1157, %v417
        %v1159 = vadd.f32 %v1158, 1e-05
        %v1160 = vrsqrt.pop %v1159
        %v1161 = vmul.f32 %v1153, %v1160
        %v1163 = vlaneseq
        %v1164 = vshrl.u32 %v1163, 7
        %v1165 = vsub.s32 0, %v1164
        %v1166 = vrot.slane %v1147, %v1165
        %v1168 = vmul.f32 %v1161, %v1166
        %v1170 = vlaneseq
        %v1171 = vshrl.u32 %v1170, 7
        %v1172 = vsub.s32 0, %v1171
        %v1173 = vrot.slane %v1148, %v1172
        %v1175 = vadd.f32 %v1168, %v1173
        %v1176 = vpack.c.bf16 %v1175, %v1175
        %v1177 = vld [vmem:[%s8] sm:$0xf]
        %v1178 = vld [vmem:[%s8 + $0x4] sm:$0xf]
        %v1179 = vld [vmem:[%s8 + $0x8] sm:$0xf]
        %v1180 = vld [vmem:[%s8 + $0xc] sm:$0xf]
        %v1181 = vld [vmem:[%s9] sm:$0x1]
        %v1183 = vlaneseq
        %v1184 = vshrl.u32 %v1183, 7
        %v1185 = vsub.s32 0, %v1184
        %v1186 = vrot.slane %v1181, %v1185
        %v1192 = vunpack.c.l.b16 %v1177
        %v1193 = vunpack.c.l.b16 %v1178
        %v1194 = vunpack.c.l.b16 %v1179
        %v1195 = vunpack.c.l.b16 %v1180
        %v1196 = vpack.c.b16 %v1193, %v1192
        %v1197 = vpack.c.b16 %v1195, %v1194
        %v1201 = vsel %vm413, %v1176, 0
        %1203 = vmatprep.subr.bf16.mxu0 0
        %1204 = vmatpush1.bf16.msra.mxu0 0
        %1205 = vmatprep.subr.bf16.mxu0 0
        %1206 = vmatpush1.bf16.msra.mxu0 0
        %1207 = vmatprep.subr.bf16.mxu0 0
        %1208 = vmatpush1.bf16.msra.mxu0 0
        %1209 = vmatprep.subr.bf16.mxu0 0
        %1210 = vmatpush1.bf16.msra.mxu0 0
        %1211 = vmatprep.subr.bf16.mxu0 0
        %1212 = vmatpush1.bf16.msra.mxu0 0
        %1213 = vmatprep.subr.bf16.mxu0 0
        %1214 = vmatpush1.bf16.msra.mxu0 0
        %1215 = vmatprep.subr.bf16.mxu0 0
        %1216 = vmatpush1.bf16.msra.mxu0 %v1197
        %1217 = vmatprep.subr.bf16.mxu0 0
        %1218 = vmatpush1.bf16.msra.mxu0 %v1196
        %1219 = vmatprep.subr.bf16.mxu0 0
        %1220 = vmatpush2.bf16.msra.mxu0 0
        %1221 = vmatprep.subr.bf16.mxu0 0
        %1222 = vmatpush2.bf16.msra.mxu0 0
        %1223 = vmatprep.subr.bf16.mxu0 0
        %1224 = vmatpush2.bf16.msra.mxu0 0
        %1225 = vmatprep.subr.bf16.mxu0 0
        %1226 = vmatpush2.bf16.msra.mxu0 0
        %1227 = vmatprep.subr.bf16.mxu0 0
        %1228 = vmatpush2.bf16.msra.mxu0 0
        %1229 = vmatprep.subr.bf16.mxu0 0
        %1230 = vmatpush2.bf16.msra.mxu0 0
        %1231 = vmatprep.subr.bf16.mxu0 0
        %1232 = vmatpush2.bf16.msra.mxu0 0
        %1233 = vmatprep.subr.bf16.mxu0 0
        %1234 = vmatpush2.bf16.msra.mxu0 0
        %1235 = vmatprep.mubr.bf16.mxu0 0
        %1236 = vmatmul.mubr.bf16.gmra.mxu0 %v1201
        %v1237 = vpop.f32.mrf.mxu0
        %v1238 = vadd.f32 %v1186, %v1237
        %v1239 = vpop.f32.mrf.mxu0
        %v1240 = vpop.f32.mrf.mxu0
        %v1241 = vpop.f32.mrf.mxu0
        %1242 = vdwg.mxu0
        %v1243 = vmul.f32 %v1238, 0.5
        %v1244 = vmul.f32 %v1238, 0.70710677
        %v1245 = verf.f32.pop %v1244
        %v1246 = vadd.f32 %v1245, 1.0
        %v1247 = vmul.f32 %v1243, %v1246
        %v1248 = vpack.c.bf16 %v1247, %v1247
        %v1249 = vld [vmem:[%s10] sm:$0xf]
        %v1250 = vld [vmem:[%s10 + $0x4] sm:$0xf]
        %v1251 = vld [vmem:[%s10 + $0x8] sm:$0xf]
        %v1252 = vld [vmem:[%s10 + $0xc] sm:$0xf]
        %v1253 = vld [vmem:[%s10 + $0x10] sm:$0xf]
        %v1254 = vld [vmem:[%s10 + $0x14] sm:$0xf]
        %v1255 = vld [vmem:[%s10 + $0x18] sm:$0xf]
        %v1256 = vld [vmem:[%s10 + $0x1c] sm:$0xf]
        %v1257 = vld [vmem:[%s10 + $0x20] sm:$0xf]
        %v1258 = vld [vmem:[%s10 + $0x24] sm:$0xf]
        %v1259 = vld [vmem:[%s10 + $0x28] sm:$0xf]
        %v1260 = vld [vmem:[%s10 + $0x2c] sm:$0xf]
        %v1261 = vld [vmem:[%s10 + $0x30] sm:$0xf]
        %v1262 = vld [vmem:[%s10 + $0x34] sm:$0xf]
        %v1263 = vld [vmem:[%s10 + $0x38] sm:$0xf]
        %v1264 = vld [vmem:[%s10 + $0x3c] sm:$0xf]
        %v1265 = vld [vmem:[%s11] sm:$0x1]
        %v1267 = vlaneseq
        %v1268 = vshrl.u32 %v1267, 7
        %v1269 = vsub.s32 0, %v1268
        %v1270 = vrot.slane %v1265, %v1269
        %v1288 = vunpack.c.l.b16 %v1249
        %v1289 = vunpack.c.l.b16 %v1250
        %v1290 = vunpack.c.l.b16 %v1251
        %v1291 = vunpack.c.l.b16 %v1252
        %v1292 = vunpack.c.l.b16 %v1253
        %v1293 = vunpack.c.l.b16 %v1254
        %v1294 = vunpack.c.l.b16 %v1255
        %v1295 = vunpack.c.l.b16 %v1256
        %v1296 = vunpack.c.l.b16 %v1257
        %v1297 = vunpack.c.l.b16 %v1258
        %v1298 = vunpack.c.l.b16 %v1259
        %v1299 = vunpack.c.l.b16 %v1260
        %v1300 = vunpack.c.l.b16 %v1261
        %v1301 = vunpack.c.l.b16 %v1262
        %v1302 = vunpack.c.l.b16 %v1263
        %v1303 = vunpack.c.l.b16 %v1264
        %v1304 = vpack.c.b16 %v1289, %v1288
        %v1305 = vpack.c.b16 %v1291, %v1290
        %v1306 = vpack.c.b16 %v1293, %v1292
        %v1307 = vpack.c.b16 %v1295, %v1294
        %v1308 = vpack.c.b16 %v1297, %v1296
        %v1309 = vpack.c.b16 %v1299, %v1298
        %v1310 = vpack.c.b16 %v1301, %v1300
        %v1311 = vpack.c.b16 %v1303, %v1302
        %1320 = vmatprep.subr.bf16.mxu0 0
        %1321 = vmatpush1.bf16.msra.mxu0 %v1311
        %1322 = vmatprep.subr.bf16.mxu0 0
        %1323 = vmatpush1.bf16.msra.mxu0 %v1310
        %1324 = vmatprep.subr.bf16.mxu0 0
        %1325 = vmatpush1.bf16.msra.mxu0 %v1309
        %1326 = vmatprep.subr.bf16.mxu0 0
        %1327 = vmatpush1.bf16.msra.mxu0 %v1308
        %1328 = vmatprep.subr.bf16.mxu0 0
        %1329 = vmatpush1.bf16.msra.mxu0 %v1307
        %1330 = vmatprep.subr.bf16.mxu0 0
        %1331 = vmatpush1.bf16.msra.mxu0 %v1306
        %1332 = vmatprep.subr.bf16.mxu0 0
        %1333 = vmatpush1.bf16.msra.mxu0 %v1305
        %1334 = vmatprep.subr.bf16.mxu0 0
        %1335 = vmatpush1.bf16.msra.mxu0 %v1304
        %1336 = vmatprep.subr.bf16.mxu0 0
        %1337 = vmatpush2.bf16.msra.mxu0 0
        %1338 = vmatprep.subr.bf16.mxu0 0
        %1339 = vmatpush2.bf16.msra.mxu0 0
        %1340 = vmatprep.subr.bf16.mxu0 0
        %1341 = vmatpush2.bf16.msra.mxu0 0
        %1342 = vmatprep.subr.bf16.mxu0 0
        %1343 = vmatpush2.bf16.msra.mxu0 0
        %1344 = vmatprep.subr.bf16.mxu0 0
        %1345 = vmatpush2.bf16.msra.mxu0 0
        %1346 = vmatprep.subr.bf16.mxu0 0
        %1347 = vmatpush2.bf16.msra.mxu0 0
        %1348 = vmatprep.subr.bf16.mxu0 0
        %1349 = vmatpush2.bf16.msra.mxu0 0
        %1350 = vmatprep.subr.bf16.mxu0 0
        %1351 = vmatpush2.bf16.msra.mxu0 0
        %1352 = vmatprep.mubr.bf16.mxu0 0
        %1353 = vmatmul.mubr.bf16.gmra.mxu0 %v1248
        %v1354 = vpop.f32.mrf.mxu0
        %v1355 = vadd.f32 %v1270, %v1354
        %v1356 = vpop.f32.mrf.mxu0
        %v1357 = vpop.f32.mrf.mxu0
        %v1358 = vpop.f32.mrf.mxu0
        %1359 = vdwg.mxu0
        %v1360 = vadd.f32 %v1146, %v1355
        %1361 = vst.msk [vmem:[%s404] sm:$0xff] %vm413, %v1360
        %s1362 = sand.u32 %s291, 1
        %s1363 = scalar_lea.sflag [#allocation3], %s1362
        %s1364 = sand.u32 %s291, 1
        %s1365 = smul.addr %s1364, 8
        %s1366 = scalar_lea.vmem [#allocation2], %s1365
        // Predicated region
        $region69: #{tpu_custom_call.1} parent=67 // pred_check
          %p1367 = pneg %p301
        $region70: #{tpu_custom_call.1} parent=67 // pred_check_branch
          %1369 = sbr.rel (%p1367) target = $region72
        $region71: #{tpu_custom_call.1} parent=67 // pred_region
          %s1371 = ssub.s32 128, 128
          %1372 = vsyncadd %s1363, %s1371
          %s1373 = smul.addr %s26, 128
          %s1374 = scalar_lea.hbm %s12, %s1373
          %s1376 = sshll.u32 %s1366, 4
          %s1377 = int_to_ptr.vmem [resolvable:$true] %s1376
          %1379 = dma.vmem_to_hbm [thread:$0]  %s1377, 128, %s1374, %s1363
        $region72: #{tpu_custom_call.1} parent=67 // pred_fallthru
          _
      $region68: #{tpu_custom_call.1} parent=5 // pred_fallthru
        _
      %p1380 = scmp.le.s32.totalorder 2, %s21
      // Predicated region
      $region73: #{tpu_custom_call.1} parent=5 // pred_check
        %p1381 = pneg %p1380
      $region74: #{tpu_custom_call.1} parent=5 // pred_check_branch
        %1383 = sbr.rel (%p1381) target = $region76
      $region75: #{tpu_custom_call.1} parent=5 // pred_region
        %s1384 = ssub.s32 %s21, 2
        // Predicated region
        $region77: #{tpu_custom_call.1} parent=75 // pred_check
          %p1385 = pneg %p307
        $region78: #{tpu_custom_call.1} parent=75 // pred_check_branch
          %1387 = sbr.rel (%p1385) target = $region80
        $region79: #{tpu_custom_call.1} parent=75 // pred_region
          %s1388 = sand.u32 %s292, 1
          %s1389 = scalar_lea.sflag [#allocation3], %s1388
          %s1390 = sand.u32 %s292, 1
          %s1391 = smul.addr %s1390, 8
          %s1392 = scalar_lea.vmem [#allocation2], %s1391
          %1393 = dma.done %s1389, 128
        $region80: #{tpu_custom_call.1} parent=75 // pred_fallthru
          _
      $region76: #{tpu_custom_call.1} parent=5 // pred_fallthru
        _
    $region6: #{tpu_custom_call.1} parent=1 // loop_footer
      %s25 = sadd.s32 1, %s21
    $region7: #{tpu_custom_call.1} parent=1 // loop_footer_branch
      %20 = sbr.rel target = $region3
    $region8: #{tpu_custom_call.1} parent=1 // loop_exit
      _
    %1394 = vsyncpa [#allocation3], 1
    %s1395 = scalar_lea.sflag [#allocation3], 1
    %1396 = vsyncpa %s1395, 1

// kernel: tpu_custom_call.1
$region0: #{tpu_custom_call.1}
  #allocation0 [shape = 'u32[]', space=smem, size = 0x4, offset = 0x4, fixed_abs, tag = 'smem constant byte address 0x4 - core index']
  #allocation1 [shape = 'u32[144,128]{1,0:T(1,128)}', space=vmem, size = 0x12000, scoped, tag = 'internal scratch']
  %s0 = inlined_call_operand.vmem [shape: f32[2,8,32], index: 0, kind: input, shape index: {}]
  %s1 = inlined_call_operand.vmem [shape: f32[1,32], index: 1, kind: input, shape index: {}]
  %s2 = inlined_call_operand.vmem [shape: f32[1,32], index: 2, kind: input, shape index: {}]
  %s3 = inlined_call_operand.vmem [shape: bf16[32,96], index: 3, kind: input, shape index: {}]
  %s4 = inlined_call_operand.vmem [shape: bf16[32,32], index: 4, kind: input, shape index: {}]
  %s5 = inlined_call_operand.vmem [shape: f32[1,32], index: 5, kind: input, shape index: {}]
  %s6 = inlined_call_operand.vmem [shape: f32[1,32], index: 6, kind: input, shape index: {}]
  %s7 = inlined_call_operand.vmem [shape: f32[1,32], index: 7, kind: input, shape index: {}]
  %s8 = inlined_call_operand.vmem [shape: bf16[32,128], index: 8, kind: input, shape index: {}]
  %s9 = inlined_call_operand.vmem [shape: f32[1,128], index: 9, kind: input, shape index: {}]
  %s10 = inlined_call_operand.vmem [shape: bf16[128,32], index: 10, kind: input, shape index: {}]
  %s11 = inlined_call_operand.vmem [shape: f32[1,32], index: 11, kind: input, shape index: {}]
  %s12 = inlined_call_operand.hbm [shape: f32[2,8,32], index: 12, kind: output, shape index: {}]
  %s13 = sld [smem:[#allocation0]]
  $region81: #{tpu_custom_call.1} parent=0
    _
  %s15 = ssub.s32 1, %s13
  %s16 = scalar_select 0, %s15, %s13
  $region1: #{tpu_custom_call.1} parent=0
    #allocation2 [shape = 'u8[8192]{0}', space=vmem, size = 0x2000, scoped, tag = 'output window, operand 0']
    #allocation3 [shape = 's32[2]{0}', space=sflag, size = 0x8, scoped, tag = 'scoped memory for tpu_custom_call.1']
    %17 = vsyncpa [#allocation3], 0
    %s18 = scalar_lea.sflag [#allocation3], 1
    %19 = vsyncpa %s18, 0
    loop: start=0, step=1, limit=4
    $region2: #{tpu_custom_call.1} parent=1 // loop_pre_header
      _
    $region3: #{tpu_custom_call.1} parent=1 // loop_header
      %s21 = sphi 0, %s25
      %p22 = scmp.ge.s32.totalorder %s21, 4
      %s31 = sphi 0, %s33
      %s34 = sphi 0, %s31
      %s35 = sphi 0, %s34
      %s51 = sphi 0, %s35
      %s55 = sphi 0, %s55
      %s57 = sphi 0, %s55
      %s58 = sphi 0, %s57
      %s72 = sphi 0, %s58
      %s76 = sphi 0, %s76
      %s78 = sphi 0, %s76
      %s79 = sphi 0, %s78
      %s93 = sphi 0, %s79
      %s97 = sphi 0, %s97
      %s99 = sphi 0, %s97
      %s100 = sphi 0, %s99
      %s114 = sphi 0, %s100
      %s118 = sphi 0, %s118
      %s120 = sphi 0, %s118
      %s121 = sphi 0, %s120
      %s135 = sphi 0, %s121
      %s139 = sphi 0, %s139
      %s141 = sphi 0, %s139
      %s142 = sphi 0, %s141
      %s156 = sphi 0, %s142
      %s160 = sphi 0, %s160
      %s162 = sphi 0, %s160
      %s163 = sphi 0, %s162
      %s177 = sphi 0, %s163
      %s181 = sphi 0, %s181
      %s183 = sphi 0, %s181
      %s184 = sphi 0, %s183
      %s198 = sphi 0, %s184
      %s202 = sphi 0, %s202
      %s204 = sphi 0, %s202
      %s205 = sphi 0, %s204
      %s219 = sphi 0, %s205
      %s223 = sphi 0, %s223
      %s225 = sphi 0, %s223
      %s226 = sphi 0, %s225
      %s240 = sphi 0, %s226
      %s244 = sphi 0, %s244
      %s246 = sphi 0, %s244
      %s247 = sphi 0, %s246
      %s261 = sphi 0, %s247
      %s265 = sphi 0, %s265
      %s267 = sphi 0, %s265
      %s268 = sphi 0, %s267
      %s282 = sphi 0, %s268
      %s288 = sphi 0, %s290
      %s291 = sphi 0, %s288
      %s292 = sphi 0, %s291
      %s308 = sphi 0, %s292
    $region4: #{tpu_custom_call.1} parent=1 // loop_header_branch
      %24 = sbr.rel (%p22) target = $region8
    $region5: #{tpu_custom_call.1} parent=1 // loop_body
      %s26 = ssub.s32 %s21, 1
      %s27 = ssub.s32 %s21, 2
      %s28 = sadd.s32 %s21, 1
      %s29 = ssub.s32 %s21, %s28
      %p30 = scmp.eq.s32.totalorder %s29, 0
      %s32 = sadd.s32 %s31, 1
      %s33 = scalar_select %p30, %s31, %s32
      %p36 = pneg %p30
      %p37 = scmp.eq.s32.totalorder %s21, 1
      %p38 = por %p36, %p37
      %p39 = scmp.ne.s32.totalorder %s31, %s34
      %p40 = scmp.eq.s32.totalorder %s21, 0
      %p41 = por %p39, %p40
      %p42 = scmp.ne.s32.totalorder %s31, %s34
      %p43 = scmp.eq.s32.totalorder %s26, 1
      %p44 = por %p42, %p43
      %p45 = scmp.ne.s32.totalorder %s34, %s35
      %p46 = scmp.eq.s32.totalorder %s26, 0
      %p47 = por %p45, %p46
      %p48 = scmp.ne.s32.totalorder %s34, %s35
      %p49 = scmp.eq.s32.totalorder %s27, 1
      %p50 = por %p48, %p49
      %p52 = scmp.ne.s32.totalorder %s35, %s51
      %p53 = scmp.eq.s32.totalorder %s27, 0
      %p54 = por %p52, %p53
      %s56 = sadd.s32 %s55, 1
      %p59 = scmp.eq.s32.totalorder %s21, 1
      %p60 = scmp.ne.s32.totalorder %s55, %s57
      %p61 = scmp.eq.s32.totalorder %s21, 0
      %p62 = por %p60, %p61
      %p63 = scmp.ne.s32.totalorder %s55, %s57
      %p64 = scmp.eq.s32.totalorder %s26, 1
      %p65 = por %p63, %p64
      %p66 = scmp.ne.s32.totalorder %s57, %s58
      %p67 = scmp.eq.s32.totalorder %s26, 0
      %p68 = por %p66, %p67
      %p69 = scmp.ne.s32.totalorder %s57, %s58
      %p70 = scmp.eq.s32.totalorder %s27, 1
      %p71 = por %p69, %p70
      %p73 = scmp.ne.s32.totalorder %s58, %s72
      %p74 = scmp.eq.s32.totalorder %s27, 0
      %p75 = por %p73, %p74
      %s77 = sadd.s32 %s76, 1
      %p80 = scmp.eq.s32.totalorder %s21, 1
      %p81 = scmp.ne.s32.totalorder %s76, %s78
      %p82 = scmp.eq.s32.totalorder %s21, 0
      %p83 = por %p81, %p82
      %p84 = scmp.ne.s32.totalorder %s76, %s78
      %p85 = scmp.eq.s32.totalorder %s26, 1
      %p86 = por %p84, %p85
      %p87 = scmp.ne.s32.totalorder %s78, %s79
      %p88 = scmp.eq.s32.totalorder %s26, 0
      %p89 = por %p87, %p88
      %p90 = scmp.ne.s32.totalorder %s78, %s79
      %p91 = scmp.eq.s32.totalorder %s27, 1
      %p92 = por %p90, %p91
      %p94 = scmp.ne.s32.totalorder %s79, %s93
      %p95 = scmp.eq.s32.totalorder %s27, 0
      %p96 = por %p94, %p95
      %s98 = sadd.s32 %s97, 1
      %p101 = scmp.eq.s32.totalorder %s21, 1
      %p102 = scmp.ne.s32.totalorder %s97, %s99
      %p103 = scmp.eq.s32.totalorder %s21, 0
      %p104 = por %p102, %p103
      %p105 = scmp.ne.s32.totalorder %s97, %s99
      %p106 = scmp.eq.s32.totalorder %s26, 1
      %p107 = por %p105, %p106
      %p108 = scmp.ne.s32.totalorder %s99, %s100
      %p109 = scmp.eq.s32.totalorder %s26, 0
      %p110 = por %p108, %p109
      %p111 = scmp.ne.s32.totalorder %s99, %s100
      %p112 = scmp.eq.s32.totalorder %s27, 1
      %p113 = por %p111, %p112
      %p115 = scmp.ne.s32.totalorder %s100, %s114
      %p116 = scmp.eq.s32.totalorder %s27, 0
      %p117 = por %p115, %p116
      %s119 = sadd.s32 %s118, 1
      %p122 = scmp.eq.s32.totalorder %s21, 1
      %p123 = scmp.ne.s32.totalorder %s118, %s120
      %p124 = scmp.eq.s32.totalorder %s21, 0
      %p125 = por %p123, %p124
      %p126 = scmp.ne.s32.totalorder %s118, %s120
      %p127 = scmp.eq.s32.totalorder %s26, 1
      %p128 = por %p126, %p127
      %p129 = scmp.ne.s32.totalorder %s120, %s121
      %p130 = scmp.eq.s32.totalorder %s26, 0
      %p131 = por %p129, %p130
      %p132 = scmp.ne.s32.totalorder %s120, %s121
      %p133 = scmp.eq.s32.totalorder %s27, 1
      %p134 = por %p132, %p133
      %p136 = scmp.ne.s32.totalorder %s121, %s135
      %p137 = scmp.eq.s32.totalorder %s27, 0
      %p138 = por %p136, %p137
      %s140 = sadd.s32 %s139, 1
      %p143 = scmp.eq.s32.totalorder %s21, 1
      %p144 = scmp.ne.s32.totalorder %s139, %s141
      %p145 = scmp.eq.s32.totalorder %s21, 0
      %p146 = por %p144, %p145
      %p147 = scmp.ne.s32.totalorder %s139, %s141
      %p148 = scmp.eq.s32.totalorder %s26, 1
      %p149 = por %p147, %p148
      %p150 = scmp.ne.s32.totalorder %s141, %s142
      %p151 = scmp.eq.s32.totalorder %s26, 0
      %p152 = por %p150, %p151
      %p153 = scmp.ne.s32.totalorder %s141, %s142
      %p154 = scmp.eq.s32.totalorder %s27, 1
      %p155 = por %p153, %p154
      %p157 = scmp.ne.s32.totalorder %s142, %s156
      %p158 = scmp.eq.s32.totalorder %s27, 0
      %p159 = por %p157, %p158
      %s161 = sadd.s32 %s160, 1
      %p164 = scmp.eq.s32.totalorder %s21, 1
      %p165 = scmp.ne.s32.totalorder %s160, %s162
      %p166 = scmp.eq.s32.totalorder %s21, 0
      %p167 = por %p165, %p166
      %p168 = scmp.ne.s32.totalorder %s160, %s162
      %p169 = scmp.eq.s32.totalorder %s26, 1
      %p170 = por %p168, %p169
      %p171 = scmp.ne.s32.totalorder %s162, %s163
      %p172 = scmp.eq.s32.totalorder %s26, 0
      %p173 = por %p171, %p172
      %p174 = scmp.ne.s32.totalorder %s162, %s163
      %p175 = scmp.eq.s32.totalorder %s27, 1
      %p176 = por %p174, %p175
      %p178 = scmp.ne.s32.totalorder %s163, %s177
      %p179 = scmp.eq.s32.totalorder %s27, 0
      %p180 = por %p178, %p179
      %s182 = sadd.s32 %s181, 1
      %p185 = scmp.eq.s32.totalorder %s21, 1
      %p186 = scmp.ne.s32.totalorder %s181, %s183
      %p187 = scmp.eq.s32.totalorder %s21, 0
      %p188 = por %p186, %p187
      %p189 = scmp.ne.s32.totalorder %s181, %s183
      %p190 = scmp.eq.s32.totalorder %s26, 1
      %p191 = por %p189, %p190
      %p192 = scmp.ne.s32.totalorder %s183, %s184
      %p193 = scmp.eq.s32.totalorder %s26, 0
      %p194 = por %p192, %p193
      %p195 = scmp.ne.s32.totalorder %s183, %s184
      %p196 = scmp.eq.s32.totalorder %s27, 1
      %p197 = por %p195, %p196
      %p199 = scmp.ne.s32.totalorder %s184, %s198
      %p200 = scmp.eq.s32.totalorder %s27, 0
      %p201 = por %p199, %p200
      %s203 = sadd.s32 %s202, 1
      %p206 = scmp.eq.s32.totalorder %s21, 1
      %p207 = scmp.ne.s32.totalorder %s202, %s204
      %p208 = scmp.eq.s32.totalorder %s21, 0
      %p209 = por %p207, %p208
      %p210 = scmp.ne.s32.totalorder %s202, %s204
      %p211 = scmp.eq.s32.totalorder %s26, 1
      %p212 = por %p210, %p211
      %p213 = scmp.ne.s32.totalorder %s204, %s205
      %p214 = scmp.eq.s32.totalorder %s26, 0
      %p215 = por %p213, %p214
      %p216 = scmp.ne.s32.totalorder %s204, %s205
      %p217 = scmp.eq.s32.totalorder %s27, 1
      %p218 = por %p216, %p217
      %p220 = scmp.ne.s32.totalorder %s205, %s219
      %p221 = scmp.eq.s32.totalorder %s27, 0
      %p222 = por %p220, %p221
      %s224 = sadd.s32 %s223, 1
      %p227 = scmp.eq.s32.totalorder %s21, 1
      %p228 = scmp.ne.s32.totalorder %s223, %s225
      %p229 = scmp.eq.s32.totalorder %s21, 0
      %p230 = por %p228, %p229
      %p231 = scmp.ne.s32.totalorder %s223, %s225
      %p232 = scmp.eq.s32.totalorder %s26, 1
      %p233 = por %p231, %p232
      %p234 = scmp.ne.s32.totalorder %s225, %s226
      %p235 = scmp.eq.s32.totalorder %s26, 0
      %p236 = por %p234, %p235
      %p237 = scmp.ne.s32.totalorder %s225, %s226
      %p238 = scmp.eq.s32.totalorder %s27, 1
      %p239 = por %p237, %p238
      %p241 = scmp.ne.s32.totalorder %s226, %s240
      %p242 = scmp.eq.s32.totalorder %s27, 0
      %p243 = por %p241, %p242
      %s245 = sadd.s32 %s244, 1
      %p248 = scmp.eq.s32.totalorder %s21, 1
      %p249 = scmp.ne.s32.totalorder %s244, %s246
      %p250 = scmp.eq.s32.totalorder %s21, 0
      %p251 = por %p249, %p250
      %p252 = scmp.ne.s32.totalorder %s244, %s246
      %p253 = scmp.eq.s32.totalorder %s26, 1
      %p254 = por %p252, %p253
      %p255 = scmp.ne.s32.totalorder %s246, %s247
      %p256 = scmp.eq.s32.totalorder %s26, 0
      %p257 = por %p255, %p256
      %p258 = scmp.ne.s32.totalorder %s246, %s247
      %p259 = scmp.eq.s32.totalorder %s27, 1
      %p260 = por %p258, %p259
      %p262 = scmp.ne.s32.totalorder %s247, %s261
      %p263 = scmp.eq.s32.totalorder %s27, 0
      %p264 = por %p262, %p263
      %s266 = sadd.s32 %s265, 1
      %p269 = scmp.eq.s32.totalorder %s21, 1
      %p270 = scmp.ne.s32.totalorder %s265, %s267
      %p271 = scmp.eq.s32.totalorder %s21, 0
      %p272 = por %p270, %p271
      %p273 = scmp.ne.s32.totalorder %s265, %s267
      %p274 = scmp.eq.s32.totalorder %s26, 1
      %p275 = por %p273, %p274
      %p276 = scmp.ne.s32.totalorder %s267, %s268
      %p277 = scmp.eq.s32.totalorder %s26, 0
      %p278 = por %p276, %p277
      %p279 = scmp.ne.s32.totalorder %s267, %s268
      %p280 = scmp.eq.s32.totalorder %s27, 1
      %p281 = por %p279, %p280
      %p283 = scmp.ne.s32.totalorder %s268, %s282
      %p284 = scmp.eq.s32.totalorder %s27, 0
      %p285 = por %p283, %p284
      %s286 = ssub.s32 %s21, %s28
      %p287 = scmp.eq.s32.totalorder %s286, 0
      %s289 = sadd.s32 %s288, 1
      %s290 = scalar_select %p287, %s288, %s289
      %p293 = pneg %p287
      %p294 = scmp.eq.s32.totalorder %s21, 1
      %p295 = por %p293, %p294
      %p296 = scmp.ne.s32.totalorder %s288, %s291
      %p297 = scmp.eq.s32.totalorder %s21, 0
      %p298 = por %p296, %p297
      %p299 = scmp.ne.s32.totalorder %s288, %s291
      %p300 = scmp.eq.s32.totalorder %s26, 1
      %p301 = por %p299, %p300
      %p302 = scmp.ne.s32.totalorder %s291, %s292
      %p303 = scmp.eq.s32.totalorder %s26, 0
      %p304 = por %p302, %p303
      %p305 = scmp.ne.s32.totalorder %s291, %s292
      %p306 = scmp.eq.s32.totalorder %s27, 1
      %p307 = por %p305, %p306
      %p309 = scmp.ne.s32.totalorder %s292, %s308
      %p310 = scmp.eq.s32.totalorder %s27, 0
      %p311 = por %p309, %p310
      %p312 = scmp.le.s32.totalorder 1, %s21
      %p313 = scmp.lt.s32.totalorder %s21, 3
      %p314 = pnand %p312, %p313
      %p315 = pneg %p314
      // Predicated region
      $region9: #{tpu_custom_call.1} parent=5 // pred_check
        _
      $region10: #{tpu_custom_call.1} parent=5 // pred_check_branch
        %317 = sbr.rel (%p314) target = $region12
      $region11: #{tpu_custom_call.1} parent=5 // pred_region
        %s318 = ssub.s32 %s21, 1
        // Predicated region
        $region13: #{tpu_custom_call.1} parent=11 // pred_check
          %p319 = pneg %p68
        $region14: #{tpu_custom_call.1} parent=11 // pred_check_branch
          %321 = sbr.rel (%p319) target = $region16
        $region15: #{tpu_custom_call.1} parent=11 // pred_region
          _
        $region16: #{tpu_custom_call.1} parent=11 // pred_fallthru
          _
        // Predicated region
        $region17: #{tpu_custom_call.1} parent=11 // pred_check
          %p322 = pneg %p89
        $region18: #{tpu_custom_call.1} parent=11 // pred_check_branch
          %324 = sbr.rel (%p322) target = $region20
        $region19: #{tpu_custom_call.1} parent=11 // pred_region
          _
        $region20: #{tpu_custom_call.1} parent=11 // pred_fallthru
          _
        // Predicated region
        $region21: #{tpu_custom_call.1} parent=11 // pred_check
          %p325 = pneg %p110
        $region22: #{tpu_custom_call.1} parent=11 // pred_check_branch
          %327 = sbr.rel (%p325) target = $region24
        $region23: #{tpu_custom_call.1} parent=11 // pred_region
          _
        $region24: #{tpu_custom_call.1} parent=11 // pred_fallthru
          _
        // Predicated region
        $region25: #{tpu_custom_call.1} parent=11 // pred_check
          %p328 = pneg %p131
        $region26: #{tpu_custom_call.1} parent=11 // pred_check_branch
          %330 = sbr.rel (%p328) target = $region28
        $region27: #{tpu_custom_call.1} parent=11 // pred_region
          _
        $region28: #{tpu_custom_call.1} parent=11 // pred_fallthru
          _
        // Predicated region
        $region29: #{tpu_custom_call.1} parent=11 // pred_check
          %p331 = pneg %p152
        $region30: #{tpu_custom_call.1} parent=11 // pred_check_branch
          %333 = sbr.rel (%p331) target = $region32
        $region31: #{tpu_custom_call.1} parent=11 // pred_region
          _
        $region32: #{tpu_custom_call.1} parent=11 // pred_fallthru
          _
        // Predicated region
        $region33: #{tpu_custom_call.1} parent=11 // pred_check
          %p334 = pneg %p173
        $region34: #{tpu_custom_call.1} parent=11 // pred_check_branch
          %336 = sbr.rel (%p334) target = $region36
        $region35: #{tpu_custom_call.1} parent=11 // pred_region
          _
        $region36: #{tpu_custom_call.1} parent=11 // pred_fallthru
          _
        // Predicated region
        $region37: #{tpu_custom_call.1} parent=11 // pred_check
          %p337 = pneg %p194
        $region38: #{tpu_custom_call.1} parent=11 // pred_check_branch
          %339 = sbr.rel (%p337) target = $region40
        $region39: #{tpu_custom_call.1} parent=11 // pred_region
          _
        $region40: #{tpu_custom_call.1} parent=11 // pred_fallthru
          _
        // Predicated region
        $region41: #{tpu_custom_call.1} parent=11 // pred_check
          %p340 = pneg %p215
        $region42: #{tpu_custom_call.1} parent=11 // pred_check_branch
          %342 = sbr.rel (%p340) target = $region44
        $region43: #{tpu_custom_call.1} parent=11 // pred_region
          _
        $region44: #{tpu_custom_call.1} parent=11 // pred_fallthru
          _
        // Predicated region
        $region45: #{tpu_custom_call.1} parent=11 // pred_check
          %p343 = pneg %p236
        $region46: #{tpu_custom_call.1} parent=11 // pred_check_branch
          %345 = sbr.rel (%p343) target = $region48
        $region47: #{tpu_custom_call.1} parent=11 // pred_region
          _
        $region48: #{tpu_custom_call.1} parent=11 // pred_fallthru
          _
        // Predicated region
        $region49: #{tpu_custom_call.1} parent=11 // pred_check
          %p346 = pneg %p257
        $region50: #{tpu_custom_call.1} parent=11 // pred_check_branch
          %348 = sbr.rel (%p346) target = $region52
        $region51: #{tpu_custom_call.1} parent=11 // pred_region
          _
        $region52: #{tpu_custom_call.1} parent=11 // pred_fallthru
          _
        // Predicated region
        $region53: #{tpu_custom_call.1} parent=11 // pred_check
          %p349 = pneg %p278
        $region54: #{tpu_custom_call.1} parent=11 // pred_check_branch
          %351 = sbr.rel (%p349) target = $region56
        $region55: #{tpu_custom_call.1} parent=11 // pred_region
          _
        $region56: #{tpu_custom_call.1} parent=11 // pred_fallthru
          _
      $region12: #{tpu_custom_call.1} parent=5 // pred_fallthru
        _
      %p352 = scmp.lt.s32.totalorder %s21, 2
      // Predicated region
      $region57: #{tpu_custom_call.1} parent=5 // pred_check
        %p353 = pneg %p352
      $region58: #{tpu_custom_call.1} parent=5 // pred_check_branch
        %355 = sbr.rel (%p353) target = $region60
      $region59: #{tpu_custom_call.1} parent=5 // pred_region
        // Predicated region
        $region61: #{tpu_custom_call.1} parent=59 // pred_check
          %p356 = pneg %p41
        $region62: #{tpu_custom_call.1} parent=59 // pred_check_branch
          %358 = sbr.rel (%p356) target = $region64
        $region63: #{tpu_custom_call.1} parent=59 // pred_region
          %p359 = scmp.lt.s32.totalorder %s21, 1
          %s360 = scalar_select %p359, %s21, 1
          %s361 = smul.addr %s360, 8
          %s362 = scalar_lea.vmem %s0, %s361
        $region64: #{tpu_custom_call.1} parent=59 // pred_fallthru
          _
      $region60: #{tpu_custom_call.1} parent=5 // pred_fallthru
        _
      %p363 = scmp.le.s32.totalorder 1, %s21
      %p364 = scmp.lt.s32.totalorder %s21, 3
      %p365 = pnand %p363, %p364
      %p366 = pneg %p365
      // Predicated region
      $region65: #{tpu_custom_call.1} parent=5 // pred_check
        _
      $region66: #{tpu_custom_call.1} parent=5 // pred_check_branch
        %368 = sbr.rel (%p365) target = $region68
      $region67: #{tpu_custom_call.1} parent=5 // pred_region
        %s369 = ssub.s32 %s21, 1
        %p370 = scmp.lt.s32.totalorder %s26, 1
        %s371 = scalar_select %p370, %s26, 1
        %s372 = smul.addr %s371, 8
        %s373 = scalar_lea.vmem %s0, %s372
        %p374 = pneg %p47
        %p375 = pneg %p44
        %p376 = pneg %p68
        %p377 = pneg %p65
        %p378 = pneg %p89
        %p379 = pneg %p86
        %p380 = pneg %p110
        %p381 = pneg %p107
        %p382 = pneg %p131
        %p383 = pneg %p128
        %p384 = pneg %p152
        %p385 = pneg %p149
        %p386 = pneg %p173
        %p387 = pneg %p170
        %p388 = pneg %p194
        %p389 = pneg %p191
        %p390 = pneg %p215
        %p391 = pneg %p212
        %p392 = pneg %p236
        %p393 = pneg %p233
        %p394 = pneg %p257
        %p395 = pneg %p254
        %p396 = pneg %p278
        %p397 = pneg %p275
        %p398 = pneg %p304
        %p399 = pneg %p301
        %s400 = sand.u32 %s291, 1
        %s401 = scalar_lea.sflag [#allocation3], %s400
        %s402 = sand.u32 %s291, 1
        %s403 = smul.addr %s402, 8
        %s404 = scalar_lea.vmem [#allocation2], %s403
        %p405 = scmp.lt.s32.totalorder %s26, 1
        %s406 = scalar_select %p405, %s26, 1
        %s407 = smul.addr %s406, 8
        %s408 = scalar_lea.vmem %s0, %s407
        %v410 = vld [vmem:[%s408] sm:$0xff]
        %v411 = vld [vmem:[%s1] sm:$0x1]
        %v412 = vld [vmem:[%s2] sm:$0x1]
        %vm413 = vcmask 261120
        %v414 = vsel %vm413, %v410, 0.0
        %415 = vadd.xlane.f32.xlu0 %v414
        %v416 = vpop.xlane.xlu0 %415
        %v417 = vrcp.pop 32.0
        %v418 = vmul.f32 %v416, %v417
        %v419 = vsub.f32 %v410, %v418
        %v420 = vmul.f32 %v419, %v419
        %v421 = vsel %vm413, %v420, 0.0
        %422 = vadd.xlane.f32.xlu0 %v421
        %v423 = vpop.xlane.xlu0 %422
        %v424 = vmul.f32 %v423, %v417
        %v425 = vadd.f32 %v424, 1e-05
        %v426 = vrsqrt.pop %v425
        %v427 = vmul.f32 %v419, %v426
        %v429 = vlaneseq
        %v430 = vshrl.u32 %v429, 7
        %v431 = vsub.s32 0, %v430
        %v432 = vrot.slane %v411, %v431
        %v434 = vmul.f32 %v427, %v432
        %v436 = vlaneseq
        %v437 = vshrl.u32 %v436, 7
        %v438 = vsub.s32 0, %v437
        %v439 = vrot.slane %v412, %v438
        %v441 = vadd.f32 %v434, %v439
        %v442 = vpack.c.bf16 %v441, %v441
        %v443 = vld [vmem:[%s3] sm:$0xf]
        %v444 = vld [vmem:[%s3 + $0x4] sm:$0xf]
        %v445 = vld [vmem:[%s3 + $0x8] sm:$0xf]
        %v446 = vld [vmem:[%s3 + $0xc] sm:$0xf]
        %v451 = vunpack.c.l.b16 %v443
        %v452 = vunpack.c.l.b16 %v444
        %v453 = vunpack.c.l.b16 %v445
        %v454 = vunpack.c.l.b16 %v446
        %v455 = vpack.c.b16 %v452, %v451
        %v456 = vpack.c.b16 %v454, %v453
        %v460 = vsel %vm413, %v442, 0
        %462 = vmatprep.subr.bf16.mxu0 0
        %463 = vmatpush1.bf16.msra.mxu0 0
        %464 = vmatprep.subr.bf16.mxu0 0
        %465 = vmatpush1.bf16.msra.mxu0 0
        %466 = vmatprep.subr.bf16.mxu0 0
        %467 = vmatpush1.bf16.msra.mxu0 0
        %468 = vmatprep.subr.bf16.mxu0 0
        %469 = vmatpush1.bf16.msra.mxu0 0
        %470 = vmatprep.subr.bf16.mxu0 0
        %471 = vmatpush1.bf16.msra.mxu0 0
        %472 = vmatprep.subr.bf16.mxu0 0
        %473 = vmatpush1.bf16.msra.mxu0 0
        %474 = vmatprep.subr.bf16.mxu0 0
        %475 = vmatpush1.bf16.msra.mxu0 %v456
        %476 = vmatprep.subr.bf16.mxu0 0
        %477 = vmatpush1.bf16.msra.mxu0 %v455
        %478 = vmatprep.subr.bf16.mxu0 0
        %479 = vmatpush2.bf16.msra.mxu0 0
        %480 = vmatprep.subr.bf16.mxu0 0
        %481 = vmatpush2.bf16.msra.mxu0 0
        %482 = vmatprep.subr.bf16.mxu0 0
        %483 = vmatpush2.bf16.msra.mxu0 0
        %484 = vmatprep.subr.bf16.mxu0 0
        %485 = vmatpush2.bf16.msra.mxu0 0
        %486 = vmatprep.subr.bf16.mxu0 0
        %487 = vmatpush2.bf16.msra.mxu0 0
        %488 = vmatprep.subr.bf16.mxu0 0
        %489 = vmatpush2.bf16.msra.mxu0 0
        %490 = vmatprep.subr.bf16.mxu0 0
        %491 = vmatpush2.bf16.msra.mxu0 0
        %492 = vmatprep.subr.bf16.mxu0 0
        %493 = vmatpush2.bf16.msra.mxu0 0
        %494 = vmatprep.mubr.bf16.mxu0 0
        %495 = vmatmul.mubr.bf16.gmra.mxu0 %v460
        %v496 = vpop.f32.mrf.mxu0
        %v497 = vadd.f32 0.0, %v496
        %v498 = vpop.f32.mrf.mxu0
        %v499 = vpop.f32.mrf.mxu0
        %v500 = vpop.f32.mrf.mxu0
        %501 = vdwg.mxu0
        %v502 = vpack.c.bf16 %v497, %v497
        %504 = vrot.lane.b32.xlu0 %v502, 96
        %v505 = vpop.permute.xlu0 %504
        %vm506 = vcmask 64512
        %v508 = vsel %vm506, %v502, 0
        %v511 = vsel %vm506, %v505, 0
        %513 = vmatprep.subr.bf16.mxu0 0
        %514 = vmatpush1.bf16.xpose.msra.mxu0 0
        %515 = vmatprep.subr.bf16.mxu0 0
        %516 = vmatpush1.bf16.xpose.msra.mxu0 0
        %517 = vmatprep.subr.bf16.mxu0 0
        %518 = vmatpush1.bf16.xpose.msra.mxu0 0
        %519 = vmatprep.subr.bf16.mxu0 0
        %520 = vmatpush1.bf16.xpose.msra.mxu0 0
        %521 = vmatprep.subr.bf16.mxu0 0
        %522 = vmatpush1.bf16.xpose.msra.mxu0 0
        %523 = vmatprep.subr.bf16.mxu0 0
        %524 = vmatpush1.bf16.xpose.msra.mxu0 0
        %525 = vmatprep.subr.bf16.mxu0 0
        %526 = vmatpush1.bf16.xpose.msra.mxu0 0
        %527 = vmatprep.subr.bf16.mxu0 0
        %528 = vmatpush1.bf16.xpose.msra.mxu0 %v511
        %529 = vmatprep.subr.bf16.mxu0 0
        %530 = vmatpush2.bf16.xpose.msra.mxu0 0
        %531 = vmatprep.subr.bf16.mxu0 0
        %532 = vmatpush2.bf16.xpose.msra.mxu0 0
        %533 = vmatprep.subr.bf16.mxu0 0
        %534 = vmatpush2.bf16.xpose.msra.mxu0 0
        %535 = vmatprep.subr.bf16.mxu0 0
        %536 = vmatpush2.bf16.xpose.msra.mxu0 0
        %537 = vmatprep.subr.bf16.mxu0 0
        %538 = vmatpush2.bf16.xpose.msra.mxu0 0
        %539 = vmatprep.subr.bf16.mxu0 0
        %540 = vmatpush2.bf16.xpose.msra.mxu0 0
        %541 = vmatprep.subr.bf16.mxu0 0
        %542 = vmatpush2.bf16.xpose.msra.mxu0 0
        %543 = vmatprep.subr.bf16.mxu0 0
        %544 = vmatpush2.bf16.xpose.msra.mxu0 0
        %545 = vmatprep.mubr.bf16.mxu0 0
        %546 = vmatmul.mubr.bf16.gmra.mxu0 %v508
        %v547 = vpop.f32.mrf.mxu0
        %v548 = vadd.f32 0.0, %v547
        %v549 = vpop.f32.mrf.mxu0
        %v550 = vpop.f32.mrf.mxu0
        %v551 = vpop.f32.mrf.mxu0
        %552 = vdwg.mxu0
        %v553 = vsel %vm506, %v548, -inf
        %554 = vmax.xlane.f32.xlu0 %v553
        %v555 = vpop.xlane.xlu0 %554
        %v556 = vsub.f32 %v548, %v555
        %v557 = vmul.f32 %v556, 1.442695
        %v558 = vpow.pop %v557
        %v559 = vsel %vm506, %v558, 0.0
        %560 = vadd.xlane.f32.xlu0 %v559
        %v561 = vpop.xlane.xlu0 %560
        %v562 = vrcp.pop %v561
        %v563 = vpack.c.bf16 %v558, %v558
        %564 = vrot.lane.b32.xlu0 %v502, 64
        %v565 = vpop.permute.xlu0 %564
        %v567 = vsel %vm506, %v563, 0
        %vm569 = vcmask 1043456
        %v571 = vsel %vm569, %v565, 0
        %573 = vmatprep.subr.bf16.mxu0 0
        %574 = vmatpush1.bf16.msra.mxu0 0
        %575 = vmatprep.subr.bf16.mxu0 0
        %576 = vmatpush1.bf16.msra.mxu0 0
        %577 = vmatprep.subr.bf16.mxu0 0
        %578 = vmatpush1.bf16.msra.mxu0 0
        %579 = vmatprep.subr.bf16.mxu0 0
        %580 = vmatpush1.bf16.msra.mxu0 0
        %581 = vmatprep.subr.bf16.mxu0 0
        %582 = vmatpush1.bf16.msra.mxu0 0
        %583 = vmatprep.subr.bf16.mxu0 0
        %584 = vmatpush1.bf16.msra.mxu0 0
        %585 = vmatprep.subr.bf16.mxu0 0
        %586 = vmatpush1.bf16.msra.mxu0 0
        %587 = vmatprep.subr.bf16.mxu0 0
        %588 = vmatpush1.bf16.msra.mxu0 %v571
        %589 = vmatprep.subr.bf16.mxu0 0
        %590 = vmatpush2.bf16.msra.mxu0 0
        %591 = vmatprep.subr.bf16.mxu0 0
        %592 = vmatpush2.bf16.msra.mxu0 0
        %593 = vmatprep.subr.bf16.mxu0 0
        %594 = vmatpush2.bf16.msra.mxu0 0
        %595 = vmatprep.subr.bf16.mxu0 0
        %596 = vmatpush2.bf16.msra.mxu0 0
        %597 = vmatprep.subr.bf16.mxu0 0
        %598 = vmatpush2.bf16.msra.mxu0 0
        %599 = vmatprep.subr.bf16.mxu0 0
        %600 = vmatpush2.bf16.msra.mxu0 0
        %601 = vmatprep.subr.bf16.mxu0 0
        %602 = vmatpush2.bf16.msra.mxu0 0
        %603 = vmatprep.subr.bf16.mxu0 0
        %604 = vmatpush2.bf16.msra.mxu0 0
        %605 = vmatprep.mubr.bf16.mxu0 0
        %606 = vmatmul.mubr.bf16.gmra.mxu0 %v567
        %v607 = vpop.f32.mrf.mxu0
        %v608 = vadd.f32 0.0, %v607
        %v609 = vpop.f32.mrf.mxu0
        %v610 = vpop.f32.mrf.mxu0
        %v611 = vpop.f32.mrf.mxu0
        %612 = vdwg.mxu0
        %v613 = vmul.f32 %v608, %v562
        %v614 = vpack.c.bf16 %v613, %v613
        %v615 = vld [vmem:[%s4] sm:$0xf]
        %616 = vrot.lane.b32.xlu0 %v502, 120
        %v617 = vpop.permute.xlu0 %616
        %618 = vrot.lane.b32.xlu0 %v502, 88
        %v619 = vpop.permute.xlu0 %618
        %v621 = vsel %vm506, %v617, 0
        %v624 = vsel %vm506, %v619, 0
        %626 = vmatprep.subr.bf16.mxu0 0
        %627 = vmatpush1.bf16.xpose.msra.mxu0 0
        %628 = vmatprep.subr.bf16.mxu0 0
        %629 = vmatpush1.bf16.xpose.msra.mxu0 0
        %630 = vmatprep.subr.bf16.mxu0 0
        %631 = vmatpush1.bf16.xpose.msra.mxu0 0
        %632 = vmatprep.subr.bf16.mxu0 0
        %633 = vmatpush1.bf16.xpose.msra.mxu0 0
        %634 = vmatprep.subr.bf16.mxu0 0
        %635 = vmatpush1.bf16.xpose.msra.mxu0 0
        %636 = vmatprep.subr.bf16.mxu0 0
        %637 = vmatpush1.bf16.xpose.msra.mxu0 0
        %638 = vmatprep.subr.bf16.mxu0 0
        %639 = vmatpush1.bf16.xpose.msra.mxu0 0
        %640 = vmatprep.subr.bf16.mxu0 0
        %641 = vmatpush1.bf16.xpose.msra.mxu0 %v624
        %642 = vmatprep.subr.bf16.mxu0 0
        %643 = vmatpush2.bf16.xpose.msra.mxu0 0
        %644 = vmatprep.subr.bf16.mxu0 0
        %645 = vmatpush2.bf16.xpose.msra.mxu0 0
        %646 = vmatprep.subr.bf16.mxu0 0
        %647 = vmatpush2.bf16.xpose.msra.mxu0 0
        %648 = vmatprep.subr.bf16.mxu0 0
        %649 = vmatpush2.bf16.xpose.msra.mxu0 0
        %650 = vmatprep.subr.bf16.mxu0 0
        %651 = vmatpush2.bf16.xpose.msra.mxu0 0
        %652 = vmatprep.subr.bf16.mxu0 0
        %653 = vmatpush2.bf16.xpose.msra.mxu0 0
        %654 = vmatprep.subr.bf16.mxu0 0
        %655 = vmatpush2.bf16.xpose.msra.mxu0 0
        %656 = vmatprep.subr.bf16.mxu0 0
        %657 = vmatpush2.bf16.xpose.msra.mxu0 0
        %658 = vmatprep.mubr.bf16.mxu0 0
        %659 = vmatmul.mubr.bf16.gmra.mxu0 %v621
        %v660 = vpop.f32.mrf.mxu0
        %v661 = vadd.f32 0.0, %v660
        %v662 = vpop.f32.mrf.mxu0
        %v663 = vpop.f32.mrf.mxu0
        %v664 = vpop.f32.mrf.mxu0
        %665 = vdwg.mxu0
        %v666 = vsel %vm506, %v661, -inf
        %667 = vmax.xlane.f32.xlu0 %v666
        %v668 = vpop.xlane.xlu0 %667
        %v669 = vsub.f32 %v661, %v668
        %v670 = vmul.f32 %v669, 1.442695
        %v671 = vpow.pop %v670
        %v672 = vsel %vm506, %v671, 0.0
        %673 = vadd.xlane.f32.xlu0 %v672
        %v674 = vpop.xlane.xlu0 %673
        %v675 = vrcp.pop %v674
        %v676 = vpack.c.bf16 %v671, %v671
        %677 = vrot.lane.b32.xlu0 %v502, 56
        %v678 = vpop.permute.xlu0 %677
        %v680 = vsel %vm506, %v676, 0
        %v683 = vsel %vm569, %v678, 0
        %685 = vmatprep.subr.bf16.mxu0 0
        %686 = vmatpush1.bf16.msra.mxu0 0
        %687 = vmatprep.subr.bf16.mxu0 0
        %688 = vmatpush1.bf16.msra.mxu0 0
        %689 = vmatprep.subr.bf16.mxu0 0
        %690 = vmatpush1.bf16.msra.mxu0 0
        %691 = vmatprep.subr.bf16.mxu0 0
        %692 = vmatpush1.bf16.msra.mxu0 0
        %693 = vmatprep.subr.bf16.mxu0 0
        %694 = vmatpush1.bf16.msra.mxu0 0
        %695 = vmatprep.subr.bf16.mxu0 0
        %696 = vmatpush1.bf16.msra.mxu0 0
        %697 = vmatprep.subr.bf16.mxu0 0
        %698 = vmatpush1.bf16.msra.mxu0 0
        %699 = vmatprep.subr.bf16.mxu0 0
        %700 = vmatpush1.bf16.msra.mxu0 %v683
        %701 = vmatprep.subr.bf16.mxu0 0
        %702 = vmatpush2.bf16.msra.mxu0 0
        %703 = vmatprep.subr.bf16.mxu0 0
        %704 = vmatpush2.bf16.msra.mxu0 0
        %705 = vmatprep.subr.bf16.mxu0 0
        %706 = vmatpush2.bf16.msra.mxu0 0
        %707 = vmatprep.subr.bf16.mxu0 0
        %708 = vmatpush2.bf16.msra.mxu0 0
        %709 = vmatprep.subr.bf16.mxu0 0
        %710 = vmatpush2.bf16.msra.mxu0 0
        %711 = vmatprep.subr.bf16.mxu0 0
        %712 = vmatpush2.bf16.msra.mxu0 0
        %713 = vmatprep.subr.bf16.mxu0 0
        %714 = vmatpush2.bf16.msra.mxu0 0
        %715 = vmatprep.subr.bf16.mxu0 0
        %716 = vmatpush2.bf16.msra.mxu0 0
        %717 = vmatprep.mubr.bf16.mxu0 0
        %718 = vmatmul.mubr.bf16.gmra.mxu0 %v680
        %v719 = vpop.f32.mrf.mxu0
        %v720 = vadd.f32 0.0, %v719
        %v721 = vpop.f32.mrf.mxu0
        %v722 = vpop.f32.mrf.mxu0
        %v723 = vpop.f32.mrf.mxu0
        %724 = vdwg.mxu0
        %v725 = vmul.f32 %v720, %v675
        %v726 = vpack.c.bf16 %v725, %v725
        %v727 = vld [vmem:[%s4 + $0x4] sm:$0xf]
        %v729 = vsel %vm506, %v726, 0
        %v732 = vsel %vm569, %v727, 0
        %734 = vmatprep.subr.bf16.mxu0 0
        %735 = vmatpush1.bf16.msra.mxu0 0
        %736 = vmatprep.subr.bf16.mxu0 0
        %737 = vmatpush1.bf16.msra.mxu0 0
        %738 = vmatprep.subr.bf16.mxu0 0
        %739 = vmatpush1.bf16.msra.mxu0 0
        %740 = vmatprep.subr.bf16.mxu0 0
        %741 = vmatpush1.bf16.msra.mxu0 0
        %742 = vmatprep.subr.bf16.mxu0 0
        %743 = vmatpush1.bf16.msra.mxu0 0
        %744 = vmatprep.subr.bf16.mxu0 0
        %745 = vmatpush1.bf16.msra.mxu0 0
        %746 = vmatprep.subr.bf16.mxu0 0
        %747 = vmatpush1.bf16.msra.mxu0 0
        %748 = vmatprep.subr.bf16.mxu0 0
        %749 = vmatpush1.bf16.msra.mxu0 %v732
        %750 = vmatprep.subr.bf16.mxu0 0
        %751 = vmatpush2.bf16.msra.mxu0 0
        %752 = vmatprep.subr.bf16.mxu0 0
        %753 = vmatpush2.bf16.msra.mxu0 0
        %754 = vmatprep.subr.bf16.mxu0 0
        %755 = vmatpush2.bf16.msra.mxu0 0
        %756 = vmatprep.subr.bf16.mxu0 0
        %757 = vmatpush2.bf16.msra.mxu0 0
        %758 = vmatprep.subr.bf16.mxu0 0
        %759 = vmatpush2.bf16.msra.mxu0 0
        %760 = vmatprep.subr.bf16.mxu0 0
        %761 = vmatpush2.bf16.msra.mxu0 0
        %762 = vmatprep.subr.bf16.mxu0 0
        %763 = vmatpush2.bf16.msra.mxu0 0
        %764 = vmatprep.subr.bf16.mxu0 0
        %765 = vmatpush2.bf16.msra.mxu0 0
        %766 = vmatprep.mubr.bf16.mxu0 0
        %767 = vmatmul.mubr.bf16.gmra.mxu0 %v729
        %v768 = vpop.f32.mrf.mxu0
        %v769 = vadd.f32 0.0, %v768
        %v770 = vpop.f32.mrf.mxu0
        %v771 = vpop.f32.mrf.mxu0
        %v772 = vpop.f32.mrf.mxu0
        %773 = vdwg.mxu0
        %v775 = vsel %vm506, %v614, 0
        %v778 = vsel %vm569, %v615, 0
        %780 = vmatprep.subr.bf16.mxu0 0
        %781 = vmatpush1.bf16.msra.mxu0 0
        %782 = vmatprep.subr.bf16.mxu0 0
        %783 = vmatpush1.bf16.msra.mxu0 0
        %784 = vmatprep.subr.bf16.mxu0 0
        %785 = vmatpush1.bf16.msra.mxu0 0
        %786 = vmatprep.subr.bf16.mxu0 0
        %787 = vmatpush1.bf16.msra.mxu0 0
        %788 = vmatprep.subr.bf16.mxu0 0
        %789 = vmatpush1.bf16.msra.mxu0 0
        %790 = vmatprep.subr.bf16.mxu0 0
        %791 = vmatpush1.bf16.msra.mxu0 0
        %792 = vmatprep.subr.bf16.mxu0 0
        %793 = vmatpush1.bf16.msra.mxu0 0
        %794 = vmatprep.subr.bf16.mxu0 0
        %795 = vmatpush1.bf16.msra.mxu0 %v778
        %796 = vmatprep.subr.bf16.mxu0 0
        %797 = vmatpush2.bf16.msra.mxu0 0
        %798 = vmatprep.subr.bf16.mxu0 0
        %799 = vmatpush2.bf16.msra.mxu0 0
        %800 = vmatprep.subr.bf16.mxu0 0
        %801 = vmatpush2.bf16.msra.mxu0 0
        %802 = vmatprep.subr.bf16.mxu0 0
        %803 = vmatpush2.bf16.msra.mxu0 0
        %804 = vmatprep.subr.bf16.mxu0 0
        %805 = vmatpush2.bf16.msra.mxu0 0
        %806 = vmatprep.subr.bf16.mxu0 0
        %807 = vmatpush2.bf16.msra.mxu0 0
        %808 = vmatprep.subr.bf16.mxu0 0
        %809 = vmatpush2.bf16.msra.mxu0 0
        %810 = vmatprep.subr.bf16.mxu0 0
        %811 = vmatpush2.bf16.msra.mxu0 0
        %812 = vmatprep.mubr.bf16.mxu0 0
        %813 = vmatmul.mubr.bf16.gmra.mxu0 %v775
        %v814 = vpop.f32.mrf.mxu0
        %v815 = vadd.f32 %v769, %v814
        %v816 = vpop.f32.mrf.mxu0
        %v817 = vpop.f32.mrf.mxu0
        %v818 = vpop.f32.mrf.mxu0
        %819 = vdwg.mxu0
        %820 = vrot.lane.b32.xlu0 %v502, 112
        %v821 = vpop.permute.xlu0 %820
        %822 = vrot.lane.b32.xlu0 %v502, 80
        %v823 = vpop.permute.xlu0 %822
        %v825 = vsel %vm506, %v821, 0
        %v828 = vsel %vm506, %v823, 0
        %830 = vmatprep.subr.bf16.mxu0 0
        %831 = vmatpush1.bf16.xpose.msra.mxu0 0
        %832 = vmatprep.subr.bf16.mxu0 0
        %833 = vmatpush1.bf16.xpose.msra.mxu0 0
        %834 = vmatprep.subr.bf16.mxu0 0
        %835 = vmatpush1.bf16.xpose.msra.mxu0 0
        %836 = vmatprep.subr.bf16.mxu0 0
        %837 = vmatpush1.bf16.xpose.msra.mxu0 0
        %838 = vmatprep.subr.bf16.mxu0 0
        %839 = vmatpush1.bf16.xpose.msra.mxu0 0
        %840 = vmatprep.subr.bf16.mxu0 0
        %841 = vmatpush1.bf16.xpose.msra.mxu0 0
        %842 = vmatprep.subr.bf16.mxu0 0
        %843 = vmatpush1.bf16.xpose.msra.mxu0 0
        %844 = vmatprep.subr.bf16.mxu0 0
        %845 = vmatpush1.bf16.xpose.msra.mxu0 %v828
        %846 = vmatprep.subr.bf16.mxu0 0
        %847 = vmatpush2.bf16.xpose.msra.mxu0 0
        %848 = vmatprep.subr.bf16.mxu0 0
        %849 = vmatpush2.bf16.xpose.msra.mxu0 0
        %850 = vmatprep.subr.bf16.mxu0 0
        %851 = vmatpush2.bf16.xpose.msra.mxu0 0
        %852 = vmatprep.subr.bf16.mxu0 0
        %853 = vmatpush2.bf16.xpose.msra.mxu0 0
        %854 = vmatprep.subr.bf16.mxu0 0
        %855 = vmatpush2.bf16.xpose.msra.mxu0 0
        %856 = vmatprep.subr.bf16.mxu0 0
        %857 = vmatpush2.bf16.xpose.msra.mxu0 0
        %858 = vmatprep.subr.bf16.mxu0 0
        %859 = vmatpush2.bf16.xpose.msra.mxu0 0
        %860 = vmatprep.subr.bf16.mxu0 0
        %861 = vmatpush2.bf16.xpose.msra.mxu0 0
        %862 = vmatprep.mubr.bf16.mxu0 0
        %863 = vmatmul.mubr.bf16.gmra.mxu0 %v825
        %v864 = vpop.f32.mrf.mxu0
        %v865 = vadd.f32 0.0, %v864
        %v866 = vpop.f32.mrf.mxu0
        %v867 = vpop.f32.mrf.mxu0
        %v868 = vpop.f32.mrf.mxu0
        %869 = vdwg.mxu0
        %v870 = vsel %vm506, %v865, -inf
        %871 = vmax.xlane.f32.xlu0 %v870
        %v872 = vpop.xlane.xlu0 %871
        %v873 = vsub.f32 %v865, %v872
        %v874 = vmul.f32 %v873, 1.442695
        %v875 = vpow.pop %v874
        %v876 = vsel %vm506, %v875, 0.0
        %877 = vadd.xlane.f32.xlu0 %v876
        %v878 = vpop.xlane.xlu0 %877
        %v879 = vrcp.pop %v878
        %v880 = vpack.c.bf16 %v875, %v875
        %881 = vrot.lane.b32.xlu0 %v502, 48
        %v882 = vpop.permute.xlu0 %881
        %v884 = vsel %vm506, %v880, 0
        %v887 = vsel %vm569, %v882, 0
        %889 = vmatprep.subr.bf16.mxu0 0
        %890 = vmatpush1.bf16.msra.mxu0 0
        %891 = vmatprep.subr.bf16.mxu0 0
        %892 = vmatpush1.bf16.msra.mxu0 0
        %893 = vmatprep.subr.bf16.mxu0 0
        %894 = vmatpush1.bf16.msra.mxu0 0
        %895 = vmatprep.subr.bf16.mxu0 0
        %896 = vmatpush1.bf16.msra.mxu0 0
        %897 = vmatprep.subr.bf16.mxu0 0
        %898 = vmatpush1.bf16.msra.mxu0 0
        %899 = vmatprep.subr.bf16.mxu0 0
        %900 = vmatpush1.bf16.msra.mxu0 0
        %901 = vmatprep.subr.bf16.mxu0 0
        %902 = vmatpush1.bf16.msra.mxu0 0
        %903 = vmatprep.subr.bf16.mxu0 0
        %904 = vmatpush1.bf16.msra.mxu0 %v887
        %905 = vmatprep.subr.bf16.mxu0 0
        %906 = vmatpush2.bf16.msra.mxu0 0
        %907 = vmatprep.subr.bf16.mxu0 0
        %908 = vmatpush2.bf16.msra.mxu0 0
        %909 = vmatprep.subr.bf16.mxu0 0
        %910 = vmatpush2.bf16.msra.mxu0 0
        %911 = vmatprep.subr.bf16.mxu0 0
        %912 = vmatpush2.bf16.msra.mxu0 0
        %913 = vmatprep.subr.bf16.mxu0 0
        %914 = vmatpush2.bf16.msra.mxu0 0
        %915 = vmatprep.subr.bf16.mxu0 0
        %916 = vmatpush2.bf16.msra.mxu0 0
        %917 = vmatprep.subr.bf16.mxu0 0
        %918 = vmatpush2.bf16.msra.mxu0 0
        %919 = vmatprep.subr.bf16.mxu0 0
        %920 = vmatpush2.bf16.msra.mxu0 0
        %921 = vmatprep.mubr.bf16.mxu0 0
        %922 = vmatmul.mubr.bf16.gmra.mxu0 %v884
        %v923 = vpop.f32.mrf.mxu0
        %v924 = vadd.f32 0.0, %v923
        %v925 = vpop.f32.mrf.mxu0
        %v926 = vpop.f32.mrf.mxu0
        %v927 = vpop.f32.mrf.mxu0
        %928 = vdwg.mxu0
        %v929 = vmul.f32 %v924, %v879
        %v930 = vpack.c.bf16 %v929, %v929
        %v931 = vld [vmem:[%s4 + $0x8] sm:$0xf]
        %v933 = vsel %vm506, %v930, 0
        %v936 = vsel %vm569, %v931, 0
        %938 = vmatprep.subr.bf16.mxu0 0
        %939 = vmatpush1.bf16.msra.mxu0 0
        %940 = vmatprep.subr.bf16.mxu0 0
        %941 = vmatpush1.bf16.msra.mxu0 0
        %942 = vmatprep.subr.bf16.mxu0 0
        %943 = vmatpush1.bf16.msra.mxu0 0
        %944 = vmatprep.subr.bf16.mxu0 0
        %945 = vmatpush1.bf16.msra.mxu0 0
        %946 = vmatprep.subr.bf16.mxu0 0
        %947 = vmatpush1.bf16.msra.mxu0 0
        %948 = vmatprep.subr.bf16.mxu0 0
        %949 = vmatpush1.bf16.msra.mxu0 0
        %950 = vmatprep.subr.bf16.mxu0 0
        %951 = vmatpush1.bf16.msra.mxu0 0
        %952 = vmatprep.subr.bf16.mxu0 0
        %953 = vmatpush1.bf16.msra.mxu0 %v936
        %954 = vmatprep.subr.bf16.mxu0 0
        %955 = vmatpush2.bf16.msra.mxu0 0
        %956 = vmatprep.subr.bf16.mxu0 0
        %957 = vmatpush2.bf16.msra.mxu0 0
        %958 = vmatprep.subr.bf16.mxu0 0
        %959 = vmatpush2.bf16.msra.mxu0 0
        %960 = vmatprep.subr.bf16.mxu0 0
        %961 = vmatpush2.bf16.msra.mxu0 0
        %962 = vmatprep.subr.bf16.mxu0 0
        %963 = vmatpush2.bf16.msra.mxu0 0
        %964 = vmatprep.subr.bf16.mxu0 0
        %965 = vmatpush2.bf16.msra.mxu0 0
        %966 = vmatprep.subr.bf16.mxu0 0
        %967 = vmatpush2.bf16.msra.mxu0 0
        %968 = vmatprep.subr.bf16.mxu0 0
        %969 = vmatpush2.bf16.msra.mxu0 0
        %970 = vmatprep.mubr.bf16.mxu0 0
        %971 = vmatmul.mubr.bf16.gmra.mxu0 %v933
        %v972 = vpop.f32.mrf.mxu0
        %v973 = vadd.f32 0.0, %v972
        %v974 = vpop.f32.mrf.mxu0
        %v975 = vpop.f32.mrf.mxu0
        %v976 = vpop.f32.mrf.mxu0
        %977 = vdwg.mxu0
        %v978 = vadd.f32 %v815, %v973
        %979 = vrot.lane.b32.xlu0 %v502, 104
        %v980 = vpop.permute.xlu0 %979
        %981 = vrot.lane.b32.xlu0 %v502, 72
        %v982 = vpop.permute.xlu0 %981
        %v984 = vsel %vm506, %v980, 0
        %v987 = vsel %vm506, %v982, 0
        %989 = vmatprep.subr.bf16.mxu0 0
        %990 = vmatpush1.bf16.xpose.msra.mxu0 0
        %991 = vmatprep.subr.bf16.mxu0 0
        %992 = vmatpush1.bf16.xpose.msra.mxu0 0
        %993 = vmatprep.subr.bf16.mxu0 0
        %994 = vmatpush1.bf16.xpose.msra.mxu0 0
        %995 = vmatprep.subr.bf16.mxu0 0
        %996 = vmatpush1.bf16.xpose.msra.mxu0 0
        %997 = vmatprep.subr.bf16.mxu0 0
        %998 = vmatpush1.bf16.xpose.msra.mxu0 0
        %999 = vmatprep.subr.bf16.mxu0 0
        %1000 = vmatpush1.bf16.xpose.msra.mxu0 0
        %1001 = vmatprep.subr.bf16.mxu0 0
        %1002 = vmatpush1.bf16.xpose.msra.mxu0 0
        %1003 = vmatprep.subr.bf16.mxu0 0
        %1004 = vmatpush1.bf16.xpose.msra.mxu0 %v987
        %1005 = vmatprep.subr.bf16.mxu0 0
        %1006 = vmatpush2.bf16.xpose.msra.mxu0 0
        %1007 = vmatprep.subr.bf16.mxu0 0
        %1008 = vmatpush2.bf16.xpose.msra.mxu0 0
        %1009 = vmatprep.subr.bf16.mxu0 0
        %1010 = vmatpush2.bf16.xpose.msra.mxu0 0
        %1011 = vmatprep.subr.bf16.mxu0 0
        %1012 = vmatpush2.bf16.xpose.msra.mxu0 0
        %1013 = vmatprep.subr.bf16.mxu0 0
        %1014 = vmatpush2.bf16.xpose.msra.mxu0 0
        %1015 = vmatprep.subr.bf16.mxu0 0
        %1016 = vmatpush2.bf16.xpose.msra.mxu0 0
        %1017 = vmatprep.subr.bf16.mxu0 0
        %1018 = vmatpush2.bf16.xpose.msra.mxu0 0
        %1019 = vmatprep.subr.bf16.mxu0 0
        %1020 = vmatpush2.bf16.xpose.msra.mxu0 0
        %1021 = vmatprep.mubr.bf16.mxu0 0
        %1022 = vmatmul.mubr.bf16.gmra.mxu0 %v984
        %v1023 = vpop.f32.mrf.mxu0
        %v1024 = vadd.f32 0.0, %v1023
        %v1025 = vpop.f32.mrf.mxu0
        %v1026 = vpop.f32.mrf.mxu0
        %v1027 = vpop.f32.mrf.mxu0
        %1028 = vdwg.mxu0
        %v1029 = vsel %vm506, %v1024, -inf
        %1030 = vmax.xlane.f32.xlu0 %v1029
        %v1031 = vpop.xlane.xlu0 %1030
        %v1032 = vsub.f32 %v1024, %v1031
        %v1033 = vmul.f32 %v1032, 1.442695
        %v1034 = vpow.pop %v1033
        %v1035 = vsel %vm506, %v1034, 0.0
        %1036 = vadd.xlane.f32.xlu0 %v1035
        %v1037 = vpop.xlane.xlu0 %1036
        %v1038 = vrcp.pop %v1037
        %v1039 = vpack.c.bf16 %v1034, %v1034
        %1040 = vrot.lane.b32.xlu0 %v502, 40
        %v1041 = vpop.permute.xlu0 %1040
        %v1043 = vsel %vm506, %v1039, 0
        %v1046 = vsel %vm569, %v1041, 0
        %1048 = vmatprep.subr.bf16.mxu0 0
        %1049 = vmatpush1.bf16.msra.mxu0 0
        %1050 = vmatprep.subr.bf16.mxu0 0
        %1051 = vmatpush1.bf16.msra.mxu0 0
        %1052 = vmatprep.subr.bf16.mxu0 0
        %1053 = vmatpush1.bf16.msra.mxu0 0
        %1054 = vmatprep.subr.bf16.mxu0 0
        %1055 = vmatpush1.bf16.msra.mxu0 0
        %1056 = vmatprep.subr.bf16.mxu0 0
        %1057 = vmatpush1.bf16.msra.mxu0 0
        %1058 = vmatprep.subr.bf16.mxu0 0
        %1059 = vmatpush1.bf16.msra.mxu0 0
        %1060 = vmatprep.subr.bf16.mxu0 0
        %1061 = vmatpush1.bf16.msra.mxu0 0
        %1062 = vmatprep.subr.bf16.mxu0 0
        %1063 = vmatpush1.bf16.msra.mxu0 %v1046
        %1064 = vmatprep.subr.bf16.mxu0 0
        %1065 = vmatpush2.bf16.msra.mxu0 0
        %1066 = vmatprep.subr.bf16.mxu0 0
        %1067 = vmatpush2.bf16.msra.mxu0 0
        %1068 = vmatprep.subr.bf16.mxu0 0
        %1069 = vmatpush2.bf16.msra.mxu0 0
        %1070 = vmatprep.subr.bf16.mxu0 0
        %1071 = vmatpush2.bf16.msra.mxu0 0
        %1072 = vmatprep.subr.bf16.mxu0 0
        %1073 = vmatpush2.bf16.msra.mxu0 0
        %1074 = vmatprep.subr.bf16.mxu0 0
        %1075 = vmatpush2.bf16.msra.mxu0 0
        %1076 = vmatprep.subr.bf16.mxu0 0
        %1077 = vmatpush2.bf16.msra.mxu0 0
        %1078 = vmatprep.subr.bf16.mxu0 0
        %1079 = vmatpush2.bf16.msra.mxu0 0
        %1080 = vmatprep.mubr.bf16.mxu0 0
        %1081 = vmatmul.mubr.bf16.gmra.mxu0 %v1043
        %v1082 = vpop.f32.mrf.mxu0
        %v1083 = vadd.f32 0.0, %v1082
        %v1084 = vpop.f32.mrf.mxu0
        %v1085 = vpop.f32.mrf.mxu0
        %v1086 = vpop.f32.mrf.mxu0
        %1087 = vdwg.mxu0
        %v1088 = vmul.f32 %v1083, %v1038
        %v1089 = vpack.c.bf16 %v1088, %v1088
        %v1090 = vld [vmem:[%s4 + $0xc] sm:$0xf]
        %v1092 = vsel %vm506, %v1089, 0
        %v1095 = vsel %vm569, %v1090, 0
        %1097 = vmatprep.subr.bf16.mxu0 0
        %1098 = vmatpush1.bf16.msra.mxu0 0
        %1099 = vmatprep.subr.bf16.mxu0 0
        %1100 = vmatpush1.bf16.msra.mxu0 0
        %1101 = vmatprep.subr.bf16.mxu0 0
        %1102 = vmatpush1.bf16.msra.mxu0 0
        %1103 = vmatprep.subr.bf16.mxu0 0
        %1104 = vmatpush1.bf16.msra.mxu0 0
        %1105 = vmatprep.subr.bf16.mxu0 0
        %1106 = vmatpush1.bf16.msra.mxu0 0
        %1107 = vmatprep.subr.bf16.mxu0 0
        %1108 = vmatpush1.bf16.msra.mxu0 0
        %1109 = vmatprep.subr.bf16.mxu0 0
        %1110 = vmatpush1.bf16.msra.mxu0 0
        %1111 = vmatprep.subr.bf16.mxu0 0
        %1112 = vmatpush1.bf16.msra.mxu0 %v1095
        %1113 = vmatprep.subr.bf16.mxu0 0
        %1114 = vmatpush2.bf16.msra.mxu0 0
        %1115 = vmatprep.subr.bf16.mxu0 0
        %1116 = vmatpush2.bf16.msra.mxu0 0
        %1117 = vmatprep.subr.bf16.mxu0 0
        %1118 = vmatpush2.bf16.msra.mxu0 0
        %1119 = vmatprep.subr.bf16.mxu0 0
        %1120 = vmatpush2.bf16.msra.mxu0 0
        %1121 = vmatprep.subr.bf16.mxu0 0
        %1122 = vmatpush2.bf16.msra.mxu0 0
        %1123 = vmatprep.subr.bf16.mxu0 0
        %1124 = vmatpush2.bf16.msra.mxu0 0
        %1125 = vmatprep.subr.bf16.mxu0 0
        %1126 = vmatpush2.bf16.msra.mxu0 0
        %1127 = vmatprep.subr.bf16.mxu0 0
        %1128 = vmatpush2.bf16.msra.mxu0 0
        %1129 = vmatprep.mubr.bf16.mxu0 0
        %1130 = vmatmul.mubr.bf16.gmra.mxu0 %v1092
        %v1131 = vpop.f32.mrf.mxu0
        %v1132 = vadd.f32 0.0, %v1131
        %v1133 = vpop.f32.mrf.mxu0
        %v1134 = vpop.f32.mrf.mxu0
        %v1135 = vpop.f32.mrf.mxu0
        %1136 = vdwg.mxu0
        %v1137 = vadd.f32 %v978, %v1132
        %v1138 = vadd.f32 %v410, %v1137
        %v1139 = vld [vmem:[%s5] sm:$0x1]
        %v1141 = vlaneseq
        %v1142 = vshrl.u32 %v1141, 7
        %v1143 = vsub.s32 0, %v1142
        %v1144 = vrot.slane %v1139, %v1143
        %v1146 = vadd.f32 %v1138, %v1144
        %v1147 = vld [vmem:[%s6] sm:$0x1]
        %v1148 = vld [vmem:[%s7] sm:$0x1]
        %v1149 = vsel %vm413, %v1146, 0.0
        %1150 = vadd.xlane.f32.xlu0 %v1149
        %v1151 = vpop.xlane.xlu0 %1150
        %v1152 = vmul.f32 %v1151, %v417
        %v1153 = vsub.f32 %v1146, %v1152
        %v1154 = vmul.f32 %v1153, %v1153
        %v1155 = vsel %vm413, %v1154, 0.0
        %1156 = vadd.xlane.f32.xlu0 %v1155
        %v1157 = vpop.xlane.xlu0 %1156
        %v1158 = vmul.f32 %v1157, %v417
        %v1159 = vadd.f32 %v1158, 1e-05
        %v1160 = vrsqrt.pop %v1159
        %v1161 = vmul.f32 %v1153, %v1160
        %v1163 = vlaneseq
        %v1164 = vshrl.u32 %v1163, 7
        %v1165 = vsub.s32 0, %v1164
        %v1166 = vrot.slane %v1147, %v1165
        %v1168 = vmul.f32 %v1161, %v1166
        %v1170 = vlaneseq
        %v1171 = vshrl.u32 %v1170, 7
        %v1172 = vsub.s32 0, %v1171
        %v1173 = vrot.slane %v1148, %v1172
        %v1175 = vadd.f32 %v1168, %v1173
        %v1176 = vpack.c.bf16 %v1175, %v1175
        %v1177 = vld [vmem:[%s8] sm:$0xf]
        %v1178 = vld [vmem:[%s8 + $0x4] sm:$0xf]
        %v1179 = vld [vmem:[%s8 + $0x8] sm:$0xf]
        %v1180 = vld [vmem:[%s8 + $0xc] sm:$0xf]
        %v1181 = vld [vmem:[%s9] sm:$0x1]
        %v1183 = vlaneseq
        %v1184 = vshrl.u32 %v1183, 7
        %v1185 = vsub.s32 0, %v1184
        %v1186 = vrot.slane %v1181, %v1185
        %v1192 = vunpack.c.l.b16 %v1177
        %v1193 = vunpack.c.l.b16 %v1178
        %v1194 = vunpack.c.l.b16 %v1179
        %v1195 = vunpack.c.l.b16 %v1180
        %v1196 = vpack.c.b16 %v1193, %v1192
        %v1197 = vpack.c.b16 %v1195, %v1194
        %v1201 = vsel %vm413, %v1176, 0
        %1203 = vmatprep.subr.bf16.mxu0 0
        %1204 = vmatpush1.bf16.msra.mxu0 0
        %1205 = vmatprep.subr.bf16.mxu0 0
        %1206 = vmatpush1.bf16.msra.mxu0 0
        %1207 = vmatprep.subr.bf16.mxu0 0
        %1208 = vmatpush1.bf16.msra.mxu0 0
        %1209 = vmatprep.subr.bf16.mxu0 0
        %1210 = vmatpush1.bf16.msra.mxu0 0
        %1211 = vmatprep.subr.bf16.mxu0 0
        %1212 = vmatpush1.bf16.msra.mxu0 0
        %1213 = vmatprep.subr.bf16.mxu0 0
        %1214 = vmatpush1.bf16.msra.mxu0 0
        %1215 = vmatprep.subr.bf16.mxu0 0
        %1216 = vmatpush1.bf16.msra.mxu0 %v1197
        %1217 = vmatprep.subr.bf16.mxu0 0
        %1218 = vmatpush1.bf16.msra.mxu0 %v1196
        %1219 = vmatprep.subr.bf16.mxu0 0
        %1220 = vmatpush2.bf16.msra.mxu0 0
        %1221 = vmatprep.subr.bf16.mxu0 0
        %1222 = vmatpush2.bf16.msra.mxu0 0
        %1223 = vmatprep.subr.bf16.mxu0 0
        %1224 = vmatpush2.bf16.msra.mxu0 0
        %1225 = vmatprep.subr.bf16.mxu0 0
        %1226 = vmatpush2.bf16.msra.mxu0 0
        %1227 = vmatprep.subr.bf16.mxu0 0
        %1228 = vmatpush2.bf16.msra.mxu0 0
        %1229 = vmatprep.subr.bf16.mxu0 0
        %1230 = vmatpush2.bf16.msra.mxu0 0
        %1231 = vmatprep.subr.bf16.mxu0 0
        %1232 = vmatpush2.bf16.msra.mxu0 0
        %1233 = vmatprep.subr.bf16.mxu0 0
        %1234 = vmatpush2.bf16.msra.mxu0 0
        %1235 = vmatprep.mubr.bf16.mxu0 0
        %1236 = vmatmul.mubr.bf16.gmra.mxu0 %v1201
        %v1237 = vpop.f32.mrf.mxu0
        %v1238 = vadd.f32 %v1186, %v1237
        %v1239 = vpop.f32.mrf.mxu0
        %v1240 = vpop.f32.mrf.mxu0
        %v1241 = vpop.f32.mrf.mxu0
        %1242 = vdwg.mxu0
        %v1243 = vmul.f32 %v1238, 0.5
        %v1244 = vmul.f32 %v1238, 0.70710677
        %v1245 = verf.f32.pop %v1244
        %v1246 = vadd.f32 %v1245, 1.0
        %v1247 = vmul.f32 %v1243, %v1246
        %v1248 = vpack.c.bf16 %v1247, %v1247
        %v1249 = vld [vmem:[%s10] sm:$0xf]
        %v1250 = vld [vmem:[%s10 + $0x4] sm:$0xf]
        %v1251 = vld [vmem:[%s10 + $0x8] sm:$0xf]
        %v1252 = vld [vmem:[%s10 + $0xc] sm:$0xf]
        %v1253 = vld [vmem:[%s10 + $0x10] sm:$0xf]
        %v1254 = vld [vmem:[%s10 + $0x14] sm:$0xf]
        %v1255 = vld [vmem:[%s10 + $0x18] sm:$0xf]
        %v1256 = vld [vmem:[%s10 + $0x1c] sm:$0xf]
        %v1257 = vld [vmem:[%s10 + $0x20] sm:$0xf]
        %v1258 = vld [vmem:[%s10 + $0x24] sm:$0xf]
        %v1259 = vld [vmem:[%s10 + $0x28] sm:$0xf]
        %v1260 = vld [vmem:[%s10 + $0x2c] sm:$0xf]
        %v1261 = vld [vmem:[%s10 + $0x30] sm:$0xf]
        %v1262 = vld [vmem:[%s10 + $0x34] sm:$0xf]
        %v1263 = vld [vmem:[%s10 + $0x38] sm:$0xf]
        %v1264 = vld [vmem:[%s10 + $0x3c] sm:$0xf]
        %v1265 = vld [vmem:[%s11] sm:$0x1]
        %v1267 = vlaneseq
        %v1268 = vshrl.u32 %v1267, 7
        %v1269 = vsub.s32 0, %v1268
        %v1270 = vrot.slane %v1265, %v1269
        %v1288 = vunpack.c.l.b16 %v1249
        %v1289 = vunpack.c.l.b16 %v1250
        %v1290 = vunpack.c.l.b16 %v1251
        %v1291 = vunpack.c.l.b16 %v1252
        %v1292 = vunpack.c.l.b16 %v1253
        %v1293 = vunpack.c.l.b16 %v1254
        %v1294 = vunpack.c.l.b16 %v1255
        %v1295 = vunpack.c.l.b16 %v1256
        %v1296 = vunpack.c.l.b16 %v1257
        %v1297 = vunpack.c.l.b16 %v1258
        %v1298 = vunpack.c.l.b16 %v1259
        %v1299 = vunpack.c.l.b16 %v1260
        %v1300 = vunpack.c.l.b16 %v1261
        %v1301 = vunpack.c.l.b16 %v1262
        %v1302 = vunpack.c.l.b16 %v1263
        %v1303 = vunpack.c.l.b16 %v1264
        %v1304 = vpack.c.b16 %v1289, %v1288
        %v1305 = vpack.c.b16 %v1291, %v1290
        %v1306 = vpack.c.b16 %v1293, %v1292
        %v1307 = vpack.c.b16 %v1295, %v1294
        %v1308 = vpack.c.b16 %v1297, %v1296
        %v1309 = vpack.c.b16 %v1299, %v1298
        %v1310 = vpack.c.b16 %v1301, %v1300
        %v1311 = vpack.c.b16 %v1303, %v1302
        %1320 = vmatprep.subr.bf16.mxu0 0
        %1321 = vmatpush1.bf16.msra.mxu0 %v1311
        %1322 = vmatprep.subr.bf16.mxu0 0
        %1323 = vmatpush1.bf16.msra.mxu0 %v1310
        %1324 = vmatprep.subr.bf16.mxu0 0
        %1325 = vmatpush1.bf16.msra.mxu0 %v1309
        %1326 = vmatprep.subr.bf16.mxu0 0
        %1327 = vmatpush1.bf16.msra.mxu0 %v1308
        %1328 = vmatprep.subr.bf16.mxu0 0
        %1329 = vmatpush1.bf16.msra.mxu0 %v1307
        %1330 = vmatprep.subr.bf16.mxu0 0
        %1331 = vmatpush1.bf16.msra.mxu0 %v1306
        %1332 = vmatprep.subr.bf16.mxu0 0
        %1333 = vmatpush1.bf16.msra.mxu0 %v1305
        %1334 = vmatprep.subr.bf16.mxu0 0
        %1335 = vmatpush1.bf16.msra.mxu0 %v1304
        %1336 = vmatprep.subr.bf16.mxu0 0
        %1337 = vmatpush2.bf16.msra.mxu0 0
        %1338 = vmatprep.subr.bf16.mxu0 0
        %1339 = vmatpush2.bf16.msra.mxu0 0
        %1340 = vmatprep.subr.bf16.mxu0 0
        %1341 = vmatpush2.bf16.msra.mxu0 0
        %1342 = vmatprep.subr.bf16.mxu0 0
        %1343 = vmatpush2.bf16.msra.mxu0 0
        %1344 = vmatprep.subr.bf16.mxu0 0
        %1345 = vmatpush2.bf16.msra.mxu0 0
        %1346 = vmatprep.subr.bf16.mxu0 0
        %1347 = vmatpush2.bf16.msra.mxu0 0
        %1348 = vmatprep.subr.bf16.mxu0 0
        %1349 = vmatpush2.bf16.msra.mxu0 0
        %1350 = vmatprep.subr.bf16.mxu0 0
        %1351 = vmatpush2.bf16.msra.mxu0 0
        %1352 = vmatprep.mubr.bf16.mxu0 0
        %1353 = vmatmul.mubr.bf16.gmra.mxu0 %v1248
        %v1354 = vpop.f32.mrf.mxu0
        %v1355 = vadd.f32 %v1270, %v1354
        %v1356 = vpop.f32.mrf.mxu0
        %v1357 = vpop.f32.mrf.mxu0
        %v1358 = vpop.f32.mrf.mxu0
        %1359 = vdwg.mxu0
        %v1360 = vadd.f32 %v1146, %v1355
        %1361 = vst.msk [vmem:[%s404] sm:$0xff] %vm413, %v1360
        %s1362 = sand.u32 %s291, 1
        %s1363 = scalar_lea.sflag [#allocation3], %s1362
        %s1364 = sand.u32 %s291, 1
        %s1365 = smul.addr %s1364, 8
        %s1366 = scalar_lea.vmem [#allocation2], %s1365
        // Predicated region
        $region69: #{tpu_custom_call.1} parent=67 // pred_check
          %p1367 = pneg %p301
        $region70: #{tpu_custom_call.1} parent=67 // pred_check_branch
          %1369 = sbr.rel (%p1367) target = $region72
        $region71: #{tpu_custom_call.1} parent=67 // pred_region
          %s1371 = ssub.s32 128, 128
          %1372 = vsyncadd %s1363, %s1371
          %s1373 = smul.addr %s26, 128
          %s1374 = scalar_lea.hbm %s12, %s1373
          %s1376 = sshll.u32 %s1366, 4
          %s1377 = int_to_ptr.vmem [resolvable:$true] %s1376
          %1379 = dma.vmem_to_hbm [thread:$0]  %s1377, 128, %s1374, %s1363
        $region72: #{tpu_custom_call.1} parent=67 // pred_fallthru
          _
      $region68: #{tpu_custom_call.1} parent=5 // pred_fallthru
        _
      %p1380 = scmp.le.s32.totalorder 2, %s21
      // Predicated region
      $region73: #{tpu_custom_call.1} parent=5 // pred_check
        %p1381 = pneg %p1380
      $region74: #{tpu_custom_call.1} parent=5 // pred_check_branch
        %1383 = sbr.rel (%p1381) target = $region76
      $region75: #{tpu_custom_call.1} parent=5 // pred_region
        %s1384 = ssub.s32 %s21, 2
        // Predicated region
        $region77: #{tpu_custom_call.1} parent=75 // pred_check
          %p1385 = pneg %p307
        $region78: #{tpu_custom_call.1} parent=75 // pred_check_branch
          %1387 = sbr.rel (%p1385) target = $region80
        $region79: #{tpu_custom_call.1} parent=75 // pred_region
          %s1388 = sand.u32 %s292, 1
          %s1389 = scalar_lea.sflag [#allocation3], %s1388
          %s1390 = sand.u32 %s292, 1
          %s1391 = smul.addr %s1390, 8
          %s1392 = scalar_lea.vmem [#allocation2], %s1391
          %1393 = dma.done %s1389, 128
        $region80: #{tpu_custom_call.1} parent=75 // pred_fallthru
          _
      $region76: #{tpu_custom_call.1} parent=5 // pred_fallthru
        _
    $region6: #{tpu_custom_call.1} parent=1 // loop_footer
      %s25 = sadd.s32 1, %s21
    $region7: #{tpu_custom_call.1} parent=1 // loop_footer_branch
      %20 = sbr.rel target = $region3
    $region8: #{tpu_custom_call.1} parent=1 // loop_exit
      _
    %1394 = vsyncpa [#allocation3], 1
    %s1395 = scalar_lea.sflag [#allocation3], 1
    %1396 = vsyncpa %s1395, 1

</llo_original>
